<compile_context>
chip_gen: v5e
topology: v5e:2x2
jax: 0.10.0
libtpu: 0.0.40
codegen_flags: <defaults>
</compile_context>

<pallas_src>
import functools

import jax
import jax.numpy as jnp
from jax.experimental import pallas as pl
from jax.experimental.pallas import tpu as pltpu

SEASON_T = 7                       # "T = 7" in the PyTorch forward
DILATION = (1, 2, 7)               # default dilation of the module
PREC = jax.lax.Precision.HIGHEST   # used only by the pure-JAX reference


def _const_index_map(ndim):
    zeros = (0,) * ndim
    return lambda c: zeros


def _drnn_kernel(chunk, b_pad, odim,
                 # inputs
                 xw_ref, vmask_ref, smask_ref,
                 wh1_ref,
                 wx2_ref, wh2_ref, b2_ref,
                 wx3_ref, wh3_ref, b3_ref,
                 wo1_ref, wo2_ref, wo3_ref, bo_ref,
                 # outputs
                 out_ref, res_ref, seas_ref, smooth_ref,
                 # scratch
                 h1_c, c2, c3, s_cache, h1_stage, h2_stage, h3_stage):
    c = pl.program_id(0)

    # ---- init persistent state (hidden ring buffers + loss accumulators) ----
    @pl.when(c == 0)
    def _init():
        h1_c[...] = jnp.zeros_like(h1_c)
        c2[...] = jnp.zeros_like(c2)
        c3[...] = jnp.zeros_like(c3)
        s_cache[...] = jnp.zeros_like(s_cache)
        res_ref[...] = jnp.zeros_like(res_ref)
        seas_ref[...] = jnp.zeros_like(seas_ref)
        smooth_ref[...] = jnp.zeros_like(smooth_ref)

    def dot_bf16(act, w_ref):
        # bf16 MXU operands, f32 accumulation
        return jnp.dot(act.astype(jnp.bfloat16), w_ref[...],
                       preferred_element_type=jnp.float32)

    # ---- Phase A: layer 1 (dilation 1) -- the only truly serial recurrence --
    # x @ Wx1 + b1 was hoisted to the wrapper (xw_ref holds it per timestep).
    h1 = h1_c[...]
    for i in range(chunk):                       # static unroll
        h1 = jnp.tanh(xw_ref[i] + dot_bf16(h1, wh1_ref))
        h1_stage[pl.ds(i * b_pad, b_pad), :] = h1
    h1_c[...] = h1

    # ---- Phase B: layer 2 (dilation 2) -- independent timestep pairs --------
    # Hoist hidden1 @ Wx2 + b2 to one whole-chunk matmul, then step pairs.
    xw2 = dot_bf16(h1_stage[...], wx2_ref) + b2_ref[...]     # (chunk*B, H)
    prev2 = c2[...]                                          # (2*B, H): [even; odd]
    for j in range(chunk // 2):
        r0 = 2 * j * b_pad
        h2 = jnp.tanh(xw2[r0:r0 + 2 * b_pad, :] + dot_bf16(prev2, wh2_ref))
        h2_stage[pl.ds(r0, 2 * b_pad), :] = h2
        prev2 = h2
    c2[...] = prev2

    # ---- Phase C: layer 3 (dilation 7) -- groups of 7 independent steps -----
    xw3 = dot_bf16(h2_stage[...], wx3_ref) + b3_ref[...]     # (chunk*B, H)
    prev3 = c3[...]                                          # (7*B, H), phase-ordered
    for g in range(chunk // SEASON_T):
        r0 = g * SEASON_T * b_pad
        h3 = jnp.tanh(xw3[r0:r0 + SEASON_T * b_pad, :] + dot_bf16(prev3, wh3_ref))
        h3_stage[pl.ds(r0, SEASON_T * b_pad), :] = h3
        prev3 = h3
    c3[...] = prev3

    # ---- Phase D: fused output heads + losses, whole chunk at once ----------
    # Zero-extended head weights (H, 3*O) accumulate all three heads into one
    # packed slab; single tanh on (chunk*B, 3*O).
    heads = jnp.tanh(dot_bf16(h1_stage[...], wo1_ref)
                     + dot_bf16(h2_stage[...], wo2_ref)
                     + dot_bf16(h3_stage[...], wo3_ref)
                     + bo_ref[...])                          # (chunk*B, 3*O)
    o1 = heads[:, :odim]
    o2 = heads[:, odim:2 * odim]
    o3 = heads[:, 2 * odim:]
    osum = o1 + o2 + o3

    vmask = vmask_ref[...]          # (chunk*B, 1): valid (real batch, real time)
    smask = smask_ref[...]          # vmask & (t >= 7)

    # res_loss: sum over valid rows/lanes of o1^2 (1/(B*O) applied in wrapper)
    res_ref[...] += jnp.sum(o1 * o1 * vmask, keepdims=True)

    # seasonal_loss: (o2[t] - o2[t-7])^2; prev o2 comes from the persistent
    # 7-step cache for the first 7 steps of the chunk, in-chunk rows otherwise.
    prev_o2 = jnp.concatenate(
        [s_cache[...], o2[:(chunk - SEASON_T) * b_pad, :]], axis=0)
    d = o2 - prev_o2
    seas_ref[...] += jnp.sum(d * d * smask, keepdims=True)
    s_cache[...] = o2[(chunk - SEASON_T) * b_pad:, :]

    # smooth_loss: mse(std(o3, dim=1), 0) == mean unbiased variance (no sqrt)
    mu = jnp.mean(o3, axis=1, keepdims=True)
    dv = o3 - mu
    var = jnp.sum(dv * dv, axis=1, keepdims=True) * (1.0 / (odim - 1))
    smooth_ref[...] += jnp.sum(var * vmask, keepdims=True)

    # one lane-packed store for the whole chunk: (B_pad, chunk*O)
    out_ref[0] = jnp.concatenate(
        [osum[i * b_pad:(i + 1) * b_pad, :] for i in range(chunk)], axis=1)


def drnn_forward(x, params):
    """x: (B, S, input_dim) batch-major (PyTorch convention).

    Returns (outputs (B, S, output_dim), res_loss, seasonal_loss, smooth_loss).
    The PyTorch `.squeeze(2)` is a no-op here since output_dim > 1.
    """
    B, S, D = x.shape
    H = params["wh1"].shape[0]
    O = params["wo1"].shape[1]

    # chunk is a multiple of 14 (= lcm of dilations 2 and 7) so all ring slots
    # are static; 28 gives a lane-denser output store for longer sequences.
    chunk = 14 if S <= 28 else 28
    S_pad = -(-S // chunk) * chunk
    num_chunks = S_pad // chunk
    b_pad = -(-B // 8) * 8                        # pad batch to sublane multiple

    f32, bf16 = jnp.float32, jnp.bfloat16

    # time-major + zero-pad (time to chunk multiple, batch to sublane multiple)
    x_tm = jnp.transpose(x, (1, 0, 2)).astype(f32)            # (S, B, D)
    x_tm = jnp.pad(x_tm, ((0, S_pad - S), (0, b_pad - B), (0, 0)))

    # hoisted layer-1 input projection (+ bias) for all timesteps at once
    xw = (jnp.einsum("sbd,dh->sbh", x_tm.astype(bf16),
                     params["wx1"].astype(bf16),
                     preferred_element_type=f32)
          + params["b1"].astype(f32))                         # (S_pad, B_pad, H)

    # validity masks (real batch rows, real timesteps); built outside the kernel
    step_ids = jnp.arange(S_pad)[:, None]                     # (S_pad, 1)
    bidx = jnp.arange(b_pad)[None, :]                         # (1, B_pad)
    valid = (step_ids < S) & (bidx < B)
    vmask = valid.astype(f32).reshape(S_pad * b_pad, 1)
    smask = (valid & (step_ids >= SEASON_T)).astype(f32).reshape(S_pad * b_pad, 1)

    # zero-extended head weights so one accumulated matmul yields [o1|o2|o3]
    Z = jnp.zeros((H, O), f32)
    wo1e = jnp.concatenate([params["wo1"], Z, Z], axis=1).astype(bf16)
    wo2e = jnp.concatenate([Z, params["wo2"], Z], axis=1).astype(bf16)
    wo3e = jnp.concatenate([Z, Z, params["wo3"]], axis=1).astype(bf16)
    bo = jnp.concatenate([params["bo1"], params["bo2"], params["bo3"]],
                         axis=1).astype(f32)

    weights = [
        params["wh1"].astype(bf16),
        params["wx2"].astype(bf16), params["wh2"].astype(bf16),
        params["b2"].astype(f32),
        params["wx3"].astype(bf16), params["wh3"].astype(bf16),
        params["b3"].astype(f32),
        wo1e, wo2e, wo3e, bo,
    ]

    in_specs = [
        pl.BlockSpec((chunk, b_pad, H), lambda c: (c, 0, 0)),
        pl.BlockSpec((chunk * b_pad, 1), lambda c: (c, 0)),
        pl.BlockSpec((chunk * b_pad, 1), lambda c: (c, 0)),
    ]
    in_specs += [pl.BlockSpec(w.shape, _const_index_map(w.ndim)) for w in weights]

    out_specs = [
        pl.BlockSpec((1, b_pad, chunk * O), lambda c: (c, 0, 0)),
        pl.BlockSpec((1, 1), lambda c: (0, 0)),
        pl.BlockSpec((1, 1), lambda c: (0, 0)),
        pl.BlockSpec((1, 1), lambda c: (0, 0)),
    ]
    out_shape = [
        jax.ShapeDtypeStruct((num_chunks, b_pad, chunk * O), f32),
        jax.ShapeDtypeStruct((1, 1), f32),
        jax.ShapeDtypeStruct((1, 1), f32),
        jax.ShapeDtypeStruct((1, 1), f32),
    ]
    scratch_shapes = [
        pltpu.VMEM((b_pad, H), f32),                 # dilation-1 hidden carry
        pltpu.VMEM((2 * b_pad, H), f32),             # dilation-2 state [even; odd]
        pltpu.VMEM((SEASON_T * b_pad, H), f32),      # dilation-7 state, phase-ordered
        pltpu.VMEM((SEASON_T * b_pad, O), f32),      # seasonal o2 ring cache
        pltpu.VMEM((chunk * b_pad, H), f32),         # hidden1 staging slab
        pltpu.VMEM((chunk * b_pad, H), f32),         # hidden2 staging slab
        pltpu.VMEM((chunk * b_pad, H), f32),         # hidden3 staging slab
    ]

    kernel = functools.partial(_drnn_kernel, chunk, b_pad, O)
    out_packed, res, seas, smooth = pl.pallas_call(
        kernel,
        out_shape=out_shape,
        grid=(num_chunks,),
        in_specs=in_specs,
        out_specs=out_specs,
        scratch_shapes=scratch_shapes,
        compiler_params=pltpu.CompilerParams(
            dimension_semantics=("arbitrary",)),     # sequential recurrence
    )(xw, vmask, smask, *weights)

    # unpack (num_chunks, B_pad, chunk*O) -> (B, S, O)
    outputs = out_packed.reshape(num_chunks, b_pad, chunk, O)
    outputs = jnp.transpose(outputs, (1, 0, 2, 3)).reshape(b_pad, S_pad, O)
    outputs = outputs[:B, :S]

    res_loss = res[0, 0] / (B * O)
    seas_loss = seas[0, 0] / (B * O)
    smooth_loss = smooth[0, 0] / B
    return outputs, res_loss, seas_loss, smooth_loss


def init_params(key, input_dim, output_dim, hidden_size):
    """Deterministic synthetic params (PyTorch-style uniform(-1/sqrt(H), 1/sqrt(H)))."""
    ks = jax.random.split(key, 15)
    bound = 1.0 / float(jnp.sqrt(jnp.float32(hidden_size)))

    def U(k, shape):
        return jax.random.uniform(k, shape, jnp.float32, -bound, bound)

    return dict(
        wx1=U(ks[0], (input_dim, hidden_size)),
        wh1=U(ks[1], (hidden_size, hidden_size)),
        b1=U(ks[2], (1, hidden_size)),
        wx2=U(ks[3], (hidden_size, hidden_size)),
        wh2=U(ks[4], (hidden_size, hidden_size)),
        b2=U(ks[5], (1, hidden_size)),
        wx3=U(ks[6], (hidden_size, hidden_size)),
        wh3=U(ks[7], (hidden_size, hidden_size)),
        b3=U(ks[8], (1, hidden_size)),
        wo1=U(ks[9], (hidden_size, output_dim)),
        bo1=U(ks[10], (1, output_dim)),
        wo2=U(ks[11], (hidden_size, output_dim)),
        bo2=U(ks[12], (1, output_dim)),
        wo3=U(ks[13], (hidden_size, output_dim)),
        bo3=U(ks[14], (1, output_dim)),
    )


def drnn_ref(x, params):
    """Pure-JAX f32 reference mirroring the PyTorch forward, for verification."""
    B, S, _ = x.shape
    H = params["wh1"].shape[0]
    dot = lambda a, b: jnp.dot(a, b, precision=PREC)
    h0 = jnp.zeros((B, H), jnp.float32)
    cache1 = [h0] * DILATION[0]
    cache2 = [h0] * DILATION[1]
    cache3 = [h0] * DILATION[2]
    s_cached = []
    res = seas = smooth = jnp.float32(0.0)
    outs = []
    for t in range(S):
        xt = x[:, t, :]
        h1, h2, h3 = cache1.pop(0), cache2.pop(0), cache3.pop(0)
        hidden1 = jnp.tanh(dot(xt, params["wx1"]) + dot(h1, params["wh1"]) + params["b1"])
        hidden2 = jnp.tanh(dot(hidden1, params["wx2"]) + dot(h2, params["wh2"]) + params["b2"])
        hidden3 = jnp.tanh(dot(hidden2, params["wx3"]) + dot(h3, params["wh3"]) + params["b3"])
        cache1.append(hidden1); cache2.append(hidden2); cache3.append(hidden3)
        o1 = jnp.tanh(dot(hidden1, params["wo1"]) + params["bo1"])
        o2 = jnp.tanh(dot(hidden2, params["wo2"]) + params["bo2"])
        o3 = jnp.tanh(dot(hidden3, params["wo3"]) + params["bo3"])
        res = res + jnp.mean(o1 ** 2)
        if len(s_cached) == SEASON_T:
            sw = s_cached.pop(0)
            seas = seas + jnp.mean((o2 - sw) ** 2)
        std = jnp.std(o3, axis=1, ddof=1)
        smooth = smooth + jnp.mean(std ** 2)
        s_cached.append(o2)
        outs.append(o1 + o2 + o3)
    return jnp.stack(outs, axis=1), res, seas, smooth


if __name__ == "__main__":
    B, S, D, H, O = 2, 16, 8, 32, 4      # batch, seq, input_dim, hidden, output_dim
    key = jax.random.PRNGKey(0)
    kx, kp = jax.random.split(key)
    x = jax.random.normal(kx, (B, S, D), jnp.float32)
    params = init_params(kp, D, O, H)

    fwd = jax.jit(drnn_forward)
    result = jax.block_until_ready(fwd(x, params))
    outputs, res_l, seas_l, smooth_l = result

    ref_out, ref_res, ref_seas, ref_smooth = drnn_ref(x, params)
    # tolerance covers bf16 MXU operands vs. the f32-HIGHEST reference
    atol = rtol = 3e-2
    assert outputs.shape == (B, S, O)
    assert jnp.allclose(outputs, ref_out, atol=atol, rtol=rtol)
    assert jnp.allclose(res_l, ref_res, atol=atol, rtol=rtol)
    assert jnp.allclose(seas_l, ref_seas, atol=atol, rtol=rtol)
    assert jnp.allclose(smooth_l, ref_smooth, atol=atol, rtol=rtol)
    print("KERNEL_OK")
</pallas_src>

<mosaic_0001>
module attributes {stable_mosaic.version = 11 : i64} {
  func.func @_drnn_kernel(%arg0: i32, %arg1: memref<14x8x32xf32, #tpu.memory_space<vmem>>, %arg2: memref<112x1xf32, #tpu.memory_space<vmem>>, %arg3: memref<112x1xf32, #tpu.memory_space<vmem>>, %arg4: memref<32x32xbf16, #tpu.memory_space<vmem>>, %arg5: memref<32x32xbf16, #tpu.memory_space<vmem>>, %arg6: memref<32x32xbf16, #tpu.memory_space<vmem>>, %arg7: memref<1x32xf32, #tpu.memory_space<vmem>>, %arg8: memref<32x32xbf16, #tpu.memory_space<vmem>>, %arg9: memref<32x32xbf16, #tpu.memory_space<vmem>>, %arg10: memref<1x32xf32, #tpu.memory_space<vmem>>, %arg11: memref<32x12xbf16, #tpu.memory_space<vmem>>, %arg12: memref<32x12xbf16, #tpu.memory_space<vmem>>, %arg13: memref<32x12xbf16, #tpu.memory_space<vmem>>, %arg14: memref<1x12xf32, #tpu.memory_space<vmem>>, %arg15: memref<1x8x56xf32, #tpu.memory_space<vmem>>, %arg16: memref<1x1xf32, #tpu.memory_space<vmem>>, %arg17: memref<1x1xf32, #tpu.memory_space<vmem>>, %arg18: memref<1x1xf32, #tpu.memory_space<vmem>>, %arg19: memref<8x32xf32, #tpu.memory_space<vmem>>, %arg20: memref<16x32xf32, #tpu.memory_space<vmem>>, %arg21: memref<56x32xf32, #tpu.memory_space<vmem>>, %arg22: memref<56x4xf32, #tpu.memory_space<vmem>>, %arg23: memref<112x32xf32, #tpu.memory_space<vmem>>, %arg24: memref<112x32xf32, #tpu.memory_space<vmem>>, %arg25: memref<112x32xf32, #tpu.memory_space<vmem>>) attributes {dimension_semantics = [#tpu.dimension_semantics<arbitrary>], iteration_bounds = array<i64: 2>, scalar_prefetch = 0 : i64, scratch_operands = 7 : i64, tpu.core_type = #tpu.core_type<tc>, window_params = [{transform_indices = @transform_0, window_bounds = array<i64: 14, 8, 32>}, {transform_indices = @transform_1, window_bounds = array<i64: 112, 1>}, {transform_indices = @transform_2, window_bounds = array<i64: 112, 1>}, {pipeline_mode = #tpu.pipeline_mode<synchronous>, transform_indices = @transform_3, window_bounds = array<i64: 32, 32>}, {pipeline_mode = #tpu.pipeline_mode<synchronous>, transform_indices = @transform_4, window_bounds = array<i64: 32, 32>}, {pipeline_mode = #tpu.pipeline_mode<synchronous>, transform_indices = @transform_5, window_bounds = array<i64: 32, 32>}, {pipeline_mode = #tpu.pipeline_mode<synchronous>, transform_indices = @transform_6, window_bounds = array<i64: 1, 32>}, {pipeline_mode = #tpu.pipeline_mode<synchronous>, transform_indices = @transform_7, window_bounds = array<i64: 32, 32>}, {pipeline_mode = #tpu.pipeline_mode<synchronous>, transform_indices = @transform_8, window_bounds = array<i64: 32, 32>}, {pipeline_mode = #tpu.pipeline_mode<synchronous>, transform_indices = @transform_9, window_bounds = array<i64: 1, 32>}, {pipeline_mode = #tpu.pipeline_mode<synchronous>, transform_indices = @transform_10, window_bounds = array<i64: 32, 12>}, {pipeline_mode = #tpu.pipeline_mode<synchronous>, transform_indices = @transform_11, window_bounds = array<i64: 32, 12>}, {pipeline_mode = #tpu.pipeline_mode<synchronous>, transform_indices = @transform_12, window_bounds = array<i64: 32, 12>}, {pipeline_mode = #tpu.pipeline_mode<synchronous>, transform_indices = @transform_13, window_bounds = array<i64: 1, 12>}, {transform_indices = @transform_14, window_bounds = array<i64: 1, 8, 56>}, {pipeline_mode = #tpu.pipeline_mode<synchronous>, transform_indices = @transform_15, window_bounds = array<i64: 1, 1>}, {pipeline_mode = #tpu.pipeline_mode<synchronous>, transform_indices = @transform_16, window_bounds = array<i64: 1, 1>}, {pipeline_mode = #tpu.pipeline_mode<synchronous>, transform_indices = @transform_17, window_bounds = array<i64: 1, 1>}]} {
    %c0_i32 = arith.constant 0 : i32
    %0 = arith.cmpi eq, %arg0, %c0_i32 : i32
    %1 = arith.extui %0 : i1 to i32
    %c0_i32_0 = arith.constant 0 : i32
    %2 = arith.cmpi ne, %1, %c0_i32_0 : i32
    scf.if %2 {
      %cst_204 = arith.constant 0.000000e+00 : f32
      %289 = vector.broadcast %cst_204 : f32 to vector<8x32xf32>
      %c0_205 = arith.constant 0 : index
      %c0_206 = arith.constant 0 : index
      %290 = vector.load %arg19[%c0_205, %c0_206] : memref<8x32xf32, #tpu.memory_space<vmem>>, vector<8x32xf32>
      tpu.vector_store %arg19[%c0_205, %c0_206], %289 {strides = array<i32>} : memref<8x32xf32, #tpu.memory_space<vmem>>, vector<8x32xf32>,
      %cst_207 = arith.constant 0.000000e+00 : f32
      %291 = vector.broadcast %cst_207 : f32 to vector<16x32xf32>
      %c0_208 = arith.constant 0 : index
      %c0_209 = arith.constant 0 : index
      %292 = vector.load %arg20[%c0_208, %c0_209] : memref<16x32xf32, #tpu.memory_space<vmem>>, vector<16x32xf32>
      tpu.vector_store %arg20[%c0_208, %c0_209], %291 {strides = array<i32>} : memref<16x32xf32, #tpu.memory_space<vmem>>, vector<16x32xf32>,
      %cst_210 = arith.constant 0.000000e+00 : f32
      %293 = vector.broadcast %cst_210 : f32 to vector<56x32xf32>
      %c0_211 = arith.constant 0 : index
      %c0_212 = arith.constant 0 : index
      %294 = vector.load %arg21[%c0_211, %c0_212] : memref<56x32xf32, #tpu.memory_space<vmem>>, vector<56x32xf32>
      tpu.vector_store %arg21[%c0_211, %c0_212], %293 {strides = array<i32>} : memref<56x32xf32, #tpu.memory_space<vmem>>, vector<56x32xf32>,
      %cst_213 = arith.constant 0.000000e+00 : f32
      %295 = vector.broadcast %cst_213 : f32 to vector<56x4xf32>
      %c0_214 = arith.constant 0 : index
      %c0_215 = arith.constant 0 : index
      %296 = vector.load %arg22[%c0_214, %c0_215] : memref<56x4xf32, #tpu.memory_space<vmem>>, vector<56x4xf32>
      tpu.vector_store %arg22[%c0_214, %c0_215], %295 {strides = array<i32>} : memref<56x4xf32, #tpu.memory_space<vmem>>, vector<56x4xf32>,
      %cst_216 = arith.constant 0.000000e+00 : f32
      %297 = vector.broadcast %cst_216 : f32 to vector<1x1xf32>
      %c0_217 = arith.constant 0 : index
      %c0_218 = arith.constant 0 : index
      %298 = vector.load %arg16[%c0_217, %c0_218] : memref<1x1xf32, #tpu.memory_space<vmem>>, vector<1x1xf32>
      tpu.vector_store %arg16[%c0_217, %c0_218], %297 {strides = array<i32>} : memref<1x1xf32, #tpu.memory_space<vmem>>, vector<1x1xf32>,
      %cst_219 = arith.constant 0.000000e+00 : f32
      %299 = vector.broadcast %cst_219 : f32 to vector<1x1xf32>
      %c0_220 = arith.constant 0 : index
      %c0_221 = arith.constant 0 : index
      %300 = vector.load %arg17[%c0_220, %c0_221] : memref<1x1xf32, #tpu.memory_space<vmem>>, vector<1x1xf32>
      tpu.vector_store %arg17[%c0_220, %c0_221], %299 {strides = array<i32>} : memref<1x1xf32, #tpu.memory_space<vmem>>, vector<1x1xf32>,
      %cst_222 = arith.constant 0.000000e+00 : f32
      %301 = vector.broadcast %cst_222 : f32 to vector<1x1xf32>
      %c0_223 = arith.constant 0 : index
      %c0_224 = arith.constant 0 : index
      %302 = vector.load %arg18[%c0_223, %c0_224] : memref<1x1xf32, #tpu.memory_space<vmem>>, vector<1x1xf32>
      tpu.vector_store %arg18[%c0_223, %c0_224], %301 {strides = array<i32>} : memref<1x1xf32, #tpu.memory_space<vmem>>, vector<1x1xf32>,
    } else {
    }
    %c0 = arith.constant 0 : index
    %c0_1 = arith.constant 0 : index
    %3 = vector.load %arg19[%c0, %c0_1] : memref<8x32xf32, #tpu.memory_space<vmem>>, vector<8x32xf32>
    %c0_2 = arith.constant 0 : index
    %c0_3 = arith.constant 0 : index
    %c0_4 = arith.constant 0 : index
    %4 = vector.load %arg1[%c0_2, %c0_3, %c0_4] : memref<14x8x32xf32, #tpu.memory_space<vmem>>, vector<1x8x32xf32>
    %5 = vector.shape_cast %4 : vector<1x8x32xf32> to vector<8x32xf32>
    %6 = arith.truncf %3 : vector<8x32xf32> to vector<8x32xbf16>
    %c0_5 = arith.constant 0 : index
    %c0_6 = arith.constant 0 : index
    %7 = vector.load %arg4[%c0_5, %c0_6] : memref<32x32xbf16, #tpu.memory_space<vmem>>, vector<32x32xbf16>
    %cst = arith.constant dense<0.000000e+00> : vector<8x32xf32>
    %8 = tpu.matmul %6, %7, %cst {dimension_numbers = #tpu.dot_dimension_numbers<[1], [0], [0], [1], [0, 0, 1, 1], [], []>} : vector<8x32xbf16>, vector<32x32xbf16>, vector<8x32xf32> -> vector<8x32xf32>
    %9 = arith.addf %5, %8 : vector<8x32xf32>
    %10 = math.tanh %9 : vector<8x32xf32>
    %c0_7 = arith.constant 0 : index
    %c0_8 = arith.constant 0 : index
    %11 = vector.load %arg23[%c0_7, %c0_8] : memref<112x32xf32, #tpu.memory_space<vmem>>, vector<8x32xf32>
    tpu.vector_store %arg23[%c0_7, %c0_8], %10 {strides = array<i32>} : memref<112x32xf32, #tpu.memory_space<vmem>>, vector<8x32xf32>,
    %c1 = arith.constant 1 : index
    %c0_9 = arith.constant 0 : index
    %c0_10 = arith.constant 0 : index
    %12 = vector.load %arg1[%c1, %c0_9, %c0_10] : memref<14x8x32xf32, #tpu.memory_space<vmem>>, vector<1x8x32xf32>
    %13 = vector.shape_cast %12 : vector<1x8x32xf32> to vector<8x32xf32>
    %14 = arith.truncf %10 : vector<8x32xf32> to vector<8x32xbf16>
    %c0_11 = arith.constant 0 : index
    %c0_12 = arith.constant 0 : index
    %15 = vector.load %arg4[%c0_11, %c0_12] : memref<32x32xbf16, #tpu.memory_space<vmem>>, vector<32x32xbf16>
    %cst_13 = arith.constant dense<0.000000e+00> : vector<8x32xf32>
    %16 = tpu.matmul %14, %15, %cst_13 {dimension_numbers = #tpu.dot_dimension_numbers<[1], [0], [0], [1], [0, 0, 1, 1], [], []>} : vector<8x32xbf16>, vector<32x32xbf16>, vector<8x32xf32> -> vector<8x32xf32>
    %17 = arith.addf %13, %16 : vector<8x32xf32>
    %18 = math.tanh %17 : vector<8x32xf32>
    %c8 = arith.constant 8 : index
    %c0_14 = arith.constant 0 : index
    %19 = vector.load %arg23[%c8, %c0_14] : memref<112x32xf32, #tpu.memory_space<vmem>>, vector<8x32xf32>
    tpu.vector_store %arg23[%c8, %c0_14], %18 {strides = array<i32>} : memref<112x32xf32, #tpu.memory_space<vmem>>, vector<8x32xf32>,
    %c2 = arith.constant 2 : index
    %c0_15 = arith.constant 0 : index
    %c0_16 = arith.constant 0 : index
    %20 = vector.load %arg1[%c2, %c0_15, %c0_16] : memref<14x8x32xf32, #tpu.memory_space<vmem>>, vector<1x8x32xf32>
    %21 = vector.shape_cast %20 : vector<1x8x32xf32> to vector<8x32xf32>
    %22 = arith.truncf %18 : vector<8x32xf32> to vector<8x32xbf16>
    %c0_17 = arith.constant 0 : index
    %c0_18 = arith.constant 0 : index
    %23 = vector.load %arg4[%c0_17, %c0_18] : memref<32x32xbf16, #tpu.memory_space<vmem>>, vector<32x32xbf16>
    %cst_19 = arith.constant dense<0.000000e+00> : vector<8x32xf32>
    %24 = tpu.matmul %22, %23, %cst_19 {dimension_numbers = #tpu.dot_dimension_numbers<[1], [0], [0], [1], [0, 0, 1, 1], [], []>} : vector<8x32xbf16>, vector<32x32xbf16>, vector<8x32xf32> -> vector<8x32xf32>
    %25 = arith.addf %21, %24 : vector<8x32xf32>
    %26 = math.tanh %25 : vector<8x32xf32>
    %c16 = arith.constant 16 : index
    %c0_20 = arith.constant 0 : index
    %27 = vector.load %arg23[%c16, %c0_20] : memref<112x32xf32, #tpu.memory_space<vmem>>, vector<8x32xf32>
    tpu.vector_store %arg23[%c16, %c0_20], %26 {strides = array<i32>} : memref<112x32xf32, #tpu.memory_space<vmem>>, vector<8x32xf32>,
    %c3 = arith.constant 3 : index
    %c0_21 = arith.constant 0 : index
    %c0_22 = arith.constant 0 : index
    %28 = vector.load %arg1[%c3, %c0_21, %c0_22] : memref<14x8x32xf32, #tpu.memory_space<vmem>>, vector<1x8x32xf32>
    %29 = vector.shape_cast %28 : vector<1x8x32xf32> to vector<8x32xf32>
    %30 = arith.truncf %26 : vector<8x32xf32> to vector<8x32xbf16>
    %c0_23 = arith.constant 0 : index
    %c0_24 = arith.constant 0 : index
    %31 = vector.load %arg4[%c0_23, %c0_24] : memref<32x32xbf16, #tpu.memory_space<vmem>>, vector<32x32xbf16>
    %cst_25 = arith.constant dense<0.000000e+00> : vector<8x32xf32>
    %32 = tpu.matmul %30, %31, %cst_25 {dimension_numbers = #tpu.dot_dimension_numbers<[1], [0], [0], [1], [0, 0, 1, 1], [], []>} : vector<8x32xbf16>, vector<32x32xbf16>, vector<8x32xf32> -> vector<8x32xf32>
    %33 = arith.addf %29, %32 : vector<8x32xf32>
    %34 = math.tanh %33 : vector<8x32xf32>
    %c24 = arith.constant 24 : index
    %c0_26 = arith.constant 0 : index
    %35 = vector.load %arg23[%c24, %c0_26] : memref<112x32xf32, #tpu.memory_space<vmem>>, vector<8x32xf32>
    tpu.vector_store %arg23[%c24, %c0_26], %34 {strides = array<i32>} : memref<112x32xf32, #tpu.memory_space<vmem>>, vector<8x32xf32>,
    %c4 = arith.constant 4 : index
    %c0_27 = arith.constant 0 : index
    %c0_28 = arith.constant 0 : index
    %36 = vector.load %arg1[%c4, %c0_27, %c0_28] : memref<14x8x32xf32, #tpu.memory_space<vmem>>, vector<1x8x32xf32>
    %37 = vector.shape_cast %36 : vector<1x8x32xf32> to vector<8x32xf32>
    %38 = arith.truncf %34 : vector<8x32xf32> to vector<8x32xbf16>
    %c0_29 = arith.constant 0 : index
    %c0_30 = arith.constant 0 : index
    %39 = vector.load %arg4[%c0_29, %c0_30] : memref<32x32xbf16, #tpu.memory_space<vmem>>, vector<32x32xbf16>
    %cst_31 = arith.constant dense<0.000000e+00> : vector<8x32xf32>
    %40 = tpu.matmul %38, %39, %cst_31 {dimension_numbers = #tpu.dot_dimension_numbers<[1], [0], [0], [1], [0, 0, 1, 1], [], []>} : vector<8x32xbf16>, vector<32x32xbf16>, vector<8x32xf32> -> vector<8x32xf32>
    %41 = arith.addf %37, %40 : vector<8x32xf32>
    %42 = math.tanh %41 : vector<8x32xf32>
    %c32 = arith.constant 32 : index
    %c0_32 = arith.constant 0 : index
    %43 = vector.load %arg23[%c32, %c0_32] : memref<112x32xf32, #tpu.memory_space<vmem>>, vector<8x32xf32>
    tpu.vector_store %arg23[%c32, %c0_32], %42 {strides = array<i32>} : memref<112x32xf32, #tpu.memory_space<vmem>>, vector<8x32xf32>,
    %c5 = arith.constant 5 : index
    %c0_33 = arith.constant 0 : index
    %c0_34 = arith.constant 0 : index
    %44 = vector.load %arg1[%c5, %c0_33, %c0_34] : memref<14x8x32xf32, #tpu.memory_space<vmem>>, vector<1x8x32xf32>
    %45 = vector.shape_cast %44 : vector<1x8x32xf32> to vector<8x32xf32>
    %46 = arith.truncf %42 : vector<8x32xf32> to vector<8x32xbf16>
    %c0_35 = arith.constant 0 : index
    %c0_36 = arith.constant 0 : index
    %47 = vector.load %arg4[%c0_35, %c0_36] : memref<32x32xbf16, #tpu.memory_space<vmem>>, vector<32x32xbf16>
    %cst_37 = arith.constant dense<0.000000e+00> : vector<8x32xf32>
    %48 = tpu.matmul %46, %47, %cst_37 {dimension_numbers = #tpu.dot_dimension_numbers<[1], [0], [0], [1], [0, 0, 1, 1], [], []>} : vector<8x32xbf16>, vector<32x32xbf16>, vector<8x32xf32> -> vector<8x32xf32>
    %49 = arith.addf %45, %48 : vector<8x32xf32>
    %50 = math.tanh %49 : vector<8x32xf32>
    %c40 = arith.constant 40 : index
    %c0_38 = arith.constant 0 : index
    %51 = vector.load %arg23[%c40, %c0_38] : memref<112x32xf32, #tpu.memory_space<vmem>>, vector<8x32xf32>
    tpu.vector_store %arg23[%c40, %c0_38], %50 {strides = array<i32>} : memref<112x32xf32, #tpu.memory_space<vmem>>, vector<8x32xf32>,
    %c6 = arith.constant 6 : index
    %c0_39 = arith.constant 0 : index
    %c0_40 = arith.constant 0 : index
    %52 = vector.load %arg1[%c6, %c0_39, %c0_40] : memref<14x8x32xf32, #tpu.memory_space<vmem>>, vector<1x8x32xf32>
    %53 = vector.shape_cast %52 : vector<1x8x32xf32> to vector<8x32xf32>
    %54 = arith.truncf %50 : vector<8x32xf32> to vector<8x32xbf16>
    %c0_41 = arith.constant 0 : index
    %c0_42 = arith.constant 0 : index
    %55 = vector.load %arg4[%c0_41, %c0_42] : memref<32x32xbf16, #tpu.memory_space<vmem>>, vector<32x32xbf16>
    %cst_43 = arith.constant dense<0.000000e+00> : vector<8x32xf32>
    %56 = tpu.matmul %54, %55, %cst_43 {dimension_numbers = #tpu.dot_dimension_numbers<[1], [0], [0], [1], [0, 0, 1, 1], [], []>} : vector<8x32xbf16>, vector<32x32xbf16>, vector<8x32xf32> -> vector<8x32xf32>
    %57 = arith.addf %53, %56 : vector<8x32xf32>
    %58 = math.tanh %57 : vector<8x32xf32>
    %c48 = arith.constant 48 : index
    %c0_44 = arith.constant 0 : index
    %59 = vector.load %arg23[%c48, %c0_44] : memref<112x32xf32, #tpu.memory_space<vmem>>, vector<8x32xf32>
    tpu.vector_store %arg23[%c48, %c0_44], %58 {strides = array<i32>} : memref<112x32xf32, #tpu.memory_space<vmem>>, vector<8x32xf32>,
    %c7 = arith.constant 7 : index
    %c0_45 = arith.constant 0 : index
    %c0_46 = arith.constant 0 : index
    %60 = vector.load %arg1[%c7, %c0_45, %c0_46] : memref<14x8x32xf32, #tpu.memory_space<vmem>>, vector<1x8x32xf32>
    %61 = vector.shape_cast %60 : vector<1x8x32xf32> to vector<8x32xf32>
    %62 = arith.truncf %58 : vector<8x32xf32> to vector<8x32xbf16>
    %c0_47 = arith.constant 0 : index
    %c0_48 = arith.constant 0 : index
    %63 = vector.load %arg4[%c0_47, %c0_48] : memref<32x32xbf16, #tpu.memory_space<vmem>>, vector<32x32xbf16>
    %cst_49 = arith.constant dense<0.000000e+00> : vector<8x32xf32>
    %64 = tpu.matmul %62, %63, %cst_49 {dimension_numbers = #tpu.dot_dimension_numbers<[1], [0], [0], [1], [0, 0, 1, 1], [], []>} : vector<8x32xbf16>, vector<32x32xbf16>, vector<8x32xf32> -> vector<8x32xf32>
    %65 = arith.addf %61, %64 : vector<8x32xf32>
    %66 = math.tanh %65 : vector<8x32xf32>
    %c56 = arith.constant 56 : index
    %c0_50 = arith.constant 0 : index
    %67 = vector.load %arg23[%c56, %c0_50] : memref<112x32xf32, #tpu.memory_space<vmem>>, vector<8x32xf32>
    tpu.vector_store %arg23[%c56, %c0_50], %66 {strides = array<i32>} : memref<112x32xf32, #tpu.memory_space<vmem>>, vector<8x32xf32>,
    %c8_51 = arith.constant 8 : index
    %c0_52 = arith.constant 0 : index
    %c0_53 = arith.constant 0 : index
    %68 = vector.load %arg1[%c8_51, %c0_52, %c0_53] : memref<14x8x32xf32, #tpu.memory_space<vmem>>, vector<1x8x32xf32>
    %69 = vector.shape_cast %68 : vector<1x8x32xf32> to vector<8x32xf32>
    %70 = arith.truncf %66 : vector<8x32xf32> to vector<8x32xbf16>
    %c0_54 = arith.constant 0 : index
    %c0_55 = arith.constant 0 : index
    %71 = vector.load %arg4[%c0_54, %c0_55] : memref<32x32xbf16, #tpu.memory_space<vmem>>, vector<32x32xbf16>
    %cst_56 = arith.constant dense<0.000000e+00> : vector<8x32xf32>
    %72 = tpu.matmul %70, %71, %cst_56 {dimension_numbers = #tpu.dot_dimension_numbers<[1], [0], [0], [1], [0, 0, 1, 1], [], []>} : vector<8x32xbf16>, vector<32x32xbf16>, vector<8x32xf32> -> vector<8x32xf32>
    %73 = arith.addf %69, %72 : vector<8x32xf32>
    %74 = math.tanh %73 : vector<8x32xf32>
    %c64 = arith.constant 64 : index
    %c0_57 = arith.constant 0 : index
    %75 = vector.load %arg23[%c64, %c0_57] : memref<112x32xf32, #tpu.memory_space<vmem>>, vector<8x32xf32>
    tpu.vector_store %arg23[%c64, %c0_57], %74 {strides = array<i32>} : memref<112x32xf32, #tpu.memory_space<vmem>>, vector<8x32xf32>,
    %c9 = arith.constant 9 : index
    %c0_58 = arith.constant 0 : index
    %c0_59 = arith.constant 0 : index
    %76 = vector.load %arg1[%c9, %c0_58, %c0_59] : memref<14x8x32xf32, #tpu.memory_space<vmem>>, vector<1x8x32xf32>
    %77 = vector.shape_cast %76 : vector<1x8x32xf32> to vector<8x32xf32>
    %78 = arith.truncf %74 : vector<8x32xf32> to vector<8x32xbf16>
    %c0_60 = arith.constant 0 : index
    %c0_61 = arith.constant 0 : index
    %79 = vector.load %arg4[%c0_60, %c0_61] : memref<32x32xbf16, #tpu.memory_space<vmem>>, vector<32x32xbf16>
    %cst_62 = arith.constant dense<0.000000e+00> : vector<8x32xf32>
    %80 = tpu.matmul %78, %79, %cst_62 {dimension_numbers = #tpu.dot_dimension_numbers<[1], [0], [0], [1], [0, 0, 1, 1], [], []>} : vector<8x32xbf16>, vector<32x32xbf16>, vector<8x32xf32> -> vector<8x32xf32>
    %81 = arith.addf %77, %80 : vector<8x32xf32>
    %82 = math.tanh %81 : vector<8x32xf32>
    %c72 = arith.constant 72 : index
    %c0_63 = arith.constant 0 : index
    %83 = vector.load %arg23[%c72, %c0_63] : memref<112x32xf32, #tpu.memory_space<vmem>>, vector<8x32xf32>
    tpu.vector_store %arg23[%c72, %c0_63], %82 {strides = array<i32>} : memref<112x32xf32, #tpu.memory_space<vmem>>, vector<8x32xf32>,
    %c10 = arith.constant 10 : index
    %c0_64 = arith.constant 0 : index
    %c0_65 = arith.constant 0 : index
    %84 = vector.load %arg1[%c10, %c0_64, %c0_65] : memref<14x8x32xf32, #tpu.memory_space<vmem>>, vector<1x8x32xf32>
    %85 = vector.shape_cast %84 : vector<1x8x32xf32> to vector<8x32xf32>
    %86 = arith.truncf %82 : vector<8x32xf32> to vector<8x32xbf16>
    %c0_66 = arith.constant 0 : index
    %c0_67 = arith.constant 0 : index
    %87 = vector.load %arg4[%c0_66, %c0_67] : memref<32x32xbf16, #tpu.memory_space<vmem>>, vector<32x32xbf16>
    %cst_68 = arith.constant dense<0.000000e+00> : vector<8x32xf32>
    %88 = tpu.matmul %86, %87, %cst_68 {dimension_numbers = #tpu.dot_dimension_numbers<[1], [0], [0], [1], [0, 0, 1, 1], [], []>} : vector<8x32xbf16>, vector<32x32xbf16>, vector<8x32xf32> -> vector<8x32xf32>
    %89 = arith.addf %85, %88 : vector<8x32xf32>
    %90 = math.tanh %89 : vector<8x32xf32>
    %c80 = arith.constant 80 : index
    %c0_69 = arith.constant 0 : index
    %91 = vector.load %arg23[%c80, %c0_69] : memref<112x32xf32, #tpu.memory_space<vmem>>, vector<8x32xf32>
    tpu.vector_store %arg23[%c80, %c0_69], %90 {strides = array<i32>} : memref<112x32xf32, #tpu.memory_space<vmem>>, vector<8x32xf32>,
    %c11 = arith.constant 11 : index
    %c0_70 = arith.constant 0 : index
    %c0_71 = arith.constant 0 : index
    %92 = vector.load %arg1[%c11, %c0_70, %c0_71] : memref<14x8x32xf32, #tpu.memory_space<vmem>>, vector<1x8x32xf32>
    %93 = vector.shape_cast %92 : vector<1x8x32xf32> to vector<8x32xf32>
    %94 = arith.truncf %90 : vector<8x32xf32> to vector<8x32xbf16>
    %c0_72 = arith.constant 0 : index
    %c0_73 = arith.constant 0 : index
    %95 = vector.load %arg4[%c0_72, %c0_73] : memref<32x32xbf16, #tpu.memory_space<vmem>>, vector<32x32xbf16>
    %cst_74 = arith.constant dense<0.000000e+00> : vector<8x32xf32>
    %96 = tpu.matmul %94, %95, %cst_74 {dimension_numbers = #tpu.dot_dimension_numbers<[1], [0], [0], [1], [0, 0, 1, 1], [], []>} : vector<8x32xbf16>, vector<32x32xbf16>, vector<8x32xf32> -> vector<8x32xf32>
    %97 = arith.addf %93, %96 : vector<8x32xf32>
    %98 = math.tanh %97 : vector<8x32xf32>
    %c88 = arith.constant 88 : index
    %c0_75 = arith.constant 0 : index
    %99 = vector.load %arg23[%c88, %c0_75] : memref<112x32xf32, #tpu.memory_space<vmem>>, vector<8x32xf32>
    tpu.vector_store %arg23[%c88, %c0_75], %98 {strides = array<i32>} : memref<112x32xf32, #tpu.memory_space<vmem>>, vector<8x32xf32>,
    %c12 = arith.constant 12 : index
    %c0_76 = arith.constant 0 : index
    %c0_77 = arith.constant 0 : index
    %100 = vector.load %arg1[%c12, %c0_76, %c0_77] : memref<14x8x32xf32, #tpu.memory_space<vmem>>, vector<1x8x32xf32>
    %101 = vector.shape_cast %100 : vector<1x8x32xf32> to vector<8x32xf32>
    %102 = arith.truncf %98 : vector<8x32xf32> to vector<8x32xbf16>
    %c0_78 = arith.constant 0 : index
    %c0_79 = arith.constant 0 : index
    %103 = vector.load %arg4[%c0_78, %c0_79] : memref<32x32xbf16, #tpu.memory_space<vmem>>, vector<32x32xbf16>
    %cst_80 = arith.constant dense<0.000000e+00> : vector<8x32xf32>
    %104 = tpu.matmul %102, %103, %cst_80 {dimension_numbers = #tpu.dot_dimension_numbers<[1], [0], [0], [1], [0, 0, 1, 1], [], []>} : vector<8x32xbf16>, vector<32x32xbf16>, vector<8x32xf32> -> vector<8x32xf32>
    %105 = arith.addf %101, %104 : vector<8x32xf32>
    %106 = math.tanh %105 : vector<8x32xf32>
    %c96 = arith.constant 96 : index
    %c0_81 = arith.constant 0 : index
    %107 = vector.load %arg23[%c96, %c0_81] : memref<112x32xf32, #tpu.memory_space<vmem>>, vector<8x32xf32>
    tpu.vector_store %arg23[%c96, %c0_81], %106 {strides = array<i32>} : memref<112x32xf32, #tpu.memory_space<vmem>>, vector<8x32xf32>,
    %c13 = arith.constant 13 : index
    %c0_82 = arith.constant 0 : index
    %c0_83 = arith.constant 0 : index
    %108 = vector.load %arg1[%c13, %c0_82, %c0_83] : memref<14x8x32xf32, #tpu.memory_space<vmem>>, vector<1x8x32xf32>
    %109 = vector.shape_cast %108 : vector<1x8x32xf32> to vector<8x32xf32>
    %110 = arith.truncf %106 : vector<8x32xf32> to vector<8x32xbf16>
    %c0_84 = arith.constant 0 : index
    %c0_85 = arith.constant 0 : index
    %111 = vector.load %arg4[%c0_84, %c0_85] : memref<32x32xbf16, #tpu.memory_space<vmem>>, vector<32x32xbf16>
    %cst_86 = arith.constant dense<0.000000e+00> : vector<8x32xf32>
    %112 = tpu.matmul %110, %111, %cst_86 {dimension_numbers = #tpu.dot_dimension_numbers<[1], [0], [0], [1], [0, 0, 1, 1], [], []>} : vector<8x32xbf16>, vector<32x32xbf16>, vector<8x32xf32> -> vector<8x32xf32>
    %113 = arith.addf %109, %112 : vector<8x32xf32>
    %114 = math.tanh %113 : vector<8x32xf32>
    %c104 = arith.constant 104 : index
    %c0_87 = arith.constant 0 : index
    %115 = vector.load %arg23[%c104, %c0_87] : memref<112x32xf32, #tpu.memory_space<vmem>>, vector<8x32xf32>
    tpu.vector_store %arg23[%c104, %c0_87], %114 {strides = array<i32>} : memref<112x32xf32, #tpu.memory_space<vmem>>, vector<8x32xf32>,
    %c0_88 = arith.constant 0 : index
    %c0_89 = arith.constant 0 : index
    %116 = vector.load %arg19[%c0_88, %c0_89] : memref<8x32xf32, #tpu.memory_space<vmem>>, vector<8x32xf32>
    tpu.vector_store %arg19[%c0_88, %c0_89], %114 {strides = array<i32>} : memref<8x32xf32, #tpu.memory_space<vmem>>, vector<8x32xf32>,
    %c0_90 = arith.constant 0 : index
    %c0_91 = arith.constant 0 : index
    %117 = vector.load %arg23[%c0_90, %c0_91] : memref<112x32xf32, #tpu.memory_space<vmem>>, vector<112x32xf32>
    %118 = arith.truncf %117 : vector<112x32xf32> to vector<112x32xbf16>
    %c0_92 = arith.constant 0 : index
    %c0_93 = arith.constant 0 : index
    %119 = vector.load %arg5[%c0_92, %c0_93] : memref<32x32xbf16, #tpu.memory_space<vmem>>, vector<32x32xbf16>
    %cst_94 = arith.constant dense<0.000000e+00> : vector<112x32xf32>
    %120 = tpu.matmul %118, %119, %cst_94 {dimension_numbers = #tpu.dot_dimension_numbers<[1], [0], [0], [1], [0, 0, 1, 1], [], []>} : vector<112x32xbf16>, vector<32x32xbf16>, vector<112x32xf32> -> vector<112x32xf32>
    %c0_95 = arith.constant 0 : index
    %c0_96 = arith.constant 0 : index
    %121 = vector.load %arg7[%c0_95, %c0_96] : memref<1x32xf32, #tpu.memory_space<vmem>>, vector<1x32xf32>
    %122 = vector.broadcast %121 : vector<1x32xf32> to vector<112x32xf32>
    %123 = arith.addf %120, %122 : vector<112x32xf32>
    %c0_97 = arith.constant 0 : index
    %c0_98 = arith.constant 0 : index
    %124 = vector.load %arg20[%c0_97, %c0_98] : memref<16x32xf32, #tpu.memory_space<vmem>>, vector<16x32xf32>
    %125 = vector.extract_strided_slice %123 {offsets = [0, 0], sizes = [16, 32], strides = [1, 1]} : vector<112x32xf32> to vector<16x32xf32>
    %126 = arith.truncf %124 : vector<16x32xf32> to vector<16x32xbf16>
    %c0_99 = arith.constant 0 : index
    %c0_100 = arith.constant 0 : index
    %127 = vector.load %arg6[%c0_99, %c0_100] : memref<32x32xbf16, #tpu.memory_space<vmem>>, vector<32x32xbf16>
    %cst_101 = arith.constant dense<0.000000e+00> : vector<16x32xf32>
    %128 = tpu.matmul %126, %127, %cst_101 {dimension_numbers = #tpu.dot_dimension_numbers<[1], [0], [0], [1], [0, 0, 1, 1], [], []>} : vector<16x32xbf16>, vector<32x32xbf16>, vector<16x32xf32> -> vector<16x32xf32>
    %129 = arith.addf %125, %128 : vector<16x32xf32>
    %130 = math.tanh %129 : vector<16x32xf32>
    %c0_102 = arith.constant 0 : index
    %c0_103 = arith.constant 0 : index
    %131 = vector.load %arg24[%c0_102, %c0_103] : memref<112x32xf32, #tpu.memory_space<vmem>>, vector<16x32xf32>
    tpu.vector_store %arg24[%c0_102, %c0_103], %130 {strides = array<i32>} : memref<112x32xf32, #tpu.memory_space<vmem>>, vector<16x32xf32>,
    %132 = vector.extract_strided_slice %123 {offsets = [16, 0], sizes = [16, 32], strides = [1, 1]} : vector<112x32xf32> to vector<16x32xf32>
    %133 = arith.truncf %130 : vector<16x32xf32> to vector<16x32xbf16>
    %c0_104 = arith.constant 0 : index
    %c0_105 = arith.constant 0 : index
    %134 = vector.load %arg6[%c0_104, %c0_105] : memref<32x32xbf16, #tpu.memory_space<vmem>>, vector<32x32xbf16>
    %cst_106 = arith.constant dense<0.000000e+00> : vector<16x32xf32>
    %135 = tpu.matmul %133, %134, %cst_106 {dimension_numbers = #tpu.dot_dimension_numbers<[1], [0], [0], [1], [0, 0, 1, 1], [], []>} : vector<16x32xbf16>, vector<32x32xbf16>, vector<16x32xf32> -> vector<16x32xf32>
    %136 = arith.addf %132, %135 : vector<16x32xf32>
    %137 = math.tanh %136 : vector<16x32xf32>
    %c16_107 = arith.constant 16 : index
    %c0_108 = arith.constant 0 : index
    %138 = vector.load %arg24[%c16_107, %c0_108] : memref<112x32xf32, #tpu.memory_space<vmem>>, vector<16x32xf32>
    tpu.vector_store %arg24[%c16_107, %c0_108], %137 {strides = array<i32>} : memref<112x32xf32, #tpu.memory_space<vmem>>, vector<16x32xf32>,
    %139 = vector.extract_strided_slice %123 {offsets = [32, 0], sizes = [16, 32], strides = [1, 1]} : vector<112x32xf32> to vector<16x32xf32>
    %140 = arith.truncf %137 : vector<16x32xf32> to vector<16x32xbf16>
    %c0_109 = arith.constant 0 : index
    %c0_110 = arith.constant 0 : index
    %141 = vector.load %arg6[%c0_109, %c0_110] : memref<32x32xbf16, #tpu.memory_space<vmem>>, vector<32x32xbf16>
    %cst_111 = arith.constant dense<0.000000e+00> : vector<16x32xf32>
    %142 = tpu.matmul %140, %141, %cst_111 {dimension_numbers = #tpu.dot_dimension_numbers<[1], [0], [0], [1], [0, 0, 1, 1], [], []>} : vector<16x32xbf16>, vector<32x32xbf16>, vector<16x32xf32> -> vector<16x32xf32>
    %143 = arith.addf %139, %142 : vector<16x32xf32>
    %144 = math.tanh %143 : vector<16x32xf32>
    %c32_112 = arith.constant 32 : index
    %c0_113 = arith.constant 0 : index
    %145 = vector.load %arg24[%c32_112, %c0_113] : memref<112x32xf32, #tpu.memory_space<vmem>>, vector<16x32xf32>
    tpu.vector_store %arg24[%c32_112, %c0_113], %144 {strides = array<i32>} : memref<112x32xf32, #tpu.memory_space<vmem>>, vector<16x32xf32>,
    %146 = vector.extract_strided_slice %123 {offsets = [48, 0], sizes = [16, 32], strides = [1, 1]} : vector<112x32xf32> to vector<16x32xf32>
    %147 = arith.truncf %144 : vector<16x32xf32> to vector<16x32xbf16>
    %c0_114 = arith.constant 0 : index
    %c0_115 = arith.constant 0 : index
    %148 = vector.load %arg6[%c0_114, %c0_115] : memref<32x32xbf16, #tpu.memory_space<vmem>>, vector<32x32xbf16>
    %cst_116 = arith.constant dense<0.000000e+00> : vector<16x32xf32>
    %149 = tpu.matmul %147, %148, %cst_116 {dimension_numbers = #tpu.dot_dimension_numbers<[1], [0], [0], [1], [0, 0, 1, 1], [], []>} : vector<16x32xbf16>, vector<32x32xbf16>, vector<16x32xf32> -> vector<16x32xf32>
    %150 = arith.addf %146, %149 : vector<16x32xf32>
    %151 = math.tanh %150 : vector<16x32xf32>
    %c48_117 = arith.constant 48 : index
    %c0_118 = arith.constant 0 : index
    %152 = vector.load %arg24[%c48_117, %c0_118] : memref<112x32xf32, #tpu.memory_space<vmem>>, vector<16x32xf32>
    tpu.vector_store %arg24[%c48_117, %c0_118], %151 {strides = array<i32>} : memref<112x32xf32, #tpu.memory_space<vmem>>, vector<16x32xf32>,
    %153 = vector.extract_strided_slice %123 {offsets = [64, 0], sizes = [16, 32], strides = [1, 1]} : vector<112x32xf32> to vector<16x32xf32>
    %154 = arith.truncf %151 : vector<16x32xf32> to vector<16x32xbf16>
    %c0_119 = arith.constant 0 : index
    %c0_120 = arith.constant 0 : index
    %155 = vector.load %arg6[%c0_119, %c0_120] : memref<32x32xbf16, #tpu.memory_space<vmem>>, vector<32x32xbf16>
    %cst_121 = arith.constant dense<0.000000e+00> : vector<16x32xf32>
    %156 = tpu.matmul %154, %155, %cst_121 {dimension_numbers = #tpu.dot_dimension_numbers<[1], [0], [0], [1], [0, 0, 1, 1], [], []>} : vector<16x32xbf16>, vector<32x32xbf16>, vector<16x32xf32> -> vector<16x32xf32>
    %157 = arith.addf %153, %156 : vector<16x32xf32>
    %158 = math.tanh %157 : vector<16x32xf32>
    %c64_122 = arith.constant 64 : index
    %c0_123 = arith.constant 0 : index
    %159 = vector.load %arg24[%c64_122, %c0_123] : memref<112x32xf32, #tpu.memory_space<vmem>>, vector<16x32xf32>
    tpu.vector_store %arg24[%c64_122, %c0_123], %158 {strides = array<i32>} : memref<112x32xf32, #tpu.memory_space<vmem>>, vector<16x32xf32>,
    %160 = vector.extract_strided_slice %123 {offsets = [80, 0], sizes = [16, 32], strides = [1, 1]} : vector<112x32xf32> to vector<16x32xf32>
    %161 = arith.truncf %158 : vector<16x32xf32> to vector<16x32xbf16>
    %c0_124 = arith.constant 0 : index
    %c0_125 = arith.constant 0 : index
    %162 = vector.load %arg6[%c0_124, %c0_125] : memref<32x32xbf16, #tpu.memory_space<vmem>>, vector<32x32xbf16>
    %cst_126 = arith.constant dense<0.000000e+00> : vector<16x32xf32>
    %163 = tpu.matmul %161, %162, %cst_126 {dimension_numbers = #tpu.dot_dimension_numbers<[1], [0], [0], [1], [0, 0, 1, 1], [], []>} : vector<16x32xbf16>, vector<32x32xbf16>, vector<16x32xf32> -> vector<16x32xf32>
    %164 = arith.addf %160, %163 : vector<16x32xf32>
    %165 = math.tanh %164 : vector<16x32xf32>
    %c80_127 = arith.constant 80 : index
    %c0_128 = arith.constant 0 : index
    %166 = vector.load %arg24[%c80_127, %c0_128] : memref<112x32xf32, #tpu.memory_space<vmem>>, vector<16x32xf32>
    tpu.vector_store %arg24[%c80_127, %c0_128], %165 {strides = array<i32>} : memref<112x32xf32, #tpu.memory_space<vmem>>, vector<16x32xf32>,
    %167 = vector.extract_strided_slice %123 {offsets = [96, 0], sizes = [16, 32], strides = [1, 1]} : vector<112x32xf32> to vector<16x32xf32>
    %168 = arith.truncf %165 : vector<16x32xf32> to vector<16x32xbf16>
    %c0_129 = arith.constant 0 : index
    %c0_130 = arith.constant 0 : index
    %169 = vector.load %arg6[%c0_129, %c0_130] : memref<32x32xbf16, #tpu.memory_space<vmem>>, vector<32x32xbf16>
    %cst_131 = arith.constant dense<0.000000e+00> : vector<16x32xf32>
    %170 = tpu.matmul %168, %169, %cst_131 {dimension_numbers = #tpu.dot_dimension_numbers<[1], [0], [0], [1], [0, 0, 1, 1], [], []>} : vector<16x32xbf16>, vector<32x32xbf16>, vector<16x32xf32> -> vector<16x32xf32>
    %171 = arith.addf %167, %170 : vector<16x32xf32>
    %172 = math.tanh %171 : vector<16x32xf32>
    %c96_132 = arith.constant 96 : index
    %c0_133 = arith.constant 0 : index
    %173 = vector.load %arg24[%c96_132, %c0_133] : memref<112x32xf32, #tpu.memory_space<vmem>>, vector<16x32xf32>
    tpu.vector_store %arg24[%c96_132, %c0_133], %172 {strides = array<i32>} : memref<112x32xf32, #tpu.memory_space<vmem>>, vector<16x32xf32>,
    %c0_134 = arith.constant 0 : index
    %c0_135 = arith.constant 0 : index
    %174 = vector.load %arg20[%c0_134, %c0_135] : memref<16x32xf32, #tpu.memory_space<vmem>>, vector<16x32xf32>
    tpu.vector_store %arg20[%c0_134, %c0_135], %172 {strides = array<i32>} : memref<16x32xf32, #tpu.memory_space<vmem>>, vector<16x32xf32>,
    %c0_136 = arith.constant 0 : index
    %c0_137 = arith.constant 0 : index
    %175 = vector.load %arg24[%c0_136, %c0_137] : memref<112x32xf32, #tpu.memory_space<vmem>>, vector<112x32xf32>
    %176 = arith.truncf %175 : vector<112x32xf32> to vector<112x32xbf16>
    %c0_138 = arith.constant 0 : index
    %c0_139 = arith.constant 0 : index
    %177 = vector.load %arg8[%c0_138, %c0_139] : memref<32x32xbf16, #tpu.memory_space<vmem>>, vector<32x32xbf16>
    %cst_140 = arith.constant dense<0.000000e+00> : vector<112x32xf32>
    %178 = tpu.matmul %176, %177, %cst_140 {dimension_numbers = #tpu.dot_dimension_numbers<[1], [0], [0], [1], [0, 0, 1, 1], [], []>} : vector<112x32xbf16>, vector<32x32xbf16>, vector<112x32xf32> -> vector<112x32xf32>
    %c0_141 = arith.constant 0 : index
    %c0_142 = arith.constant 0 : index
    %179 = vector.load %arg10[%c0_141, %c0_142] : memref<1x32xf32, #tpu.memory_space<vmem>>, vector<1x32xf32>
    %180 = vector.broadcast %179 : vector<1x32xf32> to vector<112x32xf32>
    %181 = arith.addf %178, %180 : vector<112x32xf32>
    %c0_143 = arith.constant 0 : index
    %c0_144 = arith.constant 0 : index
    %182 = vector.load %arg21[%c0_143, %c0_144] : memref<56x32xf32, #tpu.memory_space<vmem>>, vector<56x32xf32>
    %183 = vector.extract_strided_slice %181 {offsets = [0, 0], sizes = [56, 32], strides = [1, 1]} : vector<112x32xf32> to vector<56x32xf32>
    %184 = arith.truncf %182 : vector<56x32xf32> to vector<56x32xbf16>
    %c0_145 = arith.constant 0 : index
    %c0_146 = arith.constant 0 : index
    %185 = vector.load %arg9[%c0_145, %c0_146] : memref<32x32xbf16, #tpu.memory_space<vmem>>, vector<32x32xbf16>
    %cst_147 = arith.constant dense<0.000000e+00> : vector<56x32xf32>
    %186 = tpu.matmul %184, %185, %cst_147 {dimension_numbers = #tpu.dot_dimension_numbers<[1], [0], [0], [1], [0, 0, 1, 1], [], []>} : vector<56x32xbf16>, vector<32x32xbf16>, vector<56x32xf32> -> vector<56x32xf32>
    %187 = arith.addf %183, %186 : vector<56x32xf32>
    %188 = math.tanh %187 : vector<56x32xf32>
    %c0_148 = arith.constant 0 : index
    %c0_149 = arith.constant 0 : index
    %189 = vector.load %arg25[%c0_148, %c0_149] : memref<112x32xf32, #tpu.memory_space<vmem>>, vector<56x32xf32>
    tpu.vector_store %arg25[%c0_148, %c0_149], %188 {strides = array<i32>} : memref<112x32xf32, #tpu.memory_space<vmem>>, vector<56x32xf32>,
    %190 = vector.extract_strided_slice %181 {offsets = [56, 0], sizes = [56, 32], strides = [1, 1]} : vector<112x32xf32> to vector<56x32xf32>
    %191 = arith.truncf %188 : vector<56x32xf32> to vector<56x32xbf16>
    %c0_150 = arith.constant 0 : index
    %c0_151 = arith.constant 0 : index
    %192 = vector.load %arg9[%c0_150, %c0_151] : memref<32x32xbf16, #tpu.memory_space<vmem>>, vector<32x32xbf16>
    %cst_152 = arith.constant dense<0.000000e+00> : vector<56x32xf32>
    %193 = tpu.matmul %191, %192, %cst_152 {dimension_numbers = #tpu.dot_dimension_numbers<[1], [0], [0], [1], [0, 0, 1, 1], [], []>} : vector<56x32xbf16>, vector<32x32xbf16>, vector<56x32xf32> -> vector<56x32xf32>
    %194 = arith.addf %190, %193 : vector<56x32xf32>
    %195 = math.tanh %194 : vector<56x32xf32>
    %c56_153 = arith.constant 56 : index
    %c0_154 = arith.constant 0 : index
    %196 = vector.load %arg25[%c56_153, %c0_154] : memref<112x32xf32, #tpu.memory_space<vmem>>, vector<56x32xf32>
    tpu.vector_store %arg25[%c56_153, %c0_154], %195 {strides = array<i32>} : memref<112x32xf32, #tpu.memory_space<vmem>>, vector<56x32xf32>,
    %c0_155 = arith.constant 0 : index
    %c0_156 = arith.constant 0 : index
    %197 = vector.load %arg21[%c0_155, %c0_156] : memref<56x32xf32, #tpu.memory_space<vmem>>, vector<56x32xf32>
    tpu.vector_store %arg21[%c0_155, %c0_156], %195 {strides = array<i32>} : memref<56x32xf32, #tpu.memory_space<vmem>>, vector<56x32xf32>,
    %c0_157 = arith.constant 0 : index
    %c0_158 = arith.constant 0 : index
    %198 = vector.load %arg23[%c0_157, %c0_158] : memref<112x32xf32, #tpu.memory_space<vmem>>, vector<112x32xf32>
    %199 = arith.truncf %198 : vector<112x32xf32> to vector<112x32xbf16>
    %c0_159 = arith.constant 0 : index
    %c0_160 = arith.constant 0 : index
    %200 = vector.load %arg11[%c0_159, %c0_160] : memref<32x12xbf16, #tpu.memory_space<vmem>>, vector<32x12xbf16>
    %cst_161 = arith.constant dense<0.000000e+00> : vector<112x12xf32>
    %201 = tpu.matmul %199, %200, %cst_161 {dimension_numbers = #tpu.dot_dimension_numbers<[1], [0], [0], [1], [0, 0, 1, 1], [], []>} : vector<112x32xbf16>, vector<32x12xbf16>, vector<112x12xf32> -> vector<112x12xf32>
    %c0_162 = arith.constant 0 : index
    %c0_163 = arith.constant 0 : index
    %202 = vector.load %arg24[%c0_162, %c0_163] : memref<112x32xf32, #tpu.memory_space<vmem>>, vector<112x32xf32>
    %203 = arith.truncf %202 : vector<112x32xf32> to vector<112x32xbf16>
    %c0_164 = arith.constant 0 : index
    %c0_165 = arith.constant 0 : index
    %204 = vector.load %arg12[%c0_164, %c0_165] : memref<32x12xbf16, #tpu.memory_space<vmem>>, vector<32x12xbf16>
    %cst_166 = arith.constant dense<0.000000e+00> : vector<112x12xf32>
    %205 = tpu.matmul %203, %204, %cst_166 {dimension_numbers = #tpu.dot_dimension_numbers<[1], [0], [0], [1], [0, 0, 1, 1], [], []>} : vector<112x32xbf16>, vector<32x12xbf16>, vector<112x12xf32> -> vector<112x12xf32>
    %206 = arith.addf %201, %205 : vector<112x12xf32>
    %c0_167 = arith.constant 0 : index
    %c0_168 = arith.constant 0 : index
    %207 = vector.load %arg25[%c0_167, %c0_168] : memref<112x32xf32, #tpu.memory_space<vmem>>, vector<112x32xf32>
    %208 = arith.truncf %207 : vector<112x32xf32> to vector<112x32xbf16>
    %c0_169 = arith.constant 0 : index
    %c0_170 = arith.constant 0 : index
    %209 = vector.load %arg13[%c0_169, %c0_170] : memref<32x12xbf16, #tpu.memory_space<vmem>>, vector<32x12xbf16>
    %cst_171 = arith.constant dense<0.000000e+00> : vector<112x12xf32>
    %210 = tpu.matmul %208, %209, %cst_171 {dimension_numbers = #tpu.dot_dimension_numbers<[1], [0], [0], [1], [0, 0, 1, 1], [], []>} : vector<112x32xbf16>, vector<32x12xbf16>, vector<112x12xf32> -> vector<112x12xf32>
    %211 = arith.addf %206, %210 : vector<112x12xf32>
    %c0_172 = arith.constant 0 : index
    %c0_173 = arith.constant 0 : index
    %212 = vector.load %arg14[%c0_172, %c0_173] : memref<1x12xf32, #tpu.memory_space<vmem>>, vector<1x12xf32>
    %213 = vector.broadcast %212 : vector<1x12xf32> to vector<112x12xf32>
    %214 = arith.addf %211, %213 : vector<112x12xf32>
    %215 = math.tanh %214 : vector<112x12xf32>
    %216 = vector.extract_strided_slice %215 {offsets = [0, 0], sizes = [112, 4], strides = [1, 1]} : vector<112x12xf32> to vector<112x4xf32>
    %217 = vector.extract_strided_slice %215 {offsets = [0, 4], sizes = [112, 4], strides = [1, 1]} : vector<112x12xf32> to vector<112x4xf32>
    %218 = vector.extract_strided_slice %215 {offsets = [0, 8], sizes = [112, 4], strides = [1, 1]} : vector<112x12xf32> to vector<112x4xf32>
    %219 = arith.addf %216, %217 : vector<112x4xf32>
    %220 = arith.addf %219, %218 : vector<112x4xf32>
    %c0_174 = arith.constant 0 : index
    %c0_175 = arith.constant 0 : index
    %221 = vector.load %arg2[%c0_174, %c0_175] : memref<112x1xf32, #tpu.memory_space<vmem>>, vector<112x1xf32>
    %c0_176 = arith.constant 0 : index
    %c0_177 = arith.constant 0 : index
    %222 = vector.load %arg3[%c0_176, %c0_177] : memref<112x1xf32, #tpu.memory_space<vmem>>, vector<112x1xf32>
    %c0_178 = arith.constant 0 : index
    %c0_179 = arith.constant 0 : index
    %223 = vector.load %arg16[%c0_178, %c0_179] : memref<1x1xf32, #tpu.memory_space<vmem>>, vector<1x1xf32>
    %224 = arith.mulf %216, %216 : vector<112x4xf32>
    %225 = vector.broadcast %221 : vector<112x1xf32> to vector<112x4xf32>
    %226 = arith.mulf %224, %225 : vector<112x4xf32>
    %227 = vector.shape_cast %226 : vector<112x4xf32> to vector<1x112x4xf32>
    %cst_180 = arith.constant dense<0.000000e+00> : vector<1xf32>
    %228 = vector.multi_reduction <add>, %227, %cst_180 [1, 2] : vector<1x112x4xf32> to vector<1xf32>
    %229 = vector.shape_cast %228 : vector<1xf32> to vector<1x1x1xf32>
    %230 = vector.extract %229[0, 0, 0] : f32 from vector<1x1x1xf32>
    %231 = vector.broadcast %230 : f32 to vector<1x1xf32>
    %232 = arith.addf %223, %231 : vector<1x1xf32>
    %c0_181 = arith.constant 0 : index
    %c0_182 = arith.constant 0 : index
    %233 = vector.load %arg16[%c0_181, %c0_182] : memref<1x1xf32, #tpu.memory_space<vmem>>, vector<1x1xf32>
    tpu.vector_store %arg16[%c0_181, %c0_182], %232 {strides = array<i32>} : memref<1x1xf32, #tpu.memory_space<vmem>>, vector<1x1xf32>,
    %c0_183 = arith.constant 0 : index
    %c0_184 = arith.constant 0 : index
    %234 = vector.load %arg22[%c0_183, %c0_184] : memref<56x4xf32, #tpu.memory_space<vmem>>, vector<56x4xf32>
    %235 = vector.extract_strided_slice %217 {offsets = [0, 0], sizes = [56, 4], strides = [1, 1]} : vector<112x4xf32> to vector<56x4xf32>
    %236 = tpu.concatenate %234, %235 in 0 : vector<56x4xf32>, vector<56x4xf32> -> vector<112x4xf32>
    %237 = arith.subf %217, %236 : vector<112x4xf32>
    %c0_185 = arith.constant 0 : index
    %c0_186 = arith.constant 0 : index
    %238 = vector.load %arg17[%c0_185, %c0_186] : memref<1x1xf32, #tpu.memory_space<vmem>>, vector<1x1xf32>
    %239 = arith.mulf %237, %237 : vector<112x4xf32>
    %240 = vector.broadcast %222 : vector<112x1xf32> to vector<112x4xf32>
    %241 = arith.mulf %239, %240 : vector<112x4xf32>
    %242 = vector.shape_cast %241 : vector<112x4xf32> to vector<1x112x4xf32>
    %cst_187 = arith.constant dense<0.000000e+00> : vector<1xf32>
    %243 = vector.multi_reduction <add>, %242, %cst_187 [1, 2] : vector<1x112x4xf32> to vector<1xf32>
    %244 = vector.shape_cast %243 : vector<1xf32> to vector<1x1x1xf32>
    %245 = vector.extract %244[0, 0, 0] : f32 from vector<1x1x1xf32>
    %246 = vector.broadcast %245 : f32 to vector<1x1xf32>
    %247 = arith.addf %238, %246 : vector<1x1xf32>
    %c0_188 = arith.constant 0 : index
    %c0_189 = arith.constant 0 : index
    %248 = vector.load %arg17[%c0_188, %c0_189] : memref<1x1xf32, #tpu.memory_space<vmem>>, vector<1x1xf32>
    tpu.vector_store %arg17[%c0_188, %c0_189], %247 {strides = array<i32>} : memref<1x1xf32, #tpu.memory_space<vmem>>, vector<1x1xf32>,
    %249 = vector.extract_strided_slice %217 {offsets = [56, 0], sizes = [56, 4], strides = [1, 1]} : vector<112x4xf32> to vector<56x4xf32>
    %c0_190 = arith.constant 0 : index
    %c0_191 = arith.constant 0 : index
    %250 = vector.load %arg22[%c0_190, %c0_191] : memref<56x4xf32, #tpu.memory_space<vmem>>, vector<56x4xf32>
    tpu.vector_store %arg22[%c0_190, %c0_191], %249 {strides = array<i32>} : memref<56x4xf32, #tpu.memory_space<vmem>>, vector<56x4xf32>,
    %cst_192 = arith.constant dense<0.000000e+00> : vector<112xf32>
    %251 = vector.multi_reduction <add>, %218, %cst_192 [1] : vector<112x4xf32> to vector<112xf32>
    %252 = vector.shape_cast %251 : vector<112xf32> to vector<112x1xf32>
    %cst_193 = arith.constant 4.000000e+00 : f32
    %253 = vector.broadcast %cst_193 : f32 to vector<112x1xf32>
    %254 = arith.divf %252, %253 : vector<112x1xf32>
    %255 = vector.broadcast %254 : vector<112x1xf32> to vector<112x4xf32>
    %256 = arith.subf %218, %255 : vector<112x4xf32>
    %257 = arith.mulf %256, %256 : vector<112x4xf32>
    %cst_194 = arith.constant dense<0.000000e+00> : vector<112xf32>
    %258 = vector.multi_reduction <add>, %257, %cst_194 [1] : vector<112x4xf32> to vector<112xf32>
    %259 = vector.shape_cast %258 : vector<112xf32> to vector<112x1xf32>
    %cst_195 = arith.constant 0.333333343 : f32
    %260 = vector.broadcast %cst_195 : f32 to vector<112x1xf32>
    %261 = arith.mulf %259, %260 : vector<112x1xf32>
    %c0_196 = arith.constant 0 : index
    %c0_197 = arith.constant 0 : index
    %262 = vector.load %arg18[%c0_196, %c0_197] : memref<1x1xf32, #tpu.memory_space<vmem>>, vector<1x1xf32>
    %263 = arith.mulf %261, %221 : vector<112x1xf32>
    %264 = vector.shape_cast %263 : vector<112x1xf32> to vector<1x112x1xf32>
    %cst_198 = arith.constant dense<0.000000e+00> : vector<1xf32>
    %265 = vector.multi_reduction <add>, %264, %cst_198 [1, 2] : vector<1x112x1xf32> to vector<1xf32>
    %266 = vector.shape_cast %265 : vector<1xf32> to vector<1x1x1xf32>
    %267 = vector.extract %266[0, 0, 0] : f32 from vector<1x1x1xf32>
    %268 = vector.broadcast %267 : f32 to vector<1x1xf32>
    %269 = arith.addf %262, %268 : vector<1x1xf32>
    %c0_199 = arith.constant 0 : index
    %c0_200 = arith.constant 0 : index
    %270 = vector.load %arg18[%c0_199, %c0_200] : memref<1x1xf32, #tpu.memory_space<vmem>>, vector<1x1xf32>
    tpu.vector_store %arg18[%c0_199, %c0_200], %269 {strides = array<i32>} : memref<1x1xf32, #tpu.memory_space<vmem>>, vector<1x1xf32>,
    %271 = vector.extract_strided_slice %220 {offsets = [0, 0], sizes = [8, 4], strides = [1, 1]} : vector<112x4xf32> to vector<8x4xf32>
    %272 = vector.extract_strided_slice %220 {offsets = [8, 0], sizes = [8, 4], strides = [1, 1]} : vector<112x4xf32> to vector<8x4xf32>
    %273 = vector.extract_strided_slice %220 {offsets = [16, 0], sizes = [8, 4], strides = [1, 1]} : vector<112x4xf32> to vector<8x4xf32>
    %274 = vector.extract_strided_slice %220 {offsets = [24, 0], sizes = [8, 4], strides = [1, 1]} : vector<112x4xf32> to vector<8x4xf32>
    %275 = vector.extract_strided_slice %220 {offsets = [32, 0], sizes = [8, 4], strides = [1, 1]} : vector<112x4xf32> to vector<8x4xf32>
    %276 = vector.extract_strided_slice %220 {offsets = [40, 0], sizes = [8, 4], strides = [1, 1]} : vector<112x4xf32> to vector<8x4xf32>
    %277 = vector.extract_strided_slice %220 {offsets = [48, 0], sizes = [8, 4], strides = [1, 1]} : vector<112x4xf32> to vector<8x4xf32>
    %278 = vector.extract_strided_slice %220 {offsets = [56, 0], sizes = [8, 4], strides = [1, 1]} : vector<112x4xf32> to vector<8x4xf32>
    %279 = vector.extract_strided_slice %220 {offsets = [64, 0], sizes = [8, 4], strides = [1, 1]} : vector<112x4xf32> to vector<8x4xf32>
    %280 = vector.extract_strided_slice %220 {offsets = [72, 0], sizes = [8, 4], strides = [1, 1]} : vector<112x4xf32> to vector<8x4xf32>
    %281 = vector.extract_strided_slice %220 {offsets = [80, 0], sizes = [8, 4], strides = [1, 1]} : vector<112x4xf32> to vector<8x4xf32>
    %282 = vector.extract_strided_slice %220 {offsets = [88, 0], sizes = [8, 4], strides = [1, 1]} : vector<112x4xf32> to vector<8x4xf32>
    %283 = vector.extract_strided_slice %220 {offsets = [96, 0], sizes = [8, 4], strides = [1, 1]} : vector<112x4xf32> to vector<8x4xf32>
    %284 = vector.extract_strided_slice %220 {offsets = [104, 0], sizes = [8, 4], strides = [1, 1]} : vector<112x4xf32> to vector<8x4xf32>
    %285 = tpu.concatenate %271, %272, %273, %274, %275, %276, %277, %278, %279, %280, %281, %282, %283, %284 in 1 : vector<8x4xf32>, vector<8x4xf32>, vector<8x4xf32>, vector<8x4xf32>, vector<8x4xf32>, vector<8x4xf32>, vector<8x4xf32>, vector<8x4xf32>, vector<8x4xf32>, vector<8x4xf32>, vector<8x4xf32>, vector<8x4xf32>, vector<8x4xf32>, vector<8x4xf32> -> vector<8x56xf32>
    %c0_201 = arith.constant 0 : index
    %c0_202 = arith.constant 0 : index
    %c0_203 = arith.constant 0 : index
    %286 = vector.load %arg15[%c0_201, %c0_202, %c0_203] : memref<1x8x56xf32, #tpu.memory_space<vmem>>, vector<1x8x56xf32>
    %287 = vector.shape_cast %286 : vector<1x8x56xf32> to vector<8x56xf32>
    %288 = vector.shape_cast %285 : vector<8x56xf32> to vector<1x8x56xf32>
    tpu.vector_store %arg15[%c0_201, %c0_202, %c0_203], %288 {strides = array<i32>} : memref<1x8x56xf32, #tpu.memory_space<vmem>>, vector<1x8x56xf32>,
    return
  }
  func.func @transform_0(%arg0: i32) -> (i32, i32, i32) {
    %c0_i32 = arith.constant 0 : i32
    %c0_i32_0 = arith.constant 0 : i32
    %c0_i32_1 = arith.constant 0 : i32
    return %arg0, %c0_i32, %c0_i32_0 : i32, i32, i32
  }
  func.func @transform_1(%arg0: i32) -> (i32, i32) {
    %c0_i32 = arith.constant 0 : i32
    %c0_i32_0 = arith.constant 0 : i32
    return %arg0, %c0_i32 : i32, i32
  }
  func.func @transform_2(%arg0: i32) -> (i32, i32) {
    %c0_i32 = arith.constant 0 : i32
    %c0_i32_0 = arith.constant 0 : i32
    return %arg0, %c0_i32 : i32, i32
  }
  func.func @transform_3(%arg0: i32) -> (i32, i32) {
    %c0_i32 = arith.constant 0 : i32
    %c0_i32_0 = arith.constant 0 : i32
    %c0_i32_1 = arith.constant 0 : i32
    return %c0_i32, %c0_i32_0 : i32, i32
  }
  func.func @transform_4(%arg0: i32) -> (i32, i32) {
    %c0_i32 = arith.constant 0 : i32
    %c0_i32_0 = arith.constant 0 : i32
    %c0_i32_1 = arith.constant 0 : i32
    return %c0_i32, %c0_i32_0 : i32, i32
  }
  func.func @transform_5(%arg0: i32) -> (i32, i32) {
    %c0_i32 = arith.constant 0 : i32
    %c0_i32_0 = arith.constant 0 : i32
    %c0_i32_1 = arith.constant 0 : i32
    return %c0_i32, %c0_i32_0 : i32, i32
  }
  func.func @transform_6(%arg0: i32) -> (i32, i32) {
    %c0_i32 = arith.constant 0 : i32
    %c0_i32_0 = arith.constant 0 : i32
    %c0_i32_1 = arith.constant 0 : i32
    return %c0_i32, %c0_i32_0 : i32, i32
  }
  func.func @transform_7(%arg0: i32) -> (i32, i32) {
    %c0_i32 = arith.constant 0 : i32
    %c0_i32_0 = arith.constant 0 : i32
    %c0_i32_1 = arith.constant 0 : i32
    return %c0_i32, %c0_i32_0 : i32, i32
  }
  func.func @transform_8(%arg0: i32) -> (i32, i32) {
    %c0_i32 = arith.constant 0 : i32
    %c0_i32_0 = arith.constant 0 : i32
    %c0_i32_1 = arith.constant 0 : i32
    return %c0_i32, %c0_i32_0 : i32, i32
  }
  func.func @transform_9(%arg0: i32) -> (i32, i32) {
    %c0_i32 = arith.constant 0 : i32
    %c0_i32_0 = arith.constant 0 : i32
    %c0_i32_1 = arith.constant 0 : i32
    return %c0_i32, %c0_i32_0 : i32, i32
  }
  func.func @transform_10(%arg0: i32) -> (i32, i32) {
    %c0_i32 = arith.constant 0 : i32
    %c0_i32_0 = arith.constant 0 : i32
    %c0_i32_1 = arith.constant 0 : i32
    return %c0_i32, %c0_i32_0 : i32, i32
  }
  func.func @transform_11(%arg0: i32) -> (i32, i32) {
    %c0_i32 = arith.constant 0 : i32
    %c0_i32_0 = arith.constant 0 : i32
    %c0_i32_1 = arith.constant 0 : i32
    return %c0_i32, %c0_i32_0 : i32, i32
  }
  func.func @transform_12(%arg0: i32) -> (i32, i32) {
    %c0_i32 = arith.constant 0 : i32
    %c0_i32_0 = arith.constant 0 : i32
    %c0_i32_1 = arith.constant 0 : i32
    return %c0_i32, %c0_i32_0 : i32, i32
  }
  func.func @transform_13(%arg0: i32) -> (i32, i32) {
    %c0_i32 = arith.constant 0 : i32
    %c0_i32_0 = arith.constant 0 : i32
    %c0_i32_1 = arith.constant 0 : i32
    return %c0_i32, %c0_i32_0 : i32, i32
  }
  func.func @transform_14(%arg0: i32) -> (i32, i32, i32) {
    %c0_i32 = arith.constant 0 : i32
    %c0_i32_0 = arith.constant 0 : i32
    %c0_i32_1 = arith.constant 0 : i32
    return %arg0, %c0_i32, %c0_i32_0 : i32, i32, i32
  }
  func.func @transform_15(%arg0: i32) -> (i32, i32) {
    %c0_i32 = arith.constant 0 : i32
    %c0_i32_0 = arith.constant 0 : i32
    %c0_i32_1 = arith.constant 0 : i32
    return %c0_i32, %c0_i32_0 : i32, i32
  }
  func.func @transform_16(%arg0: i32) -> (i32, i32) {
    %c0_i32 = arith.constant 0 : i32
    %c0_i32_0 = arith.constant 0 : i32
    %c0_i32_1 = arith.constant 0 : i32
    return %c0_i32, %c0_i32_0 : i32, i32
  }
  func.func @transform_17(%arg0: i32) -> (i32, i32) {
    %c0_i32 = arith.constant 0 : i32
    %c0_i32_0 = arith.constant 0 : i32
    %c0_i32_1 = arith.constant 0 : i32
    return %c0_i32, %c0_i32_0 : i32, i32
  }
}

</mosaic_0001>

<llo_original>
// kernel: drnn_forward.1
$region0: #{drnn_forward.1}
  #allocation0 [shape = 'u32[]', space=smem, size = 0x4, offset = 0x4, fixed_abs, tag = 'smem constant byte address 0x4 - core index']
  #allocation1 [shape = 'u32[72,128]{1,0:T(1,128)}', space=vmem, size = 0x9000, scoped, tag = 'internal scratch']
  #allocation2 [shape = 'f32[8,32]{1,0:T(8,128)}', space=vmem, size = 0x1000, scoped, tag = 'scratch operand']
  #allocation3 [shape = 'f32[16,32]{1,0:T(8,128)}', space=vmem, size = 0x2000, scoped, tag = 'scratch operand']
  #allocation4 [shape = 'f32[56,32]{1,0:T(8,128)}', space=vmem, size = 0x7000, scoped, tag = 'scratch operand']
  #allocation5 [shape = 'f32[56,4]{1,0:T(8,128)}', space=vmem, size = 0x7000, scoped, tag = 'scratch operand']
  #allocation6 [shape = 'f32[112,32]{1,0:T(8,128)}', space=vmem, size = 0xe000, scoped, tag = 'scratch operand']
  #allocation7 [shape = 'f32[112,32]{1,0:T(8,128)}', space=vmem, size = 0xe000, scoped, tag = 'scratch operand']
  #allocation8 [shape = 'f32[112,32]{1,0:T(8,128)}', space=vmem, size = 0xe000, scoped, tag = 'scratch operand']
  %s0 = inlined_call_operand.vmem [shape: f32[28,8,32], index: 0, kind: input, shape index: {}]
  %s1 = inlined_call_operand.vmem [shape: f32[224,1], index: 1, kind: input, shape index: {}]
  %s2 = inlined_call_operand.vmem [shape: f32[224,1], index: 2, kind: input, shape index: {}]
  %s3 = inlined_call_operand.vmem [shape: bf16[32,32], index: 3, kind: input, shape index: {}]
  %s4 = inlined_call_operand.vmem [shape: bf16[32,32], index: 4, kind: input, shape index: {}]
  %s5 = inlined_call_operand.vmem [shape: bf16[32,32], index: 5, kind: input, shape index: {}]
  %s6 = inlined_call_operand.vmem [shape: f32[1,32], index: 6, kind: input, shape index: {}]
  %s7 = inlined_call_operand.vmem [shape: bf16[32,32], index: 7, kind: input, shape index: {}]
  %s8 = inlined_call_operand.vmem [shape: bf16[32,32], index: 8, kind: input, shape index: {}]
  %s9 = inlined_call_operand.vmem [shape: f32[1,32], index: 9, kind: input, shape index: {}]
  %s10 = inlined_call_operand.vmem [shape: bf16[32,12], index: 10, kind: input, shape index: {}]
  %s11 = inlined_call_operand.vmem [shape: bf16[32,12], index: 11, kind: input, shape index: {}]
  %s12 = inlined_call_operand.vmem [shape: bf16[32,12], index: 12, kind: input, shape index: {}]
  %s13 = inlined_call_operand.vmem [shape: f32[1,12], index: 13, kind: input, shape index: {}]
  %s14 = inlined_call_operand.vmem [shape: f32[2,8,56], index: 14, kind: output, shape index: {0}]
  %s15 = inlined_call_operand.hbm [shape: f32[1,1], index: 15, kind: output, shape index: {1}]
  %s16 = inlined_call_operand.hbm [shape: f32[1,1], index: 16, kind: output, shape index: {2}]
  %s17 = inlined_call_operand.hbm [shape: f32[1,1], index: 17, kind: output, shape index: {3}]
  %18 = xla_tuple %s14, %s15, %s16, %s17
  %s19 = sld [smem:[#allocation0]]
  $region117: #{drnn_forward.1} parent=0
    _
  %s21 = ssub.s32 1, %s19
  %s22 = scalar_select 0, %s21, %s19
  $region1: #{drnn_forward.1} parent=0
    #allocation9 [shape = 'u8[512]{0}', space=vmem, size = 0x400, scoped, tag = 'output window, operand 1, single buffered']
    #allocation10 [shape = 's32[2]{0}', space=sflag, size = 0x8, scoped, tag = 'scoped memory for drnn_forward.1']
    #allocation11 [shape = 'u8[512]{0}', space=vmem, size = 0x400, scoped, tag = 'output window, operand 2, single buffered']
    #allocation12 [shape = 's32[1]{0}', space=sflag, size = 0x4, scoped, tag = 'scoped memory for drnn_forward.1']
    #allocation13 [shape = 'u8[512]{0}', space=vmem, size = 0x400, scoped, tag = 'output window, operand 3, single buffered']
    %23 = vsyncpa [#allocation10], 0
    %24 = vsyncpa [#allocation12], 0
    loop: start=0, step=1, limit=4
    $region2: #{drnn_forward.1} parent=1 // loop_pre_header
      _
    $region3: #{drnn_forward.1} parent=1 // loop_header
      %s26 = sphi 0, %s30
      %p27 = scmp.ge.s32.totalorder %s26, 4
      %s36 = sphi 0, %s38
      %s39 = sphi 0, %s36
      %s40 = sphi 0, %s39
      %s56 = sphi 0, %s40
      %s62 = sphi 0, %s64
      %s65 = sphi 0, %s62
      %s66 = sphi 0, %s65
      %s82 = sphi 0, %s66
      %s88 = sphi 0, %s90
      %s91 = sphi 0, %s88
      %s92 = sphi 0, %s91
      %s108 = sphi 0, %s92
      %s112 = sphi 0, %s112
      %s114 = sphi 0, %s112
      %s115 = sphi 0, %s114
      %s129 = sphi 0, %s115
      %s133 = sphi 0, %s133
      %s135 = sphi 0, %s133
      %s136 = sphi 0, %s135
      %s150 = sphi 0, %s136
      %s154 = sphi 0, %s154
      %s156 = sphi 0, %s154
      %s157 = sphi 0, %s156
      %s171 = sphi 0, %s157
      %s175 = sphi 0, %s175
      %s177 = sphi 0, %s175
      %s178 = sphi 0, %s177
      %s192 = sphi 0, %s178
      %s196 = sphi 0, %s196
      %s198 = sphi 0, %s196
      %s199 = sphi 0, %s198
      %s213 = sphi 0, %s199
      %s217 = sphi 0, %s217
      %s219 = sphi 0, %s217
      %s220 = sphi 0, %s219
      %s234 = sphi 0, %s220
      %s238 = sphi 0, %s238
      %s240 = sphi 0, %s238
      %s241 = sphi 0, %s240
      %s255 = sphi 0, %s241
      %s259 = sphi 0, %s259
      %s261 = sphi 0, %s259
      %s262 = sphi 0, %s261
      %s276 = sphi 0, %s262
      %s280 = sphi 0, %s280
      %s282 = sphi 0, %s280
      %s283 = sphi 0, %s282
      %s297 = sphi 0, %s283
      %s301 = sphi 0, %s301
      %s303 = sphi 0, %s301
      %s304 = sphi 0, %s303
      %s318 = sphi 0, %s304
      %s322 = sphi 0, %s322
      %s324 = sphi 0, %s322
      %s325 = sphi 0, %s324
      %s339 = sphi 0, %s325
      %s345 = sphi 0, %s347
      %s348 = sphi 0, %s345
      %s349 = sphi 0, %s348
      %s365 = sphi 0, %s349
      %s369 = sphi 0, %s369
      %s371 = sphi 0, %s369
      %s372 = sphi 0, %s371
      %s386 = sphi 0, %s372
      %s390 = sphi 0, %s390
      %s392 = sphi 0, %s390
      %s393 = sphi 0, %s392
      %s407 = sphi 0, %s393
      %s411 = sphi 0, %s411
      %s413 = sphi 0, %s411
      %s414 = sphi 0, %s413
      %s428 = sphi 0, %s414
    $region4: #{drnn_forward.1} parent=1 // loop_header_branch
      %29 = sbr.rel (%p27) target = $region8
    $region5: #{drnn_forward.1} parent=1 // loop_body
      %s31 = ssub.s32 %s26, 1
      %s32 = ssub.s32 %s26, 2
      %s33 = sadd.s32 %s26, 1
      %s34 = ssub.s32 %s26, %s33
      %p35 = scmp.eq.s32.totalorder %s34, 0
      %s37 = sadd.s32 %s36, 1
      %s38 = scalar_select %p35, %s36, %s37
      %p41 = pneg %p35
      %p42 = scmp.eq.s32.totalorder %s26, 1
      %p43 = por %p41, %p42
      %p44 = scmp.ne.s32.totalorder %s36, %s39
      %p45 = scmp.eq.s32.totalorder %s26, 0
      %p46 = por %p44, %p45
      %p47 = scmp.ne.s32.totalorder %s36, %s39
      %p48 = scmp.eq.s32.totalorder %s31, 1
      %p49 = por %p47, %p48
      %p50 = scmp.ne.s32.totalorder %s39, %s40
      %p51 = scmp.eq.s32.totalorder %s31, 0
      %p52 = por %p50, %p51
      %p53 = scmp.ne.s32.totalorder %s39, %s40
      %p54 = scmp.eq.s32.totalorder %s32, 1
      %p55 = por %p53, %p54
      %p57 = scmp.ne.s32.totalorder %s40, %s56
      %p58 = scmp.eq.s32.totalorder %s32, 0
      %p59 = por %p57, %p58
      %s60 = ssub.s32 %s26, %s33
      %p61 = scmp.eq.s32.totalorder %s60, 0
      %s63 = sadd.s32 %s62, 1
      %s64 = scalar_select %p61, %s62, %s63
      %p67 = pneg %p61
      %p68 = scmp.eq.s32.totalorder %s26, 1
      %p69 = por %p67, %p68
      %p70 = scmp.ne.s32.totalorder %s62, %s65
      %p71 = scmp.eq.s32.totalorder %s26, 0
      %p72 = por %p70, %p71
      %p73 = scmp.ne.s32.totalorder %s62, %s65
      %p74 = scmp.eq.s32.totalorder %s31, 1
      %p75 = por %p73, %p74
      %p76 = scmp.ne.s32.totalorder %s65, %s66
      %p77 = scmp.eq.s32.totalorder %s31, 0
      %p78 = por %p76, %p77
      %p79 = scmp.ne.s32.totalorder %s65, %s66
      %p80 = scmp.eq.s32.totalorder %s32, 1
      %p81 = por %p79, %p80
      %p83 = scmp.ne.s32.totalorder %s66, %s82
      %p84 = scmp.eq.s32.totalorder %s32, 0
      %p85 = por %p83, %p84
      %s86 = ssub.s32 %s26, %s33
      %p87 = scmp.eq.s32.totalorder %s86, 0
      %s89 = sadd.s32 %s88, 1
      %s90 = scalar_select %p87, %s88, %s89
      %p93 = pneg %p87
      %p94 = scmp.eq.s32.totalorder %s26, 1
      %p95 = por %p93, %p94
      %p96 = scmp.ne.s32.totalorder %s88, %s91
      %p97 = scmp.eq.s32.totalorder %s26, 0
      %p98 = por %p96, %p97
      %p99 = scmp.ne.s32.totalorder %s88, %s91
      %p100 = scmp.eq.s32.totalorder %s31, 1
      %p101 = por %p99, %p100
      %p102 = scmp.ne.s32.totalorder %s91, %s92
      %p103 = scmp.eq.s32.totalorder %s31, 0
      %p104 = por %p102, %p103
      %p105 = scmp.ne.s32.totalorder %s91, %s92
      %p106 = scmp.eq.s32.totalorder %s32, 1
      %p107 = por %p105, %p106
      %p109 = scmp.ne.s32.totalorder %s92, %s108
      %p110 = scmp.eq.s32.totalorder %s32, 0
      %p111 = por %p109, %p110
      %s113 = sadd.s32 %s112, 1
      %p116 = scmp.eq.s32.totalorder %s26, 1
      %p117 = scmp.ne.s32.totalorder %s112, %s114
      %p118 = scmp.eq.s32.totalorder %s26, 0
      %p119 = por %p117, %p118
      %p120 = scmp.ne.s32.totalorder %s112, %s114
      %p121 = scmp.eq.s32.totalorder %s31, 1
      %p122 = por %p120, %p121
      %p123 = scmp.ne.s32.totalorder %s114, %s115
      %p124 = scmp.eq.s32.totalorder %s31, 0
      %p125 = por %p123, %p124
      %p126 = scmp.ne.s32.totalorder %s114, %s115
      %p127 = scmp.eq.s32.totalorder %s32, 1
      %p128 = por %p126, %p127
      %p130 = scmp.ne.s32.totalorder %s115, %s129
      %p131 = scmp.eq.s32.totalorder %s32, 0
      %p132 = por %p130, %p131
      %s134 = sadd.s32 %s133, 1
      %p137 = scmp.eq.s32.totalorder %s26, 1
      %p138 = scmp.ne.s32.totalorder %s133, %s135
      %p139 = scmp.eq.s32.totalorder %s26, 0
      %p140 = por %p138, %p139
      %p141 = scmp.ne.s32.totalorder %s133, %s135
      %p142 = scmp.eq.s32.totalorder %s31, 1
      %p143 = por %p141, %p142
      %p144 = scmp.ne.s32.totalorder %s135, %s136
      %p145 = scmp.eq.s32.totalorder %s31, 0
      %p146 = por %p144, %p145
      %p147 = scmp.ne.s32.totalorder %s135, %s136
      %p148 = scmp.eq.s32.totalorder %s32, 1
      %p149 = por %p147, %p148
      %p151 = scmp.ne.s32.totalorder %s136, %s150
      %p152 = scmp.eq.s32.totalorder %s32, 0
      %p153 = por %p151, %p152
      %s155 = sadd.s32 %s154, 1
      %p158 = scmp.eq.s32.totalorder %s26, 1
      %p159 = scmp.ne.s32.totalorder %s154, %s156
      %p160 = scmp.eq.s32.totalorder %s26, 0
      %p161 = por %p159, %p160
      %p162 = scmp.ne.s32.totalorder %s154, %s156
      %p163 = scmp.eq.s32.totalorder %s31, 1
      %p164 = por %p162, %p163
      %p165 = scmp.ne.s32.totalorder %s156, %s157
      %p166 = scmp.eq.s32.totalorder %s31, 0
      %p167 = por %p165, %p166
      %p168 = scmp.ne.s32.totalorder %s156, %s157
      %p169 = scmp.eq.s32.totalorder %s32, 1
      %p170 = por %p168, %p169
      %p172 = scmp.ne.s32.totalorder %s157, %s171
      %p173 = scmp.eq.s32.totalorder %s32, 0
      %p174 = por %p172, %p173
      %s176 = sadd.s32 %s175, 1
      %p179 = scmp.eq.s32.totalorder %s26, 1
      %p180 = scmp.ne.s32.totalorder %s175, %s177
      %p181 = scmp.eq.s32.totalorder %s26, 0
      %p182 = por %p180, %p181
      %p183 = scmp.ne.s32.totalorder %s175, %s177
      %p184 = scmp.eq.s32.totalorder %s31, 1
      %p185 = por %p183, %p184
      %p186 = scmp.ne.s32.totalorder %s177, %s178
      %p187 = scmp.eq.s32.totalorder %s31, 0
      %p188 = por %p186, %p187
      %p189 = scmp.ne.s32.totalorder %s177, %s178
      %p190 = scmp.eq.s32.totalorder %s32, 1
      %p191 = por %p189, %p190
      %p193 = scmp.ne.s32.totalorder %s178, %s192
      %p194 = scmp.eq.s32.totalorder %s32, 0
      %p195 = por %p193, %p194
      %s197 = sadd.s32 %s196, 1
      %p200 = scmp.eq.s32.totalorder %s26, 1
      %p201 = scmp.ne.s32.totalorder %s196, %s198
      %p202 = scmp.eq.s32.totalorder %s26, 0
      %p203 = por %p201, %p202
      %p204 = scmp.ne.s32.totalorder %s196, %s198
      %p205 = scmp.eq.s32.totalorder %s31, 1
      %p206 = por %p204, %p205
      %p207 = scmp.ne.s32.totalorder %s198, %s199
      %p208 = scmp.eq.s32.totalorder %s31, 0
      %p209 = por %p207, %p208
      %p210 = scmp.ne.s32.totalorder %s198, %s199
      %p211 = scmp.eq.s32.totalorder %s32, 1
      %p212 = por %p210, %p211
      %p214 = scmp.ne.s32.totalorder %s199, %s213
      %p215 = scmp.eq.s32.totalorder %s32, 0
      %p216 = por %p214, %p215
      %s218 = sadd.s32 %s217, 1
      %p221 = scmp.eq.s32.totalorder %s26, 1
      %p222 = scmp.ne.s32.totalorder %s217, %s219
      %p223 = scmp.eq.s32.totalorder %s26, 0
      %p224 = por %p222, %p223
      %p225 = scmp.ne.s32.totalorder %s217, %s219
      %p226 = scmp.eq.s32.totalorder %s31, 1
      %p227 = por %p225, %p226
      %p228 = scmp.ne.s32.totalorder %s219, %s220
      %p229 = scmp.eq.s32.totalorder %s31, 0
      %p230 = por %p228, %p229
      %p231 = scmp.ne.s32.totalorder %s219, %s220
      %p232 = scmp.eq.s32.totalorder %s32, 1
      %p233 = por %p231, %p232
      %p235 = scmp.ne.s32.totalorder %s220, %s234
      %p236 = scmp.eq.s32.totalorder %s32, 0
      %p237 = por %p235, %p236
      %s239 = sadd.s32 %s238, 1
      %p242 = scmp.eq.s32.totalorder %s26, 1
      %p243 = scmp.ne.s32.totalorder %s238, %s240
      %p244 = scmp.eq.s32.totalorder %s26, 0
      %p245 = por %p243, %p244
      %p246 = scmp.ne.s32.totalorder %s238, %s240
      %p247 = scmp.eq.s32.totalorder %s31, 1
      %p248 = por %p246, %p247
      %p249 = scmp.ne.s32.totalorder %s240, %s241
      %p250 = scmp.eq.s32.totalorder %s31, 0
      %p251 = por %p249, %p250
      %p252 = scmp.ne.s32.totalorder %s240, %s241
      %p253 = scmp.eq.s32.totalorder %s32, 1
      %p254 = por %p252, %p253
      %p256 = scmp.ne.s32.totalorder %s241, %s255
      %p257 = scmp.eq.s32.totalorder %s32, 0
      %p258 = por %p256, %p257
      %s260 = sadd.s32 %s259, 1
      %p263 = scmp.eq.s32.totalorder %s26, 1
      %p264 = scmp.ne.s32.totalorder %s259, %s261
      %p265 = scmp.eq.s32.totalorder %s26, 0
      %p266 = por %p264, %p265
      %p267 = scmp.ne.s32.totalorder %s259, %s261
      %p268 = scmp.eq.s32.totalorder %s31, 1
      %p269 = por %p267, %p268
      %p270 = scmp.ne.s32.totalorder %s261, %s262
      %p271 = scmp.eq.s32.totalorder %s31, 0
      %p272 = por %p270, %p271
      %p273 = scmp.ne.s32.totalorder %s261, %s262
      %p274 = scmp.eq.s32.totalorder %s32, 1
      %p275 = por %p273, %p274
      %p277 = scmp.ne.s32.totalorder %s262, %s276
      %p278 = scmp.eq.s32.totalorder %s32, 0
      %p279 = por %p277, %p278
      %s281 = sadd.s32 %s280, 1
      %p284 = scmp.eq.s32.totalorder %s26, 1
      %p285 = scmp.ne.s32.totalorder %s280, %s282
      %p286 = scmp.eq.s32.totalorder %s26, 0
      %p287 = por %p285, %p286
      %p288 = scmp.ne.s32.totalorder %s280, %s282
      %p289 = scmp.eq.s32.totalorder %s31, 1
      %p290 = por %p288, %p289
      %p291 = scmp.ne.s32.totalorder %s282, %s283
      %p292 = scmp.eq.s32.totalorder %s31, 0
      %p293 = por %p291, %p292
      %p294 = scmp.ne.s32.totalorder %s282, %s283
      %p295 = scmp.eq.s32.totalorder %s32, 1
      %p296 = por %p294, %p295
      %p298 = scmp.ne.s32.totalorder %s283, %s297
      %p299 = scmp.eq.s32.totalorder %s32, 0
      %p300 = por %p298, %p299
      %s302 = sadd.s32 %s301, 1
      %p305 = scmp.eq.s32.totalorder %s26, 1
      %p306 = scmp.ne.s32.totalorder %s301, %s303
      %p307 = scmp.eq.s32.totalorder %s26, 0
      %p308 = por %p306, %p307
      %p309 = scmp.ne.s32.totalorder %s301, %s303
      %p310 = scmp.eq.s32.totalorder %s31, 1
      %p311 = por %p309, %p310
      %p312 = scmp.ne.s32.totalorder %s303, %s304
      %p313 = scmp.eq.s32.totalorder %s31, 0
      %p314 = por %p312, %p313
      %p315 = scmp.ne.s32.totalorder %s303, %s304
      %p316 = scmp.eq.s32.totalorder %s32, 1
      %p317 = por %p315, %p316
      %p319 = scmp.ne.s32.totalorder %s304, %s318
      %p320 = scmp.eq.s32.totalorder %s32, 0
      %p321 = por %p319, %p320
      %s323 = sadd.s32 %s322, 1
      %p326 = scmp.eq.s32.totalorder %s26, 1
      %p327 = scmp.ne.s32.totalorder %s322, %s324
      %p328 = scmp.eq.s32.totalorder %s26, 0
      %p329 = por %p327, %p328
      %p330 = scmp.ne.s32.totalorder %s322, %s324
      %p331 = scmp.eq.s32.totalorder %s31, 1
      %p332 = por %p330, %p331
      %p333 = scmp.ne.s32.totalorder %s324, %s325
      %p334 = scmp.eq.s32.totalorder %s31, 0
      %p335 = por %p333, %p334
      %p336 = scmp.ne.s32.totalorder %s324, %s325
      %p337 = scmp.eq.s32.totalorder %s32, 1
      %p338 = por %p336, %p337
      %p340 = scmp.ne.s32.totalorder %s325, %s339
      %p341 = scmp.eq.s32.totalorder %s32, 0
      %p342 = por %p340, %p341
      %s343 = ssub.s32 %s26, %s33
      %p344 = scmp.eq.s32.totalorder %s343, 0
      %s346 = sadd.s32 %s345, 1
      %s347 = scalar_select %p344, %s345, %s346
      %p350 = pneg %p344
      %p351 = scmp.eq.s32.totalorder %s26, 1
      %p352 = por %p350, %p351
      %p353 = scmp.ne.s32.totalorder %s345, %s348
      %p354 = scmp.eq.s32.totalorder %s26, 0
      %p355 = por %p353, %p354
      %p356 = scmp.ne.s32.totalorder %s345, %s348
      %p357 = scmp.eq.s32.totalorder %s31, 1
      %p358 = por %p356, %p357
      %p359 = scmp.ne.s32.totalorder %s348, %s349
      %p360 = scmp.eq.s32.totalorder %s31, 0
      %p361 = por %p359, %p360
      %p362 = scmp.ne.s32.totalorder %s348, %s349
      %p363 = scmp.eq.s32.totalorder %s32, 1
      %p364 = por %p362, %p363
      %p366 = scmp.ne.s32.totalorder %s349, %s365
      %p367 = scmp.eq.s32.totalorder %s32, 0
      %p368 = por %p366, %p367
      %s370 = sadd.s32 %s369, 1
      %p373 = scmp.eq.s32.totalorder %s26, 1
      %p374 = scmp.ne.s32.totalorder %s369, %s371
      %p375 = scmp.eq.s32.totalorder %s26, 0
      %p376 = por %p374, %p375
      %p377 = scmp.ne.s32.totalorder %s369, %s371
      %p378 = scmp.eq.s32.totalorder %s31, 1
      %p379 = por %p377, %p378
      %p380 = scmp.ne.s32.totalorder %s371, %s372
      %p381 = scmp.eq.s32.totalorder %s31, 0
      %p382 = por %p380, %p381
      %p383 = scmp.ne.s32.totalorder %s371, %s372
      %p384 = scmp.eq.s32.totalorder %s32, 1
      %p385 = por %p383, %p384
      %p387 = scmp.ne.s32.totalorder %s372, %s386
      %p388 = scmp.eq.s32.totalorder %s32, 0
      %p389 = por %p387, %p388
      %s391 = sadd.s32 %s390, 1
      %p394 = scmp.eq.s32.totalorder %s26, 1
      %p395 = scmp.ne.s32.totalorder %s390, %s392
      %p396 = scmp.eq.s32.totalorder %s26, 0
      %p397 = por %p395, %p396
      %p398 = scmp.ne.s32.totalorder %s390, %s392
      %p399 = scmp.eq.s32.totalorder %s31, 1
      %p400 = por %p398, %p399
      %p401 = scmp.ne.s32.totalorder %s392, %s393
      %p402 = scmp.eq.s32.totalorder %s31, 0
      %p403 = por %p401, %p402
      %p404 = scmp.ne.s32.totalorder %s392, %s393
      %p405 = scmp.eq.s32.totalorder %s32, 1
      %p406 = por %p404, %p405
      %p408 = scmp.ne.s32.totalorder %s393, %s407
      %p409 = scmp.eq.s32.totalorder %s32, 0
      %p410 = por %p408, %p409
      %s412 = sadd.s32 %s411, 1
      %p415 = scmp.eq.s32.totalorder %s26, 1
      %p416 = scmp.ne.s32.totalorder %s411, %s413
      %p417 = scmp.eq.s32.totalorder %s26, 0
      %p418 = por %p416, %p417
      %p419 = scmp.ne.s32.totalorder %s411, %s413
      %p420 = scmp.eq.s32.totalorder %s31, 1
      %p421 = por %p419, %p420
      %p422 = scmp.ne.s32.totalorder %s413, %s414
      %p423 = scmp.eq.s32.totalorder %s31, 0
      %p424 = por %p422, %p423
      %p425 = scmp.ne.s32.totalorder %s413, %s414
      %p426 = scmp.eq.s32.totalorder %s32, 1
      %p427 = por %p425, %p426
      %p429 = scmp.ne.s32.totalorder %s414, %s428
      %p430 = scmp.eq.s32.totalorder %s32, 0
      %p431 = por %p429, %p430
      %p432 = scmp.le.s32.totalorder 1, %s26
      %p433 = scmp.lt.s32.totalorder %s26, 3
      %p434 = pnand %p432, %p433
      %p435 = pneg %p434
      // Predicated region
      $region9: #{drnn_forward.1} parent=5 // pred_check
        _
      $region10: #{drnn_forward.1} parent=5 // pred_check_branch
        %437 = sbr.rel (%p434) target = $region12
      $region11: #{drnn_forward.1} parent=5 // pred_region
        %s438 = ssub.s32 %s26, 1
        // Predicated region
        $region13: #{drnn_forward.1} parent=11 // pred_check
          %p439 = pneg %p125
        $region14: #{drnn_forward.1} parent=11 // pred_check_branch
          %441 = sbr.rel (%p439) target = $region16
        $region15: #{drnn_forward.1} parent=11 // pred_region
          _
        $region16: #{drnn_forward.1} parent=11 // pred_fallthru
          _
        // Predicated region
        $region17: #{drnn_forward.1} parent=11 // pred_check
          %p442 = pneg %p146
        $region18: #{drnn_forward.1} parent=11 // pred_check_branch
          %444 = sbr.rel (%p442) target = $region20
        $region19: #{drnn_forward.1} parent=11 // pred_region
          _
        $region20: #{drnn_forward.1} parent=11 // pred_fallthru
          _
        // Predicated region
        $region21: #{drnn_forward.1} parent=11 // pred_check
          %p445 = pneg %p167
        $region22: #{drnn_forward.1} parent=11 // pred_check_branch
          %447 = sbr.rel (%p445) target = $region24
        $region23: #{drnn_forward.1} parent=11 // pred_region
          _
        $region24: #{drnn_forward.1} parent=11 // pred_fallthru
          _
        // Predicated region
        $region25: #{drnn_forward.1} parent=11 // pred_check
          %p448 = pneg %p188
        $region26: #{drnn_forward.1} parent=11 // pred_check_branch
          %450 = sbr.rel (%p448) target = $region28
        $region27: #{drnn_forward.1} parent=11 // pred_region
          _
        $region28: #{drnn_forward.1} parent=11 // pred_fallthru
          _
        // Predicated region
        $region29: #{drnn_forward.1} parent=11 // pred_check
          %p451 = pneg %p209
        $region30: #{drnn_forward.1} parent=11 // pred_check_branch
          %453 = sbr.rel (%p451) target = $region32
        $region31: #{drnn_forward.1} parent=11 // pred_region
          _
        $region32: #{drnn_forward.1} parent=11 // pred_fallthru
          _
        // Predicated region
        $region33: #{drnn_forward.1} parent=11 // pred_check
          %p454 = pneg %p230
        $region34: #{drnn_forward.1} parent=11 // pred_check_branch
          %456 = sbr.rel (%p454) target = $region36
        $region35: #{drnn_forward.1} parent=11 // pred_region
          _
        $region36: #{drnn_forward.1} parent=11 // pred_fallthru
          _
        // Predicated region
        $region37: #{drnn_forward.1} parent=11 // pred_check
          %p457 = pneg %p251
        $region38: #{drnn_forward.1} parent=11 // pred_check_branch
          %459 = sbr.rel (%p457) target = $region40
        $region39: #{drnn_forward.1} parent=11 // pred_region
          _
        $region40: #{drnn_forward.1} parent=11 // pred_fallthru
          _
        // Predicated region
        $region41: #{drnn_forward.1} parent=11 // pred_check
          %p460 = pneg %p272
        $region42: #{drnn_forward.1} parent=11 // pred_check_branch
          %462 = sbr.rel (%p460) target = $region44
        $region43: #{drnn_forward.1} parent=11 // pred_region
          _
        $region44: #{drnn_forward.1} parent=11 // pred_fallthru
          _
        // Predicated region
        $region45: #{drnn_forward.1} parent=11 // pred_check
          %p463 = pneg %p293
        $region46: #{drnn_forward.1} parent=11 // pred_check_branch
          %465 = sbr.rel (%p463) target = $region48
        $region47: #{drnn_forward.1} parent=11 // pred_region
          _
        $region48: #{drnn_forward.1} parent=11 // pred_fallthru
          _
        // Predicated region
        $region49: #{drnn_forward.1} parent=11 // pred_check
          %p466 = pneg %p314
        $region50: #{drnn_forward.1} parent=11 // pred_check_branch
          %468 = sbr.rel (%p466) target = $region52
        $region51: #{drnn_forward.1} parent=11 // pred_region
          _
        $region52: #{drnn_forward.1} parent=11 // pred_fallthru
          _
        // Predicated region
        $region53: #{drnn_forward.1} parent=11 // pred_check
          %p469 = pneg %p335
        $region54: #{drnn_forward.1} parent=11 // pred_check_branch
          %471 = sbr.rel (%p469) target = $region56
        $region55: #{drnn_forward.1} parent=11 // pred_region
          _
        $region56: #{drnn_forward.1} parent=11 // pred_fallthru
          _
      $region12: #{drnn_forward.1} parent=5 // pred_fallthru
        _
      %p472 = scmp.lt.s32.totalorder %s26, 2
      // Predicated region
      $region57: #{drnn_forward.1} parent=5 // pred_check
        %p473 = pneg %p472
      $region58: #{drnn_forward.1} parent=5 // pred_check_branch
        %475 = sbr.rel (%p473) target = $region60
      $region59: #{drnn_forward.1} parent=5 // pred_region
        // Predicated region
        $region61: #{drnn_forward.1} parent=59 // pred_check
          %p476 = pneg %p46
        $region62: #{drnn_forward.1} parent=59 // pred_check_branch
          %478 = sbr.rel (%p476) target = $region64
        $region63: #{drnn_forward.1} parent=59 // pred_region
          %s479 = smul.u32 14, %s26
          %p480 = scmp.lt.s32.totalorder %s479, 27
          %s481 = scalar_select %p480, %s479, 27
          %s482 = smul.addr %s481, 8
          %s483 = scalar_lea.vmem %s0, %s482
          %s484 = smul.u32 14, %s26
        $region64: #{drnn_forward.1} parent=59 // pred_fallthru
          _
        // Predicated region
        $region65: #{drnn_forward.1} parent=59 // pred_check
          %p485 = pneg %p72
        $region66: #{drnn_forward.1} parent=59 // pred_check_branch
          %487 = sbr.rel (%p485) target = $region68
        $region67: #{drnn_forward.1} parent=59 // pred_region
          %s488 = smul.u32 14, %s26
          %p489 = scmp.lt.s32.totalorder %s488, 27
          %s490 = scalar_select %p489, %s488, 27
          %s491 = smul.addr %s490, 8
          %s492 = scalar_lea.vmem %s1, %s491
          %s493 = smul.u32 14, %s26
        $region68: #{drnn_forward.1} parent=59 // pred_fallthru
          _
        // Predicated region
        $region69: #{drnn_forward.1} parent=59 // pred_check
          %p494 = pneg %p98
        $region70: #{drnn_forward.1} parent=59 // pred_check_branch
          %496 = sbr.rel (%p494) target = $region72
        $region71: #{drnn_forward.1} parent=59 // pred_region
          %s497 = smul.u32 14, %s26
          %p498 = scmp.lt.s32.totalorder %s497, 27
          %s499 = scalar_select %p498, %s497, 27
          %s500 = smul.addr %s499, 8
          %s501 = scalar_lea.vmem %s2, %s500
          %s502 = smul.u32 14, %s26
        $region72: #{drnn_forward.1} parent=59 // pred_fallthru
          _
      $region60: #{drnn_forward.1} parent=5 // pred_fallthru
        _
      %p503 = scmp.le.s32.totalorder 1, %s26
      %p504 = scmp.lt.s32.totalorder %s26, 3
      %p505 = pnand %p503, %p504
      %p506 = pneg %p505
      // Predicated region
      $region73: #{drnn_forward.1} parent=5 // pred_check
        _
      $region74: #{drnn_forward.1} parent=5 // pred_check_branch
        %508 = sbr.rel (%p505) target = $region76
      $region75: #{drnn_forward.1} parent=5 // pred_region
        %s509 = ssub.s32 %s26, 1
        %s510 = smul.u32 14, %s31
        %p511 = scmp.lt.s32.totalorder %s510, 27
        %s512 = scalar_select %p511, %s510, 27
        %s513 = smul.addr %s512, 8
        %s514 = scalar_lea.vmem %s0, %s513
        %p515 = pneg %p52
        %p516 = pneg %p49
        %s517 = smul.u32 14, %s31
        %p518 = scmp.lt.s32.totalorder %s517, 27
        %s519 = scalar_select %p518, %s517, 27
        %s520 = smul.addr %s519, 8
        %s521 = scalar_lea.vmem %s1, %s520
        %p522 = pneg %p78
        %p523 = pneg %p75
        %s524 = smul.u32 14, %s31
        %p525 = scmp.lt.s32.totalorder %s524, 27
        %s526 = scalar_select %p525, %s524, 27
        %s527 = smul.addr %s526, 8
        %s528 = scalar_lea.vmem %s2, %s527
        %p529 = pneg %p104
        %p530 = pneg %p101
        %p531 = pneg %p125
        %p532 = pneg %p122
        %p533 = pneg %p146
        %p534 = pneg %p143
        %p535 = pneg %p167
        %p536 = pneg %p164
        %p537 = pneg %p188
        %p538 = pneg %p185
        %p539 = pneg %p209
        %p540 = pneg %p206
        %p541 = pneg %p230
        %p542 = pneg %p227
        %p543 = pneg %p251
        %p544 = pneg %p248
        %p545 = pneg %p272
        %p546 = pneg %p269
        %p547 = pneg %p293
        %p548 = pneg %p290
        %p549 = pneg %p314
        %p550 = pneg %p311
        %p551 = pneg %p335
        %p552 = pneg %p332
        %p553 = pneg %p361
        %p554 = pneg %p358
        %p555 = scmp.lt.s32.totalorder %s31, 1
        %s556 = scalar_select %p555, %s31, 1
        %s557 = smul.addr %s556, 8
        %s558 = scalar_lea.vmem %s14, %s557
        %p559 = pneg %p382
        %p560 = pneg %p379
        %p561 = pneg %p403
        %p562 = pneg %p400
        %p563 = pneg %p424
        %p564 = pneg %p421
        %s565 = smul.u32 14, %s31
        %p566 = scmp.lt.s32.totalorder %s565, 27
        %s567 = scalar_select %p566, %s565, 27
        %s568 = smul.addr %s567, 8
        %s569 = scalar_lea.vmem %s0, %s568
        %s570 = smul.u32 14, %s31
        %s571 = smul.u32 14, %s31
        %p572 = scmp.lt.s32.totalorder %s571, 27
        %s573 = scalar_select %p572, %s571, 27
        %s574 = smul.addr %s573, 8
        %s575 = scalar_lea.vmem %s1, %s574
        %s576 = smul.u32 14, %s31
        %s577 = smul.u32 14, %s31
        %p578 = scmp.lt.s32.totalorder %s577, 27
        %s579 = scalar_select %p578, %s577, 27
        %s580 = smul.addr %s579, 8
        %s581 = scalar_lea.vmem %s2, %s580
        %s582 = smul.u32 14, %s31
        %p583 = scmp.lt.s32.totalorder %s31, 1
        %s584 = scalar_select %p583, %s31, 1
        %s585 = smul.addr %s584, 8
        %s586 = scalar_lea.vmem %s14, %s585
        %p588 = scmp.eq.s32.totalorder %s31, 0
        // Predicated region
        $region77: #{drnn_forward.1} parent=75 // pred_check
          %p589 = pneg %p588
        $region78: #{drnn_forward.1} parent=75 // pred_check_branch
          %591 = sbr.rel (%p589) target = $region80
        $region79: #{drnn_forward.1} parent=75 // pred_region
          %vm592 = vcmask 261120
          %593 = vst.msk [vmem:[#allocation2] sm:$0xff] %vm592, 0.0
          %594 = vst.msk [vmem:[#allocation3] sm:$0xff] %vm592, 0.0
          %595 = vst.msk [vmem:[#allocation3 + $0x8] sm:$0xff] %vm592, 0.0
          %596 = vst.msk [vmem:[#allocation4] sm:$0xff] %vm592, 0.0
          %597 = vst.msk [vmem:[#allocation4 + $0x8] sm:$0xff] %vm592, 0.0
          %598 = vst.msk [vmem:[#allocation4 + $0x10] sm:$0xff] %vm592, 0.0
          %599 = vst.msk [vmem:[#allocation4 + $0x18] sm:$0xff] %vm592, 0.0
          %600 = vst.msk [vmem:[#allocation4 + $0x20] sm:$0xff] %vm592, 0.0
          %601 = vst.msk [vmem:[#allocation4 + $0x28] sm:$0xff] %vm592, 0.0
          %602 = vst.msk [vmem:[#allocation4 + $0x30] sm:$0xff] %vm592, 0.0
          %vm603 = vcmask 31744
          %604 = vst.msk [vmem:[#allocation5] sm:$0xff] %vm603, 0.0
          %605 = vst.msk [vmem:[#allocation5 + $0x8] sm:$0xff] %vm603, 0.0
          %606 = vst.msk [vmem:[#allocation5 + $0x10] sm:$0xff] %vm603, 0.0
          %607 = vst.msk [vmem:[#allocation5 + $0x18] sm:$0xff] %vm603, 0.0
          %608 = vst.msk [vmem:[#allocation5 + $0x20] sm:$0xff] %vm603, 0.0
          %609 = vst.msk [vmem:[#allocation5 + $0x28] sm:$0xff] %vm603, 0.0
          %610 = vst.msk [vmem:[#allocation5 + $0x30] sm:$0xff] %vm603, 0.0
          %vm611 = vcmask 0
          %612 = vst.msk [vmem:[#allocation9] sm:$0x1] %vm611, 0.0
          %613 = vst.msk [vmem:[#allocation11] sm:$0x1] %vm611, 0.0
          %614 = vst.msk [vmem:[#allocation13] sm:$0x1] %vm611, 0.0
        $region80: #{drnn_forward.1} parent=75 // pred_fallthru
          _
        %v615 = vld [vmem:[#allocation2] sm:$0xff]
        %v616 = vld [vmem:[%s569] sm:$0xff]
        %v617 = vpack.c.bf16 %v615, %v615
        %v618 = vld [vmem:[%s3] sm:$0xf]
        %v619 = vld [vmem:[%s3 + $0x4] sm:$0xf]
        %v620 = vld [vmem:[%s3 + $0x8] sm:$0xf]
        %v621 = vld [vmem:[%s3 + $0xc] sm:$0xf]
        %v626 = vunpack.c.l.b16 %v618
        %v627 = vunpack.c.l.b16 %v619
        %v628 = vunpack.c.l.b16 %v620
        %v629 = vunpack.c.l.b16 %v621
        %v630 = vpack.c.b16 %v627, %v626
        %v631 = vpack.c.b16 %v629, %v628
        %vm634 = vcmask 261120
        %v636 = vsel %vm634, %v617, 0
        %638 = vmatpush.bf16.msra.mxu0 0
        %639 = vmatpush.bf16.msra.mxu0 0
        %640 = vmatpush.bf16.msra.mxu0 0
        %641 = vmatpush.bf16.msra.mxu0 0
        %642 = vmatpush.bf16.msra.mxu0 0
        %643 = vmatpush.bf16.msra.mxu0 0
        %644 = vmatpush.bf16.msra.mxu0 %v631
        %645 = vmatpush.bf16.msra.mxu0 %v630
        %646 = vmatmul.bf16.gmra.mxu0 %v636
        %v647 = vpop.f32.mrf.mxu0
        %v648 = vadd.f32 0.0, %v647
        %v649 = vpop.f32.mrf.mxu0
        %650 = vdwg.mxu0
        %v651 = vadd.f32 %v616, %v648
        %v652 = vtanh.pop %v651
        %653 = vst.msk [vmem:[#allocation6] sm:$0xff] %vm634, %v652
        %s654 = scalar_lea.vmem %s569, 8
        %v655 = vld [vmem:[%s654] sm:$0xff]
        %v656 = vpack.c.bf16 %v652, %v652
        %v657 = vld [vmem:[%s3] sm:$0xf]
        %v658 = vld [vmem:[%s3 + $0x4] sm:$0xf]
        %v659 = vld [vmem:[%s3 + $0x8] sm:$0xf]
        %v660 = vld [vmem:[%s3 + $0xc] sm:$0xf]
        %v665 = vunpack.c.l.b16 %v657
        %v666 = vunpack.c.l.b16 %v658
        %v667 = vunpack.c.l.b16 %v659
        %v668 = vunpack.c.l.b16 %v660
        %v669 = vpack.c.b16 %v666, %v665
        %v670 = vpack.c.b16 %v668, %v667
        %v674 = vsel %vm634, %v656, 0
        %676 = vmatpush.bf16.msra.mxu0 0
        %677 = vmatpush.bf16.msra.mxu0 0
        %678 = vmatpush.bf16.msra.mxu0 0
        %679 = vmatpush.bf16.msra.mxu0 0
        %680 = vmatpush.bf16.msra.mxu0 0
        %681 = vmatpush.bf16.msra.mxu0 0
        %682 = vmatpush.bf16.msra.mxu0 %v670
        %683 = vmatpush.bf16.msra.mxu0 %v669
        %684 = vmatmul.bf16.gmra.mxu0 %v674
        %v685 = vpop.f32.mrf.mxu0
        %v686 = vadd.f32 0.0, %v685
        %v687 = vpop.f32.mrf.mxu0
        %688 = vdwg.mxu0
        %v689 = vadd.f32 %v655, %v686
        %v690 = vtanh.pop %v689
        %691 = vst.msk [vmem:[#allocation6 + $0x8] sm:$0xff] %vm634, %v690
        %s692 = scalar_lea.vmem %s569, 16
        %v693 = vld [vmem:[%s692] sm:$0xff]
        %v694 = vpack.c.bf16 %v690, %v690
        %v695 = vld [vmem:[%s3] sm:$0xf]
        %v696 = vld [vmem:[%s3 + $0x4] sm:$0xf]
        %v697 = vld [vmem:[%s3 + $0x8] sm:$0xf]
        %v698 = vld [vmem:[%s3 + $0xc] sm:$0xf]
        %v703 = vunpack.c.l.b16 %v695
        %v704 = vunpack.c.l.b16 %v696
        %v705 = vunpack.c.l.b16 %v697
        %v706 = vunpack.c.l.b16 %v698
        %v707 = vpack.c.b16 %v704, %v703
        %v708 = vpack.c.b16 %v706, %v705
        %v712 = vsel %vm634, %v694, 0
        %714 = vmatpush.bf16.msra.mxu0 0
        %715 = vmatpush.bf16.msra.mxu0 0
        %716 = vmatpush.bf16.msra.mxu0 0
        %717 = vmatpush.bf16.msra.mxu0 0
        %718 = vmatpush.bf16.msra.mxu0 0
        %719 = vmatpush.bf16.msra.mxu0 0
        %720 = vmatpush.bf16.msra.mxu0 %v708
        %721 = vmatpush.bf16.msra.mxu0 %v707
        %722 = vmatmul.bf16.gmra.mxu0 %v712
        %v723 = vpop.f32.mrf.mxu0
        %v724 = vadd.f32 0.0, %v723
        %v725 = vpop.f32.mrf.mxu0
        %726 = vdwg.mxu0
        %v727 = vadd.f32 %v693, %v724
        %v728 = vtanh.pop %v727
        %729 = vst.msk [vmem:[#allocation6 + $0x10] sm:$0xff] %vm634, %v728
        %s730 = scalar_lea.vmem %s569, 24
        %v731 = vld [vmem:[%s730] sm:$0xff]
        %v732 = vpack.c.bf16 %v728, %v728
        %v733 = vld [vmem:[%s3] sm:$0xf]
        %v734 = vld [vmem:[%s3 + $0x4] sm:$0xf]
        %v735 = vld [vmem:[%s3 + $0x8] sm:$0xf]
        %v736 = vld [vmem:[%s3 + $0xc] sm:$0xf]
        %v741 = vunpack.c.l.b16 %v733
        %v742 = vunpack.c.l.b16 %v734
        %v743 = vunpack.c.l.b16 %v735
        %v744 = vunpack.c.l.b16 %v736
        %v745 = vpack.c.b16 %v742, %v741
        %v746 = vpack.c.b16 %v744, %v743
        %v750 = vsel %vm634, %v732, 0
        %752 = vmatpush.bf16.msra.mxu0 0
        %753 = vmatpush.bf16.msra.mxu0 0
        %754 = vmatpush.bf16.msra.mxu0 0
        %755 = vmatpush.bf16.msra.mxu0 0
        %756 = vmatpush.bf16.msra.mxu0 0
        %757 = vmatpush.bf16.msra.mxu0 0
        %758 = vmatpush.bf16.msra.mxu0 %v746
        %759 = vmatpush.bf16.msra.mxu0 %v745
        %760 = vmatmul.bf16.gmra.mxu0 %v750
        %v761 = vpop.f32.mrf.mxu0
        %v762 = vadd.f32 0.0, %v761
        %v763 = vpop.f32.mrf.mxu0
        %764 = vdwg.mxu0
        %v765 = vadd.f32 %v731, %v762
        %v766 = vtanh.pop %v765
        %767 = vst.msk [vmem:[#allocation6 + $0x18] sm:$0xff] %vm634, %v766
        %s768 = scalar_lea.vmem %s569, 32
        %v769 = vld [vmem:[%s768] sm:$0xff]
        %v770 = vpack.c.bf16 %v766, %v766
        %v771 = vld [vmem:[%s3] sm:$0xf]
        %v772 = vld [vmem:[%s3 + $0x4] sm:$0xf]
        %v773 = vld [vmem:[%s3 + $0x8] sm:$0xf]
        %v774 = vld [vmem:[%s3 + $0xc] sm:$0xf]
        %v779 = vunpack.c.l.b16 %v771
        %v780 = vunpack.c.l.b16 %v772
        %v781 = vunpack.c.l.b16 %v773
        %v782 = vunpack.c.l.b16 %v774
        %v783 = vpack.c.b16 %v780, %v779
        %v784 = vpack.c.b16 %v782, %v781
        %v788 = vsel %vm634, %v770, 0
        %790 = vmatpush.bf16.msra.mxu0 0
        %791 = vmatpush.bf16.msra.mxu0 0
        %792 = vmatpush.bf16.msra.mxu0 0
        %793 = vmatpush.bf16.msra.mxu0 0
        %794 = vmatpush.bf16.msra.mxu0 0
        %795 = vmatpush.bf16.msra.mxu0 0
        %796 = vmatpush.bf16.msra.mxu0 %v784
        %797 = vmatpush.bf16.msra.mxu0 %v783
        %798 = vmatmul.bf16.gmra.mxu0 %v788
        %v799 = vpop.f32.mrf.mxu0
        %v800 = vadd.f32 0.0, %v799
        %v801 = vpop.f32.mrf.mxu0
        %802 = vdwg.mxu0
        %v803 = vadd.f32 %v769, %v800
        %v804 = vtanh.pop %v803
        %805 = vst.msk [vmem:[#allocation6 + $0x20] sm:$0xff] %vm634, %v804
        %s806 = scalar_lea.vmem %s569, 40
        %v807 = vld [vmem:[%s806] sm:$0xff]
        %v808 = vpack.c.bf16 %v804, %v804
        %v809 = vld [vmem:[%s3] sm:$0xf]
        %v810 = vld [vmem:[%s3 + $0x4] sm:$0xf]
        %v811 = vld [vmem:[%s3 + $0x8] sm:$0xf]
        %v812 = vld [vmem:[%s3 + $0xc] sm:$0xf]
        %v817 = vunpack.c.l.b16 %v809
        %v818 = vunpack.c.l.b16 %v810
        %v819 = vunpack.c.l.b16 %v811
        %v820 = vunpack.c.l.b16 %v812
        %v821 = vpack.c.b16 %v818, %v817
        %v822 = vpack.c.b16 %v820, %v819
        %v826 = vsel %vm634, %v808, 0
        %828 = vmatpush.bf16.msra.mxu0 0
        %829 = vmatpush.bf16.msra.mxu0 0
        %830 = vmatpush.bf16.msra.mxu0 0
        %831 = vmatpush.bf16.msra.mxu0 0
        %832 = vmatpush.bf16.msra.mxu0 0
        %833 = vmatpush.bf16.msra.mxu0 0
        %834 = vmatpush.bf16.msra.mxu0 %v822
        %835 = vmatpush.bf16.msra.mxu0 %v821
        %836 = vmatmul.bf16.gmra.mxu0 %v826
        %v837 = vpop.f32.mrf.mxu0
        %v838 = vadd.f32 0.0, %v837
        %v839 = vpop.f32.mrf.mxu0
        %840 = vdwg.mxu0
        %v841 = vadd.f32 %v807, %v838
        %v842 = vtanh.pop %v841
        %843 = vst.msk [vmem:[#allocation6 + $0x28] sm:$0xff] %vm634, %v842
        %s844 = scalar_lea.vmem %s569, 48
        %v845 = vld [vmem:[%s844] sm:$0xff]
        %v846 = vpack.c.bf16 %v842, %v842
        %v847 = vld [vmem:[%s3] sm:$0xf]
        %v848 = vld [vmem:[%s3 + $0x4] sm:$0xf]
        %v849 = vld [vmem:[%s3 + $0x8] sm:$0xf]
        %v850 = vld [vmem:[%s3 + $0xc] sm:$0xf]
        %v855 = vunpack.c.l.b16 %v847
        %v856 = vunpack.c.l.b16 %v848
        %v857 = vunpack.c.l.b16 %v849
        %v858 = vunpack.c.l.b16 %v850
        %v859 = vpack.c.b16 %v856, %v855
        %v860 = vpack.c.b16 %v858, %v857
        %v864 = vsel %vm634, %v846, 0
        %866 = vmatpush.bf16.msra.mxu0 0
        %867 = vmatpush.bf16.msra.mxu0 0
        %868 = vmatpush.bf16.msra.mxu0 0
        %869 = vmatpush.bf16.msra.mxu0 0
        %870 = vmatpush.bf16.msra.mxu0 0
        %871 = vmatpush.bf16.msra.mxu0 0
        %872 = vmatpush.bf16.msra.mxu0 %v860
        %873 = vmatpush.bf16.msra.mxu0 %v859
        %874 = vmatmul.bf16.gmra.mxu0 %v864
        %v875 = vpop.f32.mrf.mxu0
        %v876 = vadd.f32 0.0, %v875
        %v877 = vpop.f32.mrf.mxu0
        %878 = vdwg.mxu0
        %v879 = vadd.f32 %v845, %v876
        %v880 = vtanh.pop %v879
        %881 = vst.msk [vmem:[#allocation6 + $0x30] sm:$0xff] %vm634, %v880
        %s882 = scalar_lea.vmem %s569, 56
        %v883 = vld [vmem:[%s882] sm:$0xff]
        %v884 = vpack.c.bf16 %v880, %v880
        %v885 = vld [vmem:[%s3] sm:$0xf]
        %v886 = vld [vmem:[%s3 + $0x4] sm:$0xf]
        %v887 = vld [vmem:[%s3 + $0x8] sm:$0xf]
        %v888 = vld [vmem:[%s3 + $0xc] sm:$0xf]
        %v893 = vunpack.c.l.b16 %v885
        %v894 = vunpack.c.l.b16 %v886
        %v895 = vunpack.c.l.b16 %v887
        %v896 = vunpack.c.l.b16 %v888
        %v897 = vpack.c.b16 %v894, %v893
        %v898 = vpack.c.b16 %v896, %v895
        %v902 = vsel %vm634, %v884, 0
        %904 = vmatpush.bf16.msra.mxu0 0
        %905 = vmatpush.bf16.msra.mxu0 0
        %906 = vmatpush.bf16.msra.mxu0 0
        %907 = vmatpush.bf16.msra.mxu0 0
        %908 = vmatpush.bf16.msra.mxu0 0
        %909 = vmatpush.bf16.msra.mxu0 0
        %910 = vmatpush.bf16.msra.mxu0 %v898
        %911 = vmatpush.bf16.msra.mxu0 %v897
        %912 = vmatmul.bf16.gmra.mxu0 %v902
        %v913 = vpop.f32.mrf.mxu0
        %v914 = vadd.f32 0.0, %v913
        %v915 = vpop.f32.mrf.mxu0
        %916 = vdwg.mxu0
        %v917 = vadd.f32 %v883, %v914
        %v918 = vtanh.pop %v917
        %919 = vst.msk [vmem:[#allocation6 + $0x38] sm:$0xff] %vm634, %v918
        %s920 = scalar_lea.vmem %s569, 64
        %v921 = vld [vmem:[%s920] sm:$0xff]
        %v922 = vpack.c.bf16 %v918, %v918
        %v923 = vld [vmem:[%s3] sm:$0xf]
        %v924 = vld [vmem:[%s3 + $0x4] sm:$0xf]
        %v925 = vld [vmem:[%s3 + $0x8] sm:$0xf]
        %v926 = vld [vmem:[%s3 + $0xc] sm:$0xf]
        %v931 = vunpack.c.l.b16 %v923
        %v932 = vunpack.c.l.b16 %v924
        %v933 = vunpack.c.l.b16 %v925
        %v934 = vunpack.c.l.b16 %v926
        %v935 = vpack.c.b16 %v932, %v931
        %v936 = vpack.c.b16 %v934, %v933
        %v940 = vsel %vm634, %v922, 0
        %942 = vmatpush.bf16.msra.mxu0 0
        %943 = vmatpush.bf16.msra.mxu0 0
        %944 = vmatpush.bf16.msra.mxu0 0
        %945 = vmatpush.bf16.msra.mxu0 0
        %946 = vmatpush.bf16.msra.mxu0 0
        %947 = vmatpush.bf16.msra.mxu0 0
        %948 = vmatpush.bf16.msra.mxu0 %v936
        %949 = vmatpush.bf16.msra.mxu0 %v935
        %950 = vmatmul.bf16.gmra.mxu0 %v940
        %v951 = vpop.f32.mrf.mxu0
        %v952 = vadd.f32 0.0, %v951
        %v953 = vpop.f32.mrf.mxu0
        %954 = vdwg.mxu0
        %v955 = vadd.f32 %v921, %v952
        %v956 = vtanh.pop %v955
        %957 = vst.msk [vmem:[#allocation6 + $0x40] sm:$0xff] %vm634, %v956
        %s958 = scalar_lea.vmem %s569, 72
        %v959 = vld [vmem:[%s958] sm:$0xff]
        %v960 = vpack.c.bf16 %v956, %v956
        %v961 = vld [vmem:[%s3] sm:$0xf]
        %v962 = vld [vmem:[%s3 + $0x4] sm:$0xf]
        %v963 = vld [vmem:[%s3 + $0x8] sm:$0xf]
        %v964 = vld [vmem:[%s3 + $0xc] sm:$0xf]
        %v969 = vunpack.c.l.b16 %v961
        %v970 = vunpack.c.l.b16 %v962
        %v971 = vunpack.c.l.b16 %v963
        %v972 = vunpack.c.l.b16 %v964
        %v973 = vpack.c.b16 %v970, %v969
        %v974 = vpack.c.b16 %v972, %v971
        %v978 = vsel %vm634, %v960, 0
        %980 = vmatpush.bf16.msra.mxu0 0
        %981 = vmatpush.bf16.msra.mxu0 0
        %982 = vmatpush.bf16.msra.mxu0 0
        %983 = vmatpush.bf16.msra.mxu0 0
        %984 = vmatpush.bf16.msra.mxu0 0
        %985 = vmatpush.bf16.msra.mxu0 0
        %986 = vmatpush.bf16.msra.mxu0 %v974
        %987 = vmatpush.bf16.msra.mxu0 %v973
        %988 = vmatmul.bf16.gmra.mxu0 %v978
        %v989 = vpop.f32.mrf.mxu0
        %v990 = vadd.f32 0.0, %v989
        %v991 = vpop.f32.mrf.mxu0
        %992 = vdwg.mxu0
        %v993 = vadd.f32 %v959, %v990
        %v994 = vtanh.pop %v993
        %995 = vst.msk [vmem:[#allocation6 + $0x48] sm:$0xff] %vm634, %v994
        %s996 = scalar_lea.vmem %s569, 80
        %v997 = vld [vmem:[%s996] sm:$0xff]
        %v998 = vpack.c.bf16 %v994, %v994
        %v999 = vld [vmem:[%s3] sm:$0xf]
        %v1000 = vld [vmem:[%s3 + $0x4] sm:$0xf]
        %v1001 = vld [vmem:[%s3 + $0x8] sm:$0xf]
        %v1002 = vld [vmem:[%s3 + $0xc] sm:$0xf]
        %v1007 = vunpack.c.l.b16 %v999
        %v1008 = vunpack.c.l.b16 %v1000
        %v1009 = vunpack.c.l.b16 %v1001
        %v1010 = vunpack.c.l.b16 %v1002
        %v1011 = vpack.c.b16 %v1008, %v1007
        %v1012 = vpack.c.b16 %v1010, %v1009
        %v1016 = vsel %vm634, %v998, 0
        %1018 = vmatpush.bf16.msra.mxu0 0
        %1019 = vmatpush.bf16.msra.mxu0 0
        %1020 = vmatpush.bf16.msra.mxu0 0
        %1021 = vmatpush.bf16.msra.mxu0 0
        %1022 = vmatpush.bf16.msra.mxu0 0
        %1023 = vmatpush.bf16.msra.mxu0 0
        %1024 = vmatpush.bf16.msra.mxu0 %v1012
        %1025 = vmatpush.bf16.msra.mxu0 %v1011
        %1026 = vmatmul.bf16.gmra.mxu0 %v1016
        %v1027 = vpop.f32.mrf.mxu0
        %v1028 = vadd.f32 0.0, %v1027
        %v1029 = vpop.f32.mrf.mxu0
        %1030 = vdwg.mxu0
        %v1031 = vadd.f32 %v997, %v1028
        %v1032 = vtanh.pop %v1031
        %1033 = vst.msk [vmem:[#allocation6 + $0x50] sm:$0xff] %vm634, %v1032
        %s1034 = scalar_lea.vmem %s569, 88
        %v1035 = vld [vmem:[%s1034] sm:$0xff]
        %v1036 = vpack.c.bf16 %v1032, %v1032
        %v1037 = vld [vmem:[%s3] sm:$0xf]
        %v1038 = vld [vmem:[%s3 + $0x4] sm:$0xf]
        %v1039 = vld [vmem:[%s3 + $0x8] sm:$0xf]
        %v1040 = vld [vmem:[%s3 + $0xc] sm:$0xf]
        %v1045 = vunpack.c.l.b16 %v1037
        %v1046 = vunpack.c.l.b16 %v1038
        %v1047 = vunpack.c.l.b16 %v1039
        %v1048 = vunpack.c.l.b16 %v1040
        %v1049 = vpack.c.b16 %v1046, %v1045
        %v1050 = vpack.c.b16 %v1048, %v1047
        %v1054 = vsel %vm634, %v1036, 0
        %1056 = vmatpush.bf16.msra.mxu0 0
        %1057 = vmatpush.bf16.msra.mxu0 0
        %1058 = vmatpush.bf16.msra.mxu0 0
        %1059 = vmatpush.bf16.msra.mxu0 0
        %1060 = vmatpush.bf16.msra.mxu0 0
        %1061 = vmatpush.bf16.msra.mxu0 0
        %1062 = vmatpush.bf16.msra.mxu0 %v1050
        %1063 = vmatpush.bf16.msra.mxu0 %v1049
        %1064 = vmatmul.bf16.gmra.mxu0 %v1054
        %v1065 = vpop.f32.mrf.mxu0
        %v1066 = vadd.f32 0.0, %v1065
        %v1067 = vpop.f32.mrf.mxu0
        %1068 = vdwg.mxu0
        %v1069 = vadd.f32 %v1035, %v1066
        %v1070 = vtanh.pop %v1069
        %1071 = vst.msk [vmem:[#allocation6 + $0x58] sm:$0xff] %vm634, %v1070
        %s1072 = scalar_lea.vmem %s569, 96
        %v1073 = vld [vmem:[%s1072] sm:$0xff]
        %v1074 = vpack.c.bf16 %v1070, %v1070
        %v1075 = vld [vmem:[%s3] sm:$0xf]
        %v1076 = vld [vmem:[%s3 + $0x4] sm:$0xf]
        %v1077 = vld [vmem:[%s3 + $0x8] sm:$0xf]
        %v1078 = vld [vmem:[%s3 + $0xc] sm:$0xf]
        %v1083 = vunpack.c.l.b16 %v1075
        %v1084 = vunpack.c.l.b16 %v1076
        %v1085 = vunpack.c.l.b16 %v1077
        %v1086 = vunpack.c.l.b16 %v1078
        %v1087 = vpack.c.b16 %v1084, %v1083
        %v1088 = vpack.c.b16 %v1086, %v1085
        %v1092 = vsel %vm634, %v1074, 0
        %1094 = vmatpush.bf16.msra.mxu0 0
        %1095 = vmatpush.bf16.msra.mxu0 0
        %1096 = vmatpush.bf16.msra.mxu0 0
        %1097 = vmatpush.bf16.msra.mxu0 0
        %1098 = vmatpush.bf16.msra.mxu0 0
        %1099 = vmatpush.bf16.msra.mxu0 0
        %1100 = vmatpush.bf16.msra.mxu0 %v1088
        %1101 = vmatpush.bf16.msra.mxu0 %v1087
        %1102 = vmatmul.bf16.gmra.mxu0 %v1092
        %v1103 = vpop.f32.mrf.mxu0
        %v1104 = vadd.f32 0.0, %v1103
        %v1105 = vpop.f32.mrf.mxu0
        %1106 = vdwg.mxu0
        %v1107 = vadd.f32 %v1073, %v1104
        %v1108 = vtanh.pop %v1107
        %1109 = vst.msk [vmem:[#allocation6 + $0x60] sm:$0xff] %vm634, %v1108
        %s1110 = scalar_lea.vmem %s569, 104
        %v1111 = vld [vmem:[%s1110] sm:$0xff]
        %v1112 = vpack.c.bf16 %v1108, %v1108
        %v1113 = vld [vmem:[%s3] sm:$0xf]
        %v1114 = vld [vmem:[%s3 + $0x4] sm:$0xf]
        %v1115 = vld [vmem:[%s3 + $0x8] sm:$0xf]
        %v1116 = vld [vmem:[%s3 + $0xc] sm:$0xf]
        %v1121 = vunpack.c.l.b16 %v1113
        %v1122 = vunpack.c.l.b16 %v1114
        %v1123 = vunpack.c.l.b16 %v1115
        %v1124 = vunpack.c.l.b16 %v1116
        %v1125 = vpack.c.b16 %v1122, %v1121
        %v1126 = vpack.c.b16 %v1124, %v1123
        %v1130 = vsel %vm634, %v1112, 0
        %1132 = vmatpush.bf16.msra.mxu0 0
        %1133 = vmatpush.bf16.msra.mxu0 0
        %1134 = vmatpush.bf16.msra.mxu0 0
        %1135 = vmatpush.bf16.msra.mxu0 0
        %1136 = vmatpush.bf16.msra.mxu0 0
        %1137 = vmatpush.bf16.msra.mxu0 0
        %1138 = vmatpush.bf16.msra.mxu0 %v1126
        %1139 = vmatpush.bf16.msra.mxu0 %v1125
        %1140 = vmatmul.bf16.gmra.mxu0 %v1130
        %v1141 = vpop.f32.mrf.mxu0
        %v1142 = vadd.f32 0.0, %v1141
        %v1143 = vpop.f32.mrf.mxu0
        %1144 = vdwg.mxu0
        %v1145 = vadd.f32 %v1111, %v1142
        %v1146 = vtanh.pop %v1145
        %1147 = vst.msk [vmem:[#allocation6 + $0x68] sm:$0xff] %vm634, %v1146
        %1148 = vst.msk [vmem:[#allocation2] sm:$0xff] %vm634, %v1146
        %v1149 = vld [vmem:[#allocation6] sm:$0xff]
        %v1150 = vld [vmem:[#allocation6 + $0x8] sm:$0xff]
        %v1151 = vld [vmem:[#allocation6 + $0x10] sm:$0xff]
        %v1152 = vld [vmem:[#allocation6 + $0x18] sm:$0xff]
        %v1153 = vld [vmem:[#allocation6 + $0x20] sm:$0xff]
        %v1154 = vld [vmem:[#allocation6 + $0x28] sm:$0xff]
        %v1155 = vld [vmem:[#allocation6 + $0x30] sm:$0xff]
        %v1156 = vld [vmem:[#allocation6 + $0x38] sm:$0xff]
        %v1157 = vld [vmem:[#allocation6 + $0x40] sm:$0xff]
        %v1158 = vld [vmem:[#allocation6 + $0x48] sm:$0xff]
        %v1159 = vld [vmem:[#allocation6 + $0x50] sm:$0xff]
        %v1160 = vld [vmem:[#allocation6 + $0x58] sm:$0xff]
        %v1161 = vld [vmem:[#allocation6 + $0x60] sm:$0xff]
        %v1162 = vld [vmem:[#allocation6 + $0x68] sm:$0xff]
        %v1163 = vpack.c.bf16 %v1150, %v1149
        %v1164 = vpack.c.bf16 %v1152, %v1151
        %v1165 = vpack.c.bf16 %v1154, %v1153
        %v1166 = vpack.c.bf16 %v1156, %v1155
        %v1167 = vpack.c.bf16 %v1158, %v1157
        %v1168 = vpack.c.bf16 %v1160, %v1159
        %v1169 = vpack.c.bf16 %v1162, %v1161
        %v1170 = vld [vmem:[%s4] sm:$0xf]
        %v1171 = vld [vmem:[%s4 + $0x4] sm:$0xf]
        %v1172 = vld [vmem:[%s4 + $0x8] sm:$0xf]
        %v1173 = vld [vmem:[%s4 + $0xc] sm:$0xf]
        %v1174 = vld [vmem:[%s6] sm:$0x1]
        %v1176 = vperm.slane %v1174, 0
        %v1182 = vunpack.c.l.b16 %v1170
        %v1183 = vunpack.c.l.b16 %v1171
        %v1184 = vunpack.c.l.b16 %v1172
        %v1185 = vunpack.c.l.b16 %v1173
        %v1186 = vpack.c.b16 %v1183, %v1182
        %v1187 = vpack.c.b16 %v1185, %v1184
        %v1191 = vsel %vm634, %v1163, 0
        %v1194 = vsel %vm634, %v1164, 0
        %v1197 = vsel %vm634, %v1165, 0
        %v1200 = vsel %vm634, %v1166, 0
        %v1203 = vsel %vm634, %v1167, 0
        %v1206 = vsel %vm634, %v1168, 0
        %v1209 = vsel %vm634, %v1169, 0
        %1211 = vmatpush.bf16.msra.mxu0 0
        %1212 = vmatpush.bf16.msra.mxu0 0
        %1213 = vmatpush.bf16.msra.mxu0 0
        %1214 = vmatpush.bf16.msra.mxu0 0
        %1215 = vmatpush.bf16.msra.mxu0 0
        %1216 = vmatpush.bf16.msra.mxu0 0
        %1217 = vmatpush.bf16.msra.mxu0 %v1187
        %1218 = vmatpush.bf16.msra.mxu0 %v1186
        %1219 = vmatmul.bf16.gmra.mxu0 %v1191
        %v1220 = vpop.f32.mrf.mxu0
        %v1221 = vadd.f32 %v1176, %v1220
        %v1222 = vpop.f32.mrf.mxu0
        %v1223 = vadd.f32 %v1176, %v1222
        %1224 = vmatmul.bf16.gmra.mxu0 %v1194
        %v1225 = vpop.f32.mrf.mxu0
        %v1226 = vadd.f32 %v1176, %v1225
        %v1227 = vpop.f32.mrf.mxu0
        %v1228 = vadd.f32 %v1176, %v1227
        %1229 = vmatmul.bf16.gmra.mxu0 %v1197
        %v1230 = vpop.f32.mrf.mxu0
        %v1231 = vadd.f32 %v1176, %v1230
        %v1232 = vpop.f32.mrf.mxu0
        %v1233 = vadd.f32 %v1176, %v1232
        %1234 = vmatmul.bf16.gmra.mxu0 %v1200
        %v1235 = vpop.f32.mrf.mxu0
        %v1236 = vadd.f32 %v1176, %v1235
        %v1237 = vpop.f32.mrf.mxu0
        %v1238 = vadd.f32 %v1176, %v1237
        %1239 = vmatmul.bf16.gmra.mxu0 %v1203
        %v1240 = vpop.f32.mrf.mxu0
        %v1241 = vadd.f32 %v1176, %v1240
        %v1242 = vpop.f32.mrf.mxu0
        %v1243 = vadd.f32 %v1176, %v1242
        %1244 = vmatmul.bf16.gmra.mxu0 %v1206
        %v1245 = vpop.f32.mrf.mxu0
        %v1246 = vadd.f32 %v1176, %v1245
        %v1247 = vpop.f32.mrf.mxu0
        %v1248 = vadd.f32 %v1176, %v1247
        %1249 = vmatmul.bf16.gmra.mxu0 %v1209
        %v1250 = vpop.f32.mrf.mxu0
        %v1251 = vadd.f32 %v1176, %v1250
        %v1252 = vpop.f32.mrf.mxu0
        %v1253 = vadd.f32 %v1176, %v1252
        %1254 = vdwg.mxu0
        %v1255 = vld [vmem:[#allocation3] sm:$0xff]
        %v1256 = vld [vmem:[#allocation3 + $0x8] sm:$0xff]
        %v1257 = vpack.c.bf16 %v1256, %v1255
        %v1258 = vld [vmem:[%s5] sm:$0xf]
        %v1259 = vld [vmem:[%s5 + $0x4] sm:$0xf]
        %v1260 = vld [vmem:[%s5 + $0x8] sm:$0xf]
        %v1261 = vld [vmem:[%s5 + $0xc] sm:$0xf]
        %v1266 = vunpack.c.l.b16 %v1258
        %v1267 = vunpack.c.l.b16 %v1259
        %v1268 = vunpack.c.l.b16 %v1260
        %v1269 = vunpack.c.l.b16 %v1261
        %v1270 = vpack.c.b16 %v1267, %v1266
        %v1271 = vpack.c.b16 %v1269, %v1268
        %v1275 = vsel %vm634, %v1257, 0
        %1277 = vmatpush.bf16.msra.mxu0 0
        %1278 = vmatpush.bf16.msra.mxu0 0
        %1279 = vmatpush.bf16.msra.mxu0 0
        %1280 = vmatpush.bf16.msra.mxu0 0
        %1281 = vmatpush.bf16.msra.mxu0 0
        %1282 = vmatpush.bf16.msra.mxu0 0
        %1283 = vmatpush.bf16.msra.mxu0 %v1271
        %1284 = vmatpush.bf16.msra.mxu0 %v1270
        %1285 = vmatmul.bf16.gmra.mxu0 %v1275
        %v1286 = vpop.f32.mrf.mxu0
        %v1287 = vadd.f32 0.0, %v1286
        %v1288 = vpop.f32.mrf.mxu0
        %v1289 = vadd.f32 0.0, %v1288
        %1290 = vdwg.mxu0
        %v1291 = vadd.f32 %v1221, %v1287
        %v1292 = vadd.f32 %v1223, %v1289
        %v1293 = vtanh.pop %v1291
        %v1294 = vtanh.pop %v1292
        %1295 = vst.msk [vmem:[#allocation7] sm:$0xff] %vm634, %v1293
        %1296 = vst.msk [vmem:[#allocation7 + $0x8] sm:$0xff] %vm634, %v1294
        %v1297 = vpack.c.bf16 %v1294, %v1293
        %v1298 = vld [vmem:[%s5] sm:$0xf]
        %v1299 = vld [vmem:[%s5 + $0x4] sm:$0xf]
        %v1300 = vld [vmem:[%s5 + $0x8] sm:$0xf]
        %v1301 = vld [vmem:[%s5 + $0xc] sm:$0xf]
        %v1306 = vunpack.c.l.b16 %v1298
        %v1307 = vunpack.c.l.b16 %v1299
        %v1308 = vunpack.c.l.b16 %v1300
        %v1309 = vunpack.c.l.b16 %v1301
        %v1310 = vpack.c.b16 %v1307, %v1306
        %v1311 = vpack.c.b16 %v1309, %v1308
        %v1315 = vsel %vm634, %v1297, 0
        %1317 = vmatpush.bf16.msra.mxu0 0
        %1318 = vmatpush.bf16.msra.mxu0 0
        %1319 = vmatpush.bf16.msra.mxu0 0
        %1320 = vmatpush.bf16.msra.mxu0 0
        %1321 = vmatpush.bf16.msra.mxu0 0
        %1322 = vmatpush.bf16.msra.mxu0 0
        %1323 = vmatpush.bf16.msra.mxu0 %v1311
        %1324 = vmatpush.bf16.msra.mxu0 %v1310
        %1325 = vmatmul.bf16.gmra.mxu0 %v1315
        %v1326 = vpop.f32.mrf.mxu0
        %v1327 = vadd.f32 0.0, %v1326
        %v1328 = vpop.f32.mrf.mxu0
        %v1329 = vadd.f32 0.0, %v1328
        %1330 = vdwg.mxu0
        %v1331 = vadd.f32 %v1226, %v1327
        %v1332 = vadd.f32 %v1228, %v1329
        %v1333 = vtanh.pop %v1331
        %v1334 = vtanh.pop %v1332
        %1335 = vst.msk [vmem:[#allocation7 + $0x10] sm:$0xff] %vm634, %v1333
        %1336 = vst.msk [vmem:[#allocation7 + $0x18] sm:$0xff] %vm634, %v1334
        %v1337 = vpack.c.bf16 %v1334, %v1333
        %v1338 = vld [vmem:[%s5] sm:$0xf]
        %v1339 = vld [vmem:[%s5 + $0x4] sm:$0xf]
        %v1340 = vld [vmem:[%s5 + $0x8] sm:$0xf]
        %v1341 = vld [vmem:[%s5 + $0xc] sm:$0xf]
        %v1346 = vunpack.c.l.b16 %v1338
        %v1347 = vunpack.c.l.b16 %v1339
        %v1348 = vunpack.c.l.b16 %v1340
        %v1349 = vunpack.c.l.b16 %v1341
        %v1350 = vpack.c.b16 %v1347, %v1346
        %v1351 = vpack.c.b16 %v1349, %v1348
        %v1355 = vsel %vm634, %v1337, 0
        %1357 = vmatpush.bf16.msra.mxu0 0
        %1358 = vmatpush.bf16.msra.mxu0 0
        %1359 = vmatpush.bf16.msra.mxu0 0
        %1360 = vmatpush.bf16.msra.mxu0 0
        %1361 = vmatpush.bf16.msra.mxu0 0
        %1362 = vmatpush.bf16.msra.mxu0 0
        %1363 = vmatpush.bf16.msra.mxu0 %v1351
        %1364 = vmatpush.bf16.msra.mxu0 %v1350
        %1365 = vmatmul.bf16.gmra.mxu0 %v1355
        %v1366 = vpop.f32.mrf.mxu0
        %v1367 = vadd.f32 0.0, %v1366
        %v1368 = vpop.f32.mrf.mxu0
        %v1369 = vadd.f32 0.0, %v1368
        %1370 = vdwg.mxu0
        %v1371 = vadd.f32 %v1231, %v1367
        %v1372 = vadd.f32 %v1233, %v1369
        %v1373 = vtanh.pop %v1371
        %v1374 = vtanh.pop %v1372
        %1375 = vst.msk [vmem:[#allocation7 + $0x20] sm:$0xff] %vm634, %v1373
        %1376 = vst.msk [vmem:[#allocation7 + $0x28] sm:$0xff] %vm634, %v1374
        %v1377 = vpack.c.bf16 %v1374, %v1373
        %v1378 = vld [vmem:[%s5] sm:$0xf]
        %v1379 = vld [vmem:[%s5 + $0x4] sm:$0xf]
        %v1380 = vld [vmem:[%s5 + $0x8] sm:$0xf]
        %v1381 = vld [vmem:[%s5 + $0xc] sm:$0xf]
        %v1386 = vunpack.c.l.b16 %v1378
        %v1387 = vunpack.c.l.b16 %v1379
        %v1388 = vunpack.c.l.b16 %v1380
        %v1389 = vunpack.c.l.b16 %v1381
        %v1390 = vpack.c.b16 %v1387, %v1386
        %v1391 = vpack.c.b16 %v1389, %v1388
        %v1395 = vsel %vm634, %v1377, 0
        %1397 = vmatpush.bf16.msra.mxu0 0
        %1398 = vmatpush.bf16.msra.mxu0 0
        %1399 = vmatpush.bf16.msra.mxu0 0
        %1400 = vmatpush.bf16.msra.mxu0 0
        %1401 = vmatpush.bf16.msra.mxu0 0
        %1402 = vmatpush.bf16.msra.mxu0 0
        %1403 = vmatpush.bf16.msra.mxu0 %v1391
        %1404 = vmatpush.bf16.msra.mxu0 %v1390
        %1405 = vmatmul.bf16.gmra.mxu0 %v1395
        %v1406 = vpop.f32.mrf.mxu0
        %v1407 = vadd.f32 0.0, %v1406
        %v1408 = vpop.f32.mrf.mxu0
        %v1409 = vadd.f32 0.0, %v1408
        %1410 = vdwg.mxu0
        %v1411 = vadd.f32 %v1236, %v1407
        %v1412 = vadd.f32 %v1238, %v1409
        %v1413 = vtanh.pop %v1411
        %v1414 = vtanh.pop %v1412
        %1415 = vst.msk [vmem:[#allocation7 + $0x30] sm:$0xff] %vm634, %v1413
        %1416 = vst.msk [vmem:[#allocation7 + $0x38] sm:$0xff] %vm634, %v1414
        %v1417 = vpack.c.bf16 %v1414, %v1413
        %v1418 = vld [vmem:[%s5] sm:$0xf]
        %v1419 = vld [vmem:[%s5 + $0x4] sm:$0xf]
        %v1420 = vld [vmem:[%s5 + $0x8] sm:$0xf]
        %v1421 = vld [vmem:[%s5 + $0xc] sm:$0xf]
        %v1426 = vunpack.c.l.b16 %v1418
        %v1427 = vunpack.c.l.b16 %v1419
        %v1428 = vunpack.c.l.b16 %v1420
        %v1429 = vunpack.c.l.b16 %v1421
        %v1430 = vpack.c.b16 %v1427, %v1426
        %v1431 = vpack.c.b16 %v1429, %v1428
        %v1435 = vsel %vm634, %v1417, 0
        %1437 = vmatpush.bf16.msra.mxu0 0
        %1438 = vmatpush.bf16.msra.mxu0 0
        %1439 = vmatpush.bf16.msra.mxu0 0
        %1440 = vmatpush.bf16.msra.mxu0 0
        %1441 = vmatpush.bf16.msra.mxu0 0
        %1442 = vmatpush.bf16.msra.mxu0 0
        %1443 = vmatpush.bf16.msra.mxu0 %v1431
        %1444 = vmatpush.bf16.msra.mxu0 %v1430
        %1445 = vmatmul.bf16.gmra.mxu0 %v1435
        %v1446 = vpop.f32.mrf.mxu0
        %v1447 = vadd.f32 0.0, %v1446
        %v1448 = vpop.f32.mrf.mxu0
        %v1449 = vadd.f32 0.0, %v1448
        %1450 = vdwg.mxu0
        %v1451 = vadd.f32 %v1241, %v1447
        %v1452 = vadd.f32 %v1243, %v1449
        %v1453 = vtanh.pop %v1451
        %v1454 = vtanh.pop %v1452
        %1455 = vst.msk [vmem:[#allocation7 + $0x40] sm:$0xff] %vm634, %v1453
        %1456 = vst.msk [vmem:[#allocation7 + $0x48] sm:$0xff] %vm634, %v1454
        %v1457 = vpack.c.bf16 %v1454, %v1453
        %v1458 = vld [vmem:[%s5] sm:$0xf]
        %v1459 = vld [vmem:[%s5 + $0x4] sm:$0xf]
        %v1460 = vld [vmem:[%s5 + $0x8] sm:$0xf]
        %v1461 = vld [vmem:[%s5 + $0xc] sm:$0xf]
        %v1466 = vunpack.c.l.b16 %v1458
        %v1467 = vunpack.c.l.b16 %v1459
        %v1468 = vunpack.c.l.b16 %v1460
        %v1469 = vunpack.c.l.b16 %v1461
        %v1470 = vpack.c.b16 %v1467, %v1466
        %v1471 = vpack.c.b16 %v1469, %v1468
        %v1475 = vsel %vm634, %v1457, 0
        %1477 = vmatpush.bf16.msra.mxu0 0
        %1478 = vmatpush.bf16.msra.mxu0 0
        %1479 = vmatpush.bf16.msra.mxu0 0
        %1480 = vmatpush.bf16.msra.mxu0 0
        %1481 = vmatpush.bf16.msra.mxu0 0
        %1482 = vmatpush.bf16.msra.mxu0 0
        %1483 = vmatpush.bf16.msra.mxu0 %v1471
        %1484 = vmatpush.bf16.msra.mxu0 %v1470
        %1485 = vmatmul.bf16.gmra.mxu0 %v1475
        %v1486 = vpop.f32.mrf.mxu0
        %v1487 = vadd.f32 0.0, %v1486
        %v1488 = vpop.f32.mrf.mxu0
        %v1489 = vadd.f32 0.0, %v1488
        %1490 = vdwg.mxu0
        %v1491 = vadd.f32 %v1246, %v1487
        %v1492 = vadd.f32 %v1248, %v1489
        %v1493 = vtanh.pop %v1491
        %v1494 = vtanh.pop %v1492
        %1495 = vst.msk [vmem:[#allocation7 + $0x50] sm:$0xff] %vm634, %v1493
        %1496 = vst.msk [vmem:[#allocation7 + $0x58] sm:$0xff] %vm634, %v1494
        %v1497 = vpack.c.bf16 %v1494, %v1493
        %v1498 = vld [vmem:[%s5] sm:$0xf]
        %v1499 = vld [vmem:[%s5 + $0x4] sm:$0xf]
        %v1500 = vld [vmem:[%s5 + $0x8] sm:$0xf]
        %v1501 = vld [vmem:[%s5 + $0xc] sm:$0xf]
        %v1506 = vunpack.c.l.b16 %v1498
        %v1507 = vunpack.c.l.b16 %v1499
        %v1508 = vunpack.c.l.b16 %v1500
        %v1509 = vunpack.c.l.b16 %v1501
        %v1510 = vpack.c.b16 %v1507, %v1506
        %v1511 = vpack.c.b16 %v1509, %v1508
        %v1515 = vsel %vm634, %v1497, 0
        %1517 = vmatpush.bf16.msra.mxu0 0
        %1518 = vmatpush.bf16.msra.mxu0 0
        %1519 = vmatpush.bf16.msra.mxu0 0
        %1520 = vmatpush.bf16.msra.mxu0 0
        %1521 = vmatpush.bf16.msra.mxu0 0
        %1522 = vmatpush.bf16.msra.mxu0 0
        %1523 = vmatpush.bf16.msra.mxu0 %v1511
        %1524 = vmatpush.bf16.msra.mxu0 %v1510
        %1525 = vmatmul.bf16.gmra.mxu0 %v1515
        %v1526 = vpop.f32.mrf.mxu0
        %v1527 = vadd.f32 0.0, %v1526
        %v1528 = vpop.f32.mrf.mxu0
        %v1529 = vadd.f32 0.0, %v1528
        %1530 = vdwg.mxu0
        %v1531 = vadd.f32 %v1251, %v1527
        %v1532 = vadd.f32 %v1253, %v1529
        %v1533 = vtanh.pop %v1531
        %v1534 = vtanh.pop %v1532
        %1535 = vst.msk [vmem:[#allocation7 + $0x60] sm:$0xff] %vm634, %v1533
        %1536 = vst.msk [vmem:[#allocation7 + $0x68] sm:$0xff] %vm634, %v1534
        %1537 = vst.msk [vmem:[#allocation3] sm:$0xff] %vm634, %v1533
        %1538 = vst.msk [vmem:[#allocation3 + $0x8] sm:$0xff] %vm634, %v1534
        %v1539 = vld [vmem:[#allocation7] sm:$0xff]
        %v1540 = vld [vmem:[#allocation7 + $0x8] sm:$0xff]
        %v1541 = vld [vmem:[#allocation7 + $0x10] sm:$0xff]
        %v1542 = vld [vmem:[#allocation7 + $0x18] sm:$0xff]
        %v1543 = vld [vmem:[#allocation7 + $0x20] sm:$0xff]
        %v1544 = vld [vmem:[#allocation7 + $0x28] sm:$0xff]
        %v1545 = vld [vmem:[#allocation7 + $0x30] sm:$0xff]
        %v1546 = vld [vmem:[#allocation7 + $0x38] sm:$0xff]
        %v1547 = vld [vmem:[#allocation7 + $0x40] sm:$0xff]
        %v1548 = vld [vmem:[#allocation7 + $0x48] sm:$0xff]
        %v1549 = vld [vmem:[#allocation7 + $0x50] sm:$0xff]
        %v1550 = vld [vmem:[#allocation7 + $0x58] sm:$0xff]
        %v1551 = vld [vmem:[#allocation7 + $0x60] sm:$0xff]
        %v1552 = vld [vmem:[#allocation7 + $0x68] sm:$0xff]
        %v1553 = vpack.c.bf16 %v1540, %v1539
        %v1554 = vpack.c.bf16 %v1542, %v1541
        %v1555 = vpack.c.bf16 %v1544, %v1543
        %v1556 = vpack.c.bf16 %v1546, %v1545
        %v1557 = vpack.c.bf16 %v1548, %v1547
        %v1558 = vpack.c.bf16 %v1550, %v1549
        %v1559 = vpack.c.bf16 %v1552, %v1551
        %v1560 = vld [vmem:[%s7] sm:$0xf]
        %v1561 = vld [vmem:[%s7 + $0x4] sm:$0xf]
        %v1562 = vld [vmem:[%s7 + $0x8] sm:$0xf]
        %v1563 = vld [vmem:[%s7 + $0xc] sm:$0xf]
        %v1564 = vld [vmem:[%s9] sm:$0x1]
        %v1566 = vperm.slane %v1564, 0
        %v1572 = vunpack.c.l.b16 %v1560
        %v1573 = vunpack.c.l.b16 %v1561
        %v1574 = vunpack.c.l.b16 %v1562
        %v1575 = vunpack.c.l.b16 %v1563
        %v1576 = vpack.c.b16 %v1573, %v1572
        %v1577 = vpack.c.b16 %v1575, %v1574
        %v1581 = vsel %vm634, %v1553, 0
        %v1584 = vsel %vm634, %v1554, 0
        %v1587 = vsel %vm634, %v1555, 0
        %v1590 = vsel %vm634, %v1556, 0
        %v1593 = vsel %vm634, %v1557, 0
        %v1596 = vsel %vm634, %v1558, 0
        %v1599 = vsel %vm634, %v1559, 0
        %1601 = vmatpush.bf16.msra.mxu0 0
        %1602 = vmatpush.bf16.msra.mxu0 0
        %1603 = vmatpush.bf16.msra.mxu0 0
        %1604 = vmatpush.bf16.msra.mxu0 0
        %1605 = vmatpush.bf16.msra.mxu0 0
        %1606 = vmatpush.bf16.msra.mxu0 0
        %1607 = vmatpush.bf16.msra.mxu0 %v1577
        %1608 = vmatpush.bf16.msra.mxu0 %v1576
        %1609 = vmatmul.bf16.gmra.mxu0 %v1581
        %v1610 = vpop.f32.mrf.mxu0
        %v1611 = vadd.f32 %v1566, %v1610
        %v1612 = vpop.f32.mrf.mxu0
        %v1613 = vadd.f32 %v1566, %v1612
        %1614 = vmatmul.bf16.gmra.mxu0 %v1584
        %v1615 = vpop.f32.mrf.mxu0
        %v1616 = vadd.f32 %v1566, %v1615
        %v1617 = vpop.f32.mrf.mxu0
        %v1618 = vadd.f32 %v1566, %v1617
        %1619 = vmatmul.bf16.gmra.mxu0 %v1587
        %v1620 = vpop.f32.mrf.mxu0
        %v1621 = vadd.f32 %v1566, %v1620
        %v1622 = vpop.f32.mrf.mxu0
        %v1623 = vadd.f32 %v1566, %v1622
        %1624 = vmatmul.bf16.gmra.mxu0 %v1590
        %v1625 = vpop.f32.mrf.mxu0
        %v1626 = vadd.f32 %v1566, %v1625
        %v1627 = vpop.f32.mrf.mxu0
        %v1628 = vadd.f32 %v1566, %v1627
        %1629 = vmatmul.bf16.gmra.mxu0 %v1593
        %v1630 = vpop.f32.mrf.mxu0
        %v1631 = vadd.f32 %v1566, %v1630
        %v1632 = vpop.f32.mrf.mxu0
        %v1633 = vadd.f32 %v1566, %v1632
        %1634 = vmatmul.bf16.gmra.mxu0 %v1596
        %v1635 = vpop.f32.mrf.mxu0
        %v1636 = vadd.f32 %v1566, %v1635
        %v1637 = vpop.f32.mrf.mxu0
        %v1638 = vadd.f32 %v1566, %v1637
        %1639 = vmatmul.bf16.gmra.mxu0 %v1599
        %v1640 = vpop.f32.mrf.mxu0
        %v1641 = vadd.f32 %v1566, %v1640
        %v1642 = vpop.f32.mrf.mxu0
        %v1643 = vadd.f32 %v1566, %v1642
        %1644 = vdwg.mxu0
        %v1645 = vld [vmem:[#allocation4] sm:$0xff]
        %v1646 = vld [vmem:[#allocation4 + $0x8] sm:$0xff]
        %v1647 = vld [vmem:[#allocation4 + $0x10] sm:$0xff]
        %v1648 = vld [vmem:[#allocation4 + $0x18] sm:$0xff]
        %v1649 = vld [vmem:[#allocation4 + $0x20] sm:$0xff]
        %v1650 = vld [vmem:[#allocation4 + $0x28] sm:$0xff]
        %v1651 = vld [vmem:[#allocation4 + $0x30] sm:$0xff]
        %v1652 = vpack.c.bf16 %v1646, %v1645
        %v1653 = vpack.c.bf16 %v1648, %v1647
        %v1654 = vpack.c.bf16 %v1650, %v1649
        %v1655 = vpack.c.bf16 %v1651, %v1651
        %v1656 = vld [vmem:[%s8] sm:$0xf]
        %v1657 = vld [vmem:[%s8 + $0x4] sm:$0xf]
        %v1658 = vld [vmem:[%s8 + $0x8] sm:$0xf]
        %v1659 = vld [vmem:[%s8 + $0xc] sm:$0xf]
        %v1664 = vunpack.c.l.b16 %v1656
        %v1665 = vunpack.c.l.b16 %v1657
        %v1666 = vunpack.c.l.b16 %v1658
        %v1667 = vunpack.c.l.b16 %v1659
        %v1668 = vpack.c.b16 %v1665, %v1664
        %v1669 = vpack.c.b16 %v1667, %v1666
        %v1673 = vsel %vm634, %v1652, 0
        %v1676 = vsel %vm634, %v1653, 0
        %v1679 = vsel %vm634, %v1654, 0
        %v1682 = vsel %vm634, %v1655, 0
        %1684 = vmatpush.bf16.msra.mxu0 0
        %1685 = vmatpush.bf16.msra.mxu0 0
        %1686 = vmatpush.bf16.msra.mxu0 0
        %1687 = vmatpush.bf16.msra.mxu0 0
        %1688 = vmatpush.bf16.msra.mxu0 0
        %1689 = vmatpush.bf16.msra.mxu0 0
        %1690 = vmatpush.bf16.msra.mxu0 %v1669
        %1691 = vmatpush.bf16.msra.mxu0 %v1668
        %1692 = vmatmul.bf16.gmra.mxu0 %v1673
        %v1693 = vpop.f32.mrf.mxu0
        %v1694 = vadd.f32 0.0, %v1693
        %v1695 = vpop.f32.mrf.mxu0
        %v1696 = vadd.f32 0.0, %v1695
        %1697 = vmatmul.bf16.gmra.mxu0 %v1676
        %v1698 = vpop.f32.mrf.mxu0
        %v1699 = vadd.f32 0.0, %v1698
        %v1700 = vpop.f32.mrf.mxu0
        %v1701 = vadd.f32 0.0, %v1700
        %1702 = vmatmul.bf16.gmra.mxu0 %v1679
        %v1703 = vpop.f32.mrf.mxu0
        %v1704 = vadd.f32 0.0, %v1703
        %v1705 = vpop.f32.mrf.mxu0
        %v1706 = vadd.f32 0.0, %v1705
        %1707 = vmatmul.bf16.gmra.mxu0 %v1682
        %v1708 = vpop.f32.mrf.mxu0
        %v1709 = vadd.f32 0.0, %v1708
        %v1710 = vpop.f32.mrf.mxu0
        %1711 = vdwg.mxu0
        %v1712 = vadd.f32 %v1611, %v1694
        %v1713 = vadd.f32 %v1613, %v1696
        %v1714 = vadd.f32 %v1616, %v1699
        %v1715 = vadd.f32 %v1618, %v1701
        %v1716 = vadd.f32 %v1621, %v1704
        %v1717 = vadd.f32 %v1623, %v1706
        %v1718 = vadd.f32 %v1626, %v1709
        %v1719 = vtanh.pop %v1712
        %v1720 = vtanh.pop %v1713
        %v1721 = vtanh.pop %v1714
        %v1722 = vtanh.pop %v1715
        %v1723 = vtanh.pop %v1716
        %v1724 = vtanh.pop %v1717
        %v1725 = vtanh.pop %v1718
        %1726 = vst.msk [vmem:[#allocation8] sm:$0xff] %vm634, %v1719
        %1727 = vst.msk [vmem:[#allocation8 + $0x8] sm:$0xff] %vm634, %v1720
        %1728 = vst.msk [vmem:[#allocation8 + $0x10] sm:$0xff] %vm634, %v1721
        %1729 = vst.msk [vmem:[#allocation8 + $0x18] sm:$0xff] %vm634, %v1722
        %1730 = vst.msk [vmem:[#allocation8 + $0x20] sm:$0xff] %vm634, %v1723
        %1731 = vst.msk [vmem:[#allocation8 + $0x28] sm:$0xff] %vm634, %v1724
        %1732 = vst.msk [vmem:[#allocation8 + $0x30] sm:$0xff] %vm634, %v1725
        %v1733 = vpack.c.bf16 %v1720, %v1719
        %v1734 = vpack.c.bf16 %v1722, %v1721
        %v1735 = vpack.c.bf16 %v1724, %v1723
        %v1736 = vpack.c.bf16 %v1725, %v1725
        %v1737 = vld [vmem:[%s8] sm:$0xf]
        %v1738 = vld [vmem:[%s8 + $0x4] sm:$0xf]
        %v1739 = vld [vmem:[%s8 + $0x8] sm:$0xf]
        %v1740 = vld [vmem:[%s8 + $0xc] sm:$0xf]
        %v1745 = vunpack.c.l.b16 %v1737
        %v1746 = vunpack.c.l.b16 %v1738
        %v1747 = vunpack.c.l.b16 %v1739
        %v1748 = vunpack.c.l.b16 %v1740
        %v1749 = vpack.c.b16 %v1746, %v1745
        %v1750 = vpack.c.b16 %v1748, %v1747
        %v1754 = vsel %vm634, %v1733, 0
        %v1757 = vsel %vm634, %v1734, 0
        %v1760 = vsel %vm634, %v1735, 0
        %v1763 = vsel %vm634, %v1736, 0
        %1765 = vmatpush.bf16.msra.mxu0 0
        %1766 = vmatpush.bf16.msra.mxu0 0
        %1767 = vmatpush.bf16.msra.mxu0 0
        %1768 = vmatpush.bf16.msra.mxu0 0
        %1769 = vmatpush.bf16.msra.mxu0 0
        %1770 = vmatpush.bf16.msra.mxu0 0
        %1771 = vmatpush.bf16.msra.mxu0 %v1750
        %1772 = vmatpush.bf16.msra.mxu0 %v1749
        %1773 = vmatmul.bf16.gmra.mxu0 %v1754
        %v1774 = vpop.f32.mrf.mxu0
        %v1775 = vadd.f32 0.0, %v1774
        %v1776 = vpop.f32.mrf.mxu0
        %v1777 = vadd.f32 0.0, %v1776
        %1778 = vmatmul.bf16.gmra.mxu0 %v1757
        %v1779 = vpop.f32.mrf.mxu0
        %v1780 = vadd.f32 0.0, %v1779
        %v1781 = vpop.f32.mrf.mxu0
        %v1782 = vadd.f32 0.0, %v1781
        %1783 = vmatmul.bf16.gmra.mxu0 %v1760
        %v1784 = vpop.f32.mrf.mxu0
        %v1785 = vadd.f32 0.0, %v1784
        %v1786 = vpop.f32.mrf.mxu0
        %v1787 = vadd.f32 0.0, %v1786
        %1788 = vmatmul.bf16.gmra.mxu0 %v1763
        %v1789 = vpop.f32.mrf.mxu0
        %v1790 = vadd.f32 0.0, %v1789
        %v1791 = vpop.f32.mrf.mxu0
        %1792 = vdwg.mxu0
        %v1793 = vadd.f32 %v1628, %v1775
        %v1794 = vadd.f32 %v1631, %v1777
        %v1795 = vadd.f32 %v1633, %v1780
        %v1796 = vadd.f32 %v1636, %v1782
        %v1797 = vadd.f32 %v1638, %v1785
        %v1798 = vadd.f32 %v1641, %v1787
        %v1799 = vadd.f32 %v1643, %v1790
        %v1800 = vtanh.pop %v1793
        %v1801 = vtanh.pop %v1794
        %v1802 = vtanh.pop %v1795
        %v1803 = vtanh.pop %v1796
        %v1804 = vtanh.pop %v1797
        %v1805 = vtanh.pop %v1798
        %v1806 = vtanh.pop %v1799
        %1807 = vst.msk [vmem:[#allocation8 + $0x38] sm:$0xff] %vm634, %v1800
        %1808 = vst.msk [vmem:[#allocation8 + $0x40] sm:$0xff] %vm634, %v1801
        %1809 = vst.msk [vmem:[#allocation8 + $0x48] sm:$0xff] %vm634, %v1802
        %1810 = vst.msk [vmem:[#allocation8 + $0x50] sm:$0xff] %vm634, %v1803
        %1811 = vst.msk [vmem:[#allocation8 + $0x58] sm:$0xff] %vm634, %v1804
        %1812 = vst.msk [vmem:[#allocation8 + $0x60] sm:$0xff] %vm634, %v1805
        %1813 = vst.msk [vmem:[#allocation8 + $0x68] sm:$0xff] %vm634, %v1806
        %1814 = vst.msk [vmem:[#allocation4] sm:$0xff] %vm634, %v1800
        %1815 = vst.msk [vmem:[#allocation4 + $0x8] sm:$0xff] %vm634, %v1801
        %1816 = vst.msk [vmem:[#allocation4 + $0x10] sm:$0xff] %vm634, %v1802
        %1817 = vst.msk [vmem:[#allocation4 + $0x18] sm:$0xff] %vm634, %v1803
        %1818 = vst.msk [vmem:[#allocation4 + $0x20] sm:$0xff] %vm634, %v1804
        %1819 = vst.msk [vmem:[#allocation4 + $0x28] sm:$0xff] %vm634, %v1805
        %1820 = vst.msk [vmem:[#allocation4 + $0x30] sm:$0xff] %vm634, %v1806
        %v1821 = vld [vmem:[#allocation6] sm:$0xff]
        %v1822 = vld [vmem:[#allocation6 + $0x8] sm:$0xff]
        %v1823 = vld [vmem:[#allocation6 + $0x10] sm:$0xff]
        %v1824 = vld [vmem:[#allocation6 + $0x18] sm:$0xff]
        %v1825 = vld [vmem:[#allocation6 + $0x20] sm:$0xff]
        %v1826 = vld [vmem:[#allocation6 + $0x28] sm:$0xff]
        %v1827 = vld [vmem:[#allocation6 + $0x30] sm:$0xff]
        %v1828 = vld [vmem:[#allocation6 + $0x38] sm:$0xff]
        %v1829 = vld [vmem:[#allocation6 + $0x40] sm:$0xff]
        %v1830 = vld [vmem:[#allocation6 + $0x48] sm:$0xff]
        %v1831 = vld [vmem:[#allocation6 + $0x50] sm:$0xff]
        %v1832 = vld [vmem:[#allocation6 + $0x58] sm:$0xff]
        %v1833 = vld [vmem:[#allocation6 + $0x60] sm:$0xff]
        %v1834 = vld [vmem:[#allocation6 + $0x68] sm:$0xff]
        %v1835 = vpack.c.bf16 %v1822, %v1821
        %v1836 = vpack.c.bf16 %v1824, %v1823
        %v1837 = vpack.c.bf16 %v1826, %v1825
        %v1838 = vpack.c.bf16 %v1828, %v1827
        %v1839 = vpack.c.bf16 %v1830, %v1829
        %v1840 = vpack.c.bf16 %v1832, %v1831
        %v1841 = vpack.c.bf16 %v1834, %v1833
        %v1842 = vld [vmem:[%s10] sm:$0xf]
        %v1843 = vld [vmem:[%s10 + $0x4] sm:$0xf]
        %v1844 = vld [vmem:[%s10 + $0x8] sm:$0xf]
        %v1845 = vld [vmem:[%s10 + $0xc] sm:$0xf]
        %v1846 = vld [vmem:[#allocation7] sm:$0xff]
        %v1847 = vld [vmem:[#allocation7 + $0x8] sm:$0xff]
        %v1848 = vld [vmem:[#allocation7 + $0x10] sm:$0xff]
        %v1849 = vld [vmem:[#allocation7 + $0x18] sm:$0xff]
        %v1850 = vld [vmem:[#allocation7 + $0x20] sm:$0xff]
        %v1851 = vld [vmem:[#allocation7 + $0x28] sm:$0xff]
        %v1852 = vld [vmem:[#allocation7 + $0x30] sm:$0xff]
        %v1853 = vld [vmem:[#allocation7 + $0x38] sm:$0xff]
        %v1854 = vld [vmem:[#allocation7 + $0x40] sm:$0xff]
        %v1855 = vld [vmem:[#allocation7 + $0x48] sm:$0xff]
        %v1856 = vld [vmem:[#allocation7 + $0x50] sm:$0xff]
        %v1857 = vld [vmem:[#allocation7 + $0x58] sm:$0xff]
        %v1858 = vld [vmem:[#allocation7 + $0x60] sm:$0xff]
        %v1859 = vld [vmem:[#allocation7 + $0x68] sm:$0xff]
        %v1860 = vpack.c.bf16 %v1847, %v1846
        %v1861 = vpack.c.bf16 %v1849, %v1848
        %v1862 = vpack.c.bf16 %v1851, %v1850
        %v1863 = vpack.c.bf16 %v1853, %v1852
        %v1864 = vpack.c.bf16 %v1855, %v1854
        %v1865 = vpack.c.bf16 %v1857, %v1856
        %v1866 = vpack.c.bf16 %v1859, %v1858
        %v1867 = vld [vmem:[%s11] sm:$0xf]
        %v1868 = vld [vmem:[%s11 + $0x4] sm:$0xf]
        %v1869 = vld [vmem:[%s11 + $0x8] sm:$0xf]
        %v1870 = vld [vmem:[%s11 + $0xc] sm:$0xf]
        %v1875 = vunpack.c.l.b16 %v1867
        %v1876 = vunpack.c.l.b16 %v1868
        %v1877 = vunpack.c.l.b16 %v1869
        %v1878 = vunpack.c.l.b16 %v1870
        %v1879 = vpack.c.b16 %v1876, %v1875
        %v1880 = vpack.c.b16 %v1878, %v1877
        %v1884 = vsel %vm634, %v1860, 0
        %v1887 = vsel %vm634, %v1861, 0
        %v1890 = vsel %vm634, %v1862, 0
        %v1893 = vsel %vm634, %v1863, 0
        %v1896 = vsel %vm634, %v1864, 0
        %v1899 = vsel %vm634, %v1865, 0
        %v1902 = vsel %vm634, %v1866, 0
        %1904 = vmatpush.bf16.msra.mxu0 0
        %1905 = vmatpush.bf16.msra.mxu0 0
        %1906 = vmatpush.bf16.msra.mxu0 0
        %1907 = vmatpush.bf16.msra.mxu0 0
        %1908 = vmatpush.bf16.msra.mxu0 0
        %1909 = vmatpush.bf16.msra.mxu0 0
        %1910 = vmatpush.bf16.msra.mxu0 %v1880
        %1911 = vmatpush.bf16.msra.mxu0 %v1879
        %1912 = vmatmul.bf16.gmra.mxu0 %v1884
        %v1913 = vpop.f32.mrf.mxu0
        %v1914 = vadd.f32 0.0, %v1913
        %v1915 = vpop.f32.mrf.mxu0
        %v1916 = vadd.f32 0.0, %v1915
        %1917 = vmatmul.bf16.gmra.mxu0 %v1887
        %v1918 = vpop.f32.mrf.mxu0
        %v1919 = vadd.f32 0.0, %v1918
        %v1920 = vpop.f32.mrf.mxu0
        %v1921 = vadd.f32 0.0, %v1920
        %1922 = vmatmul.bf16.gmra.mxu0 %v1890
        %v1923 = vpop.f32.mrf.mxu0
        %v1924 = vadd.f32 0.0, %v1923
        %v1925 = vpop.f32.mrf.mxu0
        %v1926 = vadd.f32 0.0, %v1925
        %1927 = vmatmul.bf16.gmra.mxu0 %v1893
        %v1928 = vpop.f32.mrf.mxu0
        %v1929 = vadd.f32 0.0, %v1928
        %v1930 = vpop.f32.mrf.mxu0
        %v1931 = vadd.f32 0.0, %v1930
        %1932 = vmatmul.bf16.gmra.mxu0 %v1896
        %v1933 = vpop.f32.mrf.mxu0
        %v1934 = vadd.f32 0.0, %v1933
        %v1935 = vpop.f32.mrf.mxu0
        %v1936 = vadd.f32 0.0, %v1935
        %1937 = vmatmul.bf16.gmra.mxu0 %v1899
        %v1938 = vpop.f32.mrf.mxu0
        %v1939 = vadd.f32 0.0, %v1938
        %v1940 = vpop.f32.mrf.mxu0
        %v1941 = vadd.f32 0.0, %v1940
        %1942 = vmatmul.bf16.gmra.mxu0 %v1902
        %v1943 = vpop.f32.mrf.mxu0
        %v1944 = vadd.f32 0.0, %v1943
        %v1945 = vpop.f32.mrf.mxu0
        %v1946 = vadd.f32 0.0, %v1945
        %1947 = vdwg.mxu0
        %v1952 = vunpack.c.l.b16 %v1842
        %v1953 = vunpack.c.l.b16 %v1843
        %v1954 = vunpack.c.l.b16 %v1844
        %v1955 = vunpack.c.l.b16 %v1845
        %v1956 = vpack.c.b16 %v1953, %v1952
        %v1957 = vpack.c.b16 %v1955, %v1954
        %v1961 = vsel %vm634, %v1835, 0
        %v1964 = vsel %vm634, %v1836, 0
        %v1967 = vsel %vm634, %v1837, 0
        %v1970 = vsel %vm634, %v1838, 0
        %v1973 = vsel %vm634, %v1839, 0
        %v1976 = vsel %vm634, %v1840, 0
        %v1979 = vsel %vm634, %v1841, 0
        %1981 = vmatpush.bf16.msra.mxu0 0
        %1982 = vmatpush.bf16.msra.mxu0 0
        %1983 = vmatpush.bf16.msra.mxu0 0
        %1984 = vmatpush.bf16.msra.mxu0 0
        %1985 = vmatpush.bf16.msra.mxu0 0
        %1986 = vmatpush.bf16.msra.mxu0 0
        %1987 = vmatpush.bf16.msra.mxu0 %v1957
        %1988 = vmatpush.bf16.msra.mxu0 %v1956
        %1989 = vmatmul.bf16.gmra.mxu0 %v1961
        %v1990 = vpop.f32.mrf.mxu0
        %v1991 = vadd.f32 %v1914, %v1990
        %v1992 = vpop.f32.mrf.mxu0
        %v1993 = vadd.f32 %v1916, %v1992
        %1994 = vmatmul.bf16.gmra.mxu0 %v1964
        %v1995 = vpop.f32.mrf.mxu0
        %v1996 = vadd.f32 %v1919, %v1995
        %v1997 = vpop.f32.mrf.mxu0
        %v1998 = vadd.f32 %v1921, %v1997
        %1999 = vmatmul.bf16.gmra.mxu0 %v1967
        %v2000 = vpop.f32.mrf.mxu0
        %v2001 = vadd.f32 %v1924, %v2000
        %v2002 = vpop.f32.mrf.mxu0
        %v2003 = vadd.f32 %v1926, %v2002
        %2004 = vmatmul.bf16.gmra.mxu0 %v1970
        %v2005 = vpop.f32.mrf.mxu0
        %v2006 = vadd.f32 %v1929, %v2005
        %v2007 = vpop.f32.mrf.mxu0
        %v2008 = vadd.f32 %v1931, %v2007
        %2009 = vmatmul.bf16.gmra.mxu0 %v1973
        %v2010 = vpop.f32.mrf.mxu0
        %v2011 = vadd.f32 %v1934, %v2010
        %v2012 = vpop.f32.mrf.mxu0
        %v2013 = vadd.f32 %v1936, %v2012
        %2014 = vmatmul.bf16.gmra.mxu0 %v1976
        %v2015 = vpop.f32.mrf.mxu0
        %v2016 = vadd.f32 %v1939, %v2015
        %v2017 = vpop.f32.mrf.mxu0
        %v2018 = vadd.f32 %v1941, %v2017
        %2019 = vmatmul.bf16.gmra.mxu0 %v1979
        %v2020 = vpop.f32.mrf.mxu0
        %v2021 = vadd.f32 %v1944, %v2020
        %v2022 = vpop.f32.mrf.mxu0
        %v2023 = vadd.f32 %v1946, %v2022
        %2024 = vdwg.mxu0
        %v2025 = vld [vmem:[#allocation8] sm:$0xff]
        %v2026 = vld [vmem:[#allocation8 + $0x8] sm:$0xff]
        %v2027 = vld [vmem:[#allocation8 + $0x10] sm:$0xff]
        %v2028 = vld [vmem:[#allocation8 + $0x18] sm:$0xff]
        %v2029 = vld [vmem:[#allocation8 + $0x20] sm:$0xff]
        %v2030 = vld [vmem:[#allocation8 + $0x28] sm:$0xff]
        %v2031 = vld [vmem:[#allocation8 + $0x30] sm:$0xff]
        %v2032 = vld [vmem:[#allocation8 + $0x38] sm:$0xff]
        %v2033 = vld [vmem:[#allocation8 + $0x40] sm:$0xff]
        %v2034 = vld [vmem:[#allocation8 + $0x48] sm:$0xff]
        %v2035 = vld [vmem:[#allocation8 + $0x50] sm:$0xff]
        %v2036 = vld [vmem:[#allocation8 + $0x58] sm:$0xff]
        %v2037 = vld [vmem:[#allocation8 + $0x60] sm:$0xff]
        %v2038 = vld [vmem:[#allocation8 + $0x68] sm:$0xff]
        %v2039 = vpack.c.bf16 %v2026, %v2025
        %v2040 = vpack.c.bf16 %v2028, %v2027
        %v2041 = vpack.c.bf16 %v2030, %v2029
        %v2042 = vpack.c.bf16 %v2032, %v2031
        %v2043 = vpack.c.bf16 %v2034, %v2033
        %v2044 = vpack.c.bf16 %v2036, %v2035
        %v2045 = vpack.c.bf16 %v2038, %v2037
        %v2046 = vld [vmem:[%s12] sm:$0xf]
        %v2047 = vld [vmem:[%s12 + $0x4] sm:$0xf]
        %v2048 = vld [vmem:[%s12 + $0x8] sm:$0xf]
        %v2049 = vld [vmem:[%s12 + $0xc] sm:$0xf]
        %v2054 = vunpack.c.l.b16 %v2046
        %v2055 = vunpack.c.l.b16 %v2047
        %v2056 = vunpack.c.l.b16 %v2048
        %v2057 = vunpack.c.l.b16 %v2049
        %v2058 = vpack.c.b16 %v2055, %v2054
        %v2059 = vpack.c.b16 %v2057, %v2056
        %v2063 = vsel %vm634, %v2039, 0
        %v2066 = vsel %vm634, %v2040, 0
        %v2069 = vsel %vm634, %v2041, 0
        %v2072 = vsel %vm634, %v2042, 0
        %v2075 = vsel %vm634, %v2043, 0
        %v2078 = vsel %vm634, %v2044, 0
        %v2081 = vsel %vm634, %v2045, 0
        %2083 = vmatpush.bf16.msra.mxu0 0
        %2084 = vmatpush.bf16.msra.mxu0 0
        %2085 = vmatpush.bf16.msra.mxu0 0
        %2086 = vmatpush.bf16.msra.mxu0 0
        %2087 = vmatpush.bf16.msra.mxu0 0
        %2088 = vmatpush.bf16.msra.mxu0 0
        %2089 = vmatpush.bf16.msra.mxu0 %v2059
        %2090 = vmatpush.bf16.msra.mxu0 %v2058
        %2091 = vmatmul.bf16.gmra.mxu0 %v2063
        %v2092 = vpop.f32.mrf.mxu0
        %v2093 = vadd.f32 0.0, %v2092
        %v2094 = vpop.f32.mrf.mxu0
        %v2095 = vadd.f32 0.0, %v2094
        %2096 = vmatmul.bf16.gmra.mxu0 %v2066
        %v2097 = vpop.f32.mrf.mxu0
        %v2098 = vadd.f32 0.0, %v2097
        %v2099 = vpop.f32.mrf.mxu0
        %v2100 = vadd.f32 0.0, %v2099
        %2101 = vmatmul.bf16.gmra.mxu0 %v2069
        %v2102 = vpop.f32.mrf.mxu0
        %v2103 = vadd.f32 0.0, %v2102
        %v2104 = vpop.f32.mrf.mxu0
        %v2105 = vadd.f32 0.0, %v2104
        %2106 = vmatmul.bf16.gmra.mxu0 %v2072
        %v2107 = vpop.f32.mrf.mxu0
        %v2108 = vadd.f32 0.0, %v2107
        %v2109 = vpop.f32.mrf.mxu0
        %v2110 = vadd.f32 0.0, %v2109
        %2111 = vmatmul.bf16.gmra.mxu0 %v2075
        %v2112 = vpop.f32.mrf.mxu0
        %v2113 = vadd.f32 0.0, %v2112
        %v2114 = vpop.f32.mrf.mxu0
        %v2115 = vadd.f32 0.0, %v2114
        %2116 = vmatmul.bf16.gmra.mxu0 %v2078
        %v2117 = vpop.f32.mrf.mxu0
        %v2118 = vadd.f32 0.0, %v2117
        %v2119 = vpop.f32.mrf.mxu0
        %v2120 = vadd.f32 0.0, %v2119
        %2121 = vmatmul.bf16.gmra.mxu0 %v2081
        %v2122 = vpop.f32.mrf.mxu0
        %v2123 = vadd.f32 0.0, %v2122
        %v2124 = vpop.f32.mrf.mxu0
        %v2125 = vadd.f32 0.0, %v2124
        %2126 = vdwg.mxu0
        %v2127 = vadd.f32 %v1991, %v2093
        %v2128 = vadd.f32 %v1993, %v2095
        %v2129 = vadd.f32 %v1996, %v2098
        %v2130 = vadd.f32 %v1998, %v2100
        %v2131 = vadd.f32 %v2001, %v2103
        %v2132 = vadd.f32 %v2003, %v2105
        %v2133 = vadd.f32 %v2006, %v2108
        %v2134 = vadd.f32 %v2008, %v2110
        %v2135 = vadd.f32 %v2011, %v2113
        %v2136 = vadd.f32 %v2013, %v2115
        %v2137 = vadd.f32 %v2016, %v2118
        %v2138 = vadd.f32 %v2018, %v2120
        %v2139 = vadd.f32 %v2021, %v2123
        %v2140 = vadd.f32 %v2023, %v2125
        %v2141 = vld [vmem:[%s13] sm:$0x1]
        %v2143 = vperm.slane %v2141, 0
        %v2145 = vadd.f32 %v2127, %v2143
        %v2146 = vadd.f32 %v2128, %v2143
        %v2147 = vadd.f32 %v2129, %v2143
        %v2148 = vadd.f32 %v2130, %v2143
        %v2149 = vadd.f32 %v2131, %v2143
        %v2150 = vadd.f32 %v2132, %v2143
        %v2151 = vadd.f32 %v2133, %v2143
        %v2152 = vadd.f32 %v2134, %v2143
        %v2153 = vadd.f32 %v2135, %v2143
        %v2154 = vadd.f32 %v2136, %v2143
        %v2155 = vadd.f32 %v2137, %v2143
        %v2156 = vadd.f32 %v2138, %v2143
        %v2157 = vadd.f32 %v2139, %v2143
        %v2158 = vadd.f32 %v2140, %v2143
        %v2159 = vtanh.pop %v2145
        %v2160 = vtanh.pop %v2146
        %v2161 = vtanh.pop %v2147
        %v2162 = vtanh.pop %v2148
        %v2163 = vtanh.pop %v2149
        %v2164 = vtanh.pop %v2150
        %v2165 = vtanh.pop %v2151
        %v2166 = vtanh.pop %v2152
        %v2167 = vtanh.pop %v2153
        %v2168 = vtanh.pop %v2154
        %v2169 = vtanh.pop %v2155
        %v2170 = vtanh.pop %v2156
        %v2171 = vtanh.pop %v2157
        %v2172 = vtanh.pop %v2158
        %2187 = vrot.lane.b32.xlu0 %v2159, 124
        %v2188 = vpop.permute.xlu0 %2187
        %2189 = vrot.lane.b32.xlu0 %v2160, 124
        %v2190 = vpop.permute.xlu0 %2189
        %2191 = vrot.lane.b32.xlu0 %v2161, 124
        %v2192 = vpop.permute.xlu0 %2191
        %2193 = vrot.lane.b32.xlu0 %v2162, 124
        %v2194 = vpop.permute.xlu0 %2193
        %2195 = vrot.lane.b32.xlu0 %v2163, 124
        %v2196 = vpop.permute.xlu0 %2195
        %2197 = vrot.lane.b32.xlu0 %v2164, 124
        %v2198 = vpop.permute.xlu0 %2197
        %2199 = vrot.lane.b32.xlu0 %v2165, 124
        %v2200 = vpop.permute.xlu0 %2199
        %2201 = vrot.lane.b32.xlu0 %v2166, 124
        %v2202 = vpop.permute.xlu0 %2201
        %2203 = vrot.lane.b32.xlu0 %v2167, 124
        %v2204 = vpop.permute.xlu0 %2203
        %2205 = vrot.lane.b32.xlu0 %v2168, 124
        %v2206 = vpop.permute.xlu0 %2205
        %2207 = vrot.lane.b32.xlu0 %v2169, 124
        %v2208 = vpop.permute.xlu0 %2207
        %2209 = vrot.lane.b32.xlu0 %v2170, 124
        %v2210 = vpop.permute.xlu0 %2209
        %2211 = vrot.lane.b32.xlu0 %v2171, 124
        %v2212 = vpop.permute.xlu0 %2211
        %2213 = vrot.lane.b32.xlu0 %v2172, 124
        %v2214 = vpop.permute.xlu0 %2213
        %v2229 = vadd.f32 %v2159, %v2188
        %v2230 = vadd.f32 %v2160, %v2190
        %v2231 = vadd.f32 %v2161, %v2192
        %v2232 = vadd.f32 %v2162, %v2194
        %v2233 = vadd.f32 %v2163, %v2196
        %v2234 = vadd.f32 %v2164, %v2198
        %v2235 = vadd.f32 %v2165, %v2200
        %v2236 = vadd.f32 %v2166, %v2202
        %v2237 = vadd.f32 %v2167, %v2204
        %v2238 = vadd.f32 %v2168, %v2206
        %v2239 = vadd.f32 %v2169, %v2208
        %v2240 = vadd.f32 %v2170, %v2210
        %v2241 = vadd.f32 %v2171, %v2212
        %v2242 = vadd.f32 %v2172, %v2214
        %2243 = vrot.lane.b32.xlu0 %v2159, 120
        %v2244 = vpop.permute.xlu0 %2243
        %2245 = vrot.lane.b32.xlu0 %v2160, 120
        %v2246 = vpop.permute.xlu0 %2245
        %2247 = vrot.lane.b32.xlu0 %v2161, 120
        %v2248 = vpop.permute.xlu0 %2247
        %2249 = vrot.lane.b32.xlu0 %v2162, 120
        %v2250 = vpop.permute.xlu0 %2249
        %2251 = vrot.lane.b32.xlu0 %v2163, 120
        %v2252 = vpop.permute.xlu0 %2251
        %2253 = vrot.lane.b32.xlu0 %v2164, 120
        %v2254 = vpop.permute.xlu0 %2253
        %2255 = vrot.lane.b32.xlu0 %v2165, 120
        %v2256 = vpop.permute.xlu0 %2255
        %2257 = vrot.lane.b32.xlu0 %v2166, 120
        %v2258 = vpop.permute.xlu0 %2257
        %2259 = vrot.lane.b32.xlu0 %v2167, 120
        %v2260 = vpop.permute.xlu0 %2259
        %2261 = vrot.lane.b32.xlu0 %v2168, 120
        %v2262 = vpop.permute.xlu0 %2261
        %2263 = vrot.lane.b32.xlu0 %v2169, 120
        %v2264 = vpop.permute.xlu0 %2263
        %2265 = vrot.lane.b32.xlu0 %v2170, 120
        %v2266 = vpop.permute.xlu0 %2265
        %2267 = vrot.lane.b32.xlu0 %v2171, 120
        %v2268 = vpop.permute.xlu0 %2267
        %2269 = vrot.lane.b32.xlu0 %v2172, 120
        %v2270 = vpop.permute.xlu0 %2269
        %v2285 = vadd.f32 %v2229, %v2244
        %v2286 = vadd.f32 %v2230, %v2246
        %v2287 = vadd.f32 %v2231, %v2248
        %v2288 = vadd.f32 %v2232, %v2250
        %v2289 = vadd.f32 %v2233, %v2252
        %v2290 = vadd.f32 %v2234, %v2254
        %v2291 = vadd.f32 %v2235, %v2256
        %v2292 = vadd.f32 %v2236, %v2258
        %v2293 = vadd.f32 %v2237, %v2260
        %v2294 = vadd.f32 %v2238, %v2262
        %v2295 = vadd.f32 %v2239, %v2264
        %v2296 = vadd.f32 %v2240, %v2266
        %v2297 = vadd.f32 %v2241, %v2268
        %v2298 = vadd.f32 %v2242, %v2270
        %v2299 = vld [vmem:[%s575] sm:$0xff]
        %v2300 = vld [vmem:[%s575 + $0x8] sm:$0xff]
        %v2301 = vld [vmem:[%s575 + $0x10] sm:$0xff]
        %v2302 = vld [vmem:[%s575 + $0x18] sm:$0xff]
        %v2303 = vld [vmem:[%s575 + $0x20] sm:$0xff]
        %v2304 = vld [vmem:[%s575 + $0x28] sm:$0xff]
        %v2305 = vld [vmem:[%s575 + $0x30] sm:$0xff]
        %v2306 = vld [vmem:[%s575 + $0x38] sm:$0xff]
        %v2307 = vld [vmem:[%s575 + $0x40] sm:$0xff]
        %v2308 = vld [vmem:[%s575 + $0x48] sm:$0xff]
        %v2309 = vld [vmem:[%s575 + $0x50] sm:$0xff]
        %v2310 = vld [vmem:[%s575 + $0x58] sm:$0xff]
        %v2311 = vld [vmem:[%s575 + $0x60] sm:$0xff]
        %v2312 = vld [vmem:[%s575 + $0x68] sm:$0xff]
        %v2313 = vld [vmem:[%s581] sm:$0xff]
        %v2314 = vld [vmem:[%s581 + $0x8] sm:$0xff]
        %v2315 = vld [vmem:[%s581 + $0x10] sm:$0xff]
        %v2316 = vld [vmem:[%s581 + $0x18] sm:$0xff]
        %v2317 = vld [vmem:[%s581 + $0x20] sm:$0xff]
        %v2318 = vld [vmem:[%s581 + $0x28] sm:$0xff]
        %v2319 = vld [vmem:[%s581 + $0x30] sm:$0xff]
        %v2320 = vld [vmem:[%s581 + $0x38] sm:$0xff]
        %v2321 = vld [vmem:[%s581 + $0x40] sm:$0xff]
        %v2322 = vld [vmem:[%s581 + $0x48] sm:$0xff]
        %v2323 = vld [vmem:[%s581 + $0x50] sm:$0xff]
        %v2324 = vld [vmem:[%s581 + $0x58] sm:$0xff]
        %v2325 = vld [vmem:[%s581 + $0x60] sm:$0xff]
        %v2326 = vld [vmem:[%s581 + $0x68] sm:$0xff]
        %v2327 = vld [vmem:[#allocation9] sm:$0x1]
        %v2328 = vmul.f32 %v2159, %v2159
        %v2329 = vmul.f32 %v2160, %v2160
        %v2330 = vmul.f32 %v2161, %v2161
        %v2331 = vmul.f32 %v2162, %v2162
        %v2332 = vmul.f32 %v2163, %v2163
        %v2333 = vmul.f32 %v2164, %v2164
        %v2334 = vmul.f32 %v2165, %v2165
        %v2335 = vmul.f32 %v2166, %v2166
        %v2336 = vmul.f32 %v2167, %v2167
        %v2337 = vmul.f32 %v2168, %v2168
        %v2338 = vmul.f32 %v2169, %v2169
        %v2339 = vmul.f32 %v2170, %v2170
        %v2340 = vmul.f32 %v2171, %v2171
        %v2341 = vmul.f32 %v2172, %v2172
        %2343 = vset.pattern.permute.xlu0 0
        %2344 = vperm.xlu0 %2343, %v2299
        %v2345 = vpop.permute.xlu0 %2344
        %2348 = vset.pattern.permute.xlu0 0
        %2349 = vperm.xlu0 %2348, %v2300
        %v2350 = vpop.permute.xlu0 %2349
        %2353 = vset.pattern.permute.xlu0 0
        %2354 = vperm.xlu0 %2353, %v2301
        %v2355 = vpop.permute.xlu0 %2354
        %2358 = vset.pattern.permute.xlu0 0
        %2359 = vperm.xlu0 %2358, %v2302
        %v2360 = vpop.permute.xlu0 %2359
        %2363 = vset.pattern.permute.xlu0 0
        %2364 = vperm.xlu0 %2363, %v2303
        %v2365 = vpop.permute.xlu0 %2364
        %2368 = vset.pattern.permute.xlu0 0
        %2369 = vperm.xlu0 %2368, %v2304
        %v2370 = vpop.permute.xlu0 %2369
        %2373 = vset.pattern.permute.xlu0 0
        %2374 = vperm.xlu0 %2373, %v2305
        %v2375 = vpop.permute.xlu0 %2374
        %2378 = vset.pattern.permute.xlu0 0
        %2379 = vperm.xlu0 %2378, %v2306
        %v2380 = vpop.permute.xlu0 %2379
        %2383 = vset.pattern.permute.xlu0 0
        %2384 = vperm.xlu0 %2383, %v2307
        %v2385 = vpop.permute.xlu0 %2384
        %2388 = vset.pattern.permute.xlu0 0
        %2389 = vperm.xlu0 %2388, %v2308
        %v2390 = vpop.permute.xlu0 %2389
        %2393 = vset.pattern.permute.xlu0 0
        %2394 = vperm.xlu0 %2393, %v2309
        %v2395 = vpop.permute.xlu0 %2394
        %2398 = vset.pattern.permute.xlu0 0
        %2399 = vperm.xlu0 %2398, %v2310
        %v2400 = vpop.permute.xlu0 %2399
        %2403 = vset.pattern.permute.xlu0 0
        %2404 = vperm.xlu0 %2403, %v2311
        %v2405 = vpop.permute.xlu0 %2404
        %2408 = vset.pattern.permute.xlu0 0
        %2409 = vperm.xlu0 %2408, %v2312
        %v2410 = vpop.permute.xlu0 %2409
        %v2412 = vmul.f32 %v2328, %v2345
        %v2413 = vmul.f32 %v2329, %v2350
        %v2414 = vmul.f32 %v2330, %v2355
        %v2415 = vmul.f32 %v2331, %v2360
        %v2416 = vmul.f32 %v2332, %v2365
        %v2417 = vmul.f32 %v2333, %v2370
        %v2418 = vmul.f32 %v2334, %v2375
        %v2419 = vmul.f32 %v2335, %v2380
        %v2420 = vmul.f32 %v2336, %v2385
        %v2421 = vmul.f32 %v2337, %v2390
        %v2422 = vmul.f32 %v2338, %v2395
        %v2423 = vmul.f32 %v2339, %v2400
        %v2424 = vmul.f32 %v2340, %v2405
        %v2425 = vmul.f32 %v2341, %v2410
        %vm2426 = vcmask 31744
        %v2427 = vsel %vm2426, %v2412, 0.0
        %v2428 = vsel %vm2426, %v2413, 0.0
        %v2429 = vadd.f32 %v2427, %v2428
        %v2430 = vsel %vm2426, %v2414, 0.0
        %v2431 = vadd.f32 %v2429, %v2430
        %v2432 = vsel %vm2426, %v2415, 0.0
        %v2433 = vadd.f32 %v2431, %v2432
        %v2434 = vsel %vm2426, %v2416, 0.0
        %v2435 = vadd.f32 %v2433, %v2434
        %v2436 = vsel %vm2426, %v2417, 0.0
        %v2437 = vadd.f32 %v2435, %v2436
        %v2438 = vsel %vm2426, %v2418, 0.0
        %v2439 = vadd.f32 %v2437, %v2438
        %v2440 = vsel %vm2426, %v2419, 0.0
        %v2441 = vadd.f32 %v2439, %v2440
        %v2442 = vsel %vm2426, %v2420, 0.0
        %v2443 = vadd.f32 %v2441, %v2442
        %v2444 = vsel %vm2426, %v2421, 0.0
        %v2445 = vadd.f32 %v2443, %v2444
        %v2446 = vsel %vm2426, %v2422, 0.0
        %v2447 = vadd.f32 %v2445, %v2446
        %v2448 = vsel %vm2426, %v2423, 0.0
        %v2449 = vadd.f32 %v2447, %v2448
        %v2450 = vsel %vm2426, %v2424, 0.0
        %v2451 = vadd.f32 %v2449, %v2450
        %v2452 = vsel %vm2426, %v2425, 0.0
        %v2453 = vadd.f32 %v2451, %v2452
        %2454 = vadd.xlane.f32.xlu0 %v2453
        %v2455 = vpop.xlane.xlu0 %2454
        %v2456 = vrot.slane %v2455, 4
        %v2457 = vadd.f32 %v2455, %v2456
        %v2458 = vrot.slane %v2457, 2
        %v2459 = vadd.f32 %v2457, %v2458
        %v2460 = vrot.slane %v2459, 1
        %v2461 = vadd.f32 %v2459, %v2460
        %s2462 = vtos %v2461
        %v2463 = vstv %s2462
        %v2464 = vadd.f32 %v2327, %v2463
        %vm2465 = vcmask 0
        %2466 = vst.msk [vmem:[#allocation9] sm:$0x1] %vm2465, %v2464
        %v2467 = vld [vmem:[#allocation5] sm:$0xff]
        %v2468 = vld [vmem:[#allocation5 + $0x8] sm:$0xff]
        %v2469 = vld [vmem:[#allocation5 + $0x10] sm:$0xff]
        %v2470 = vld [vmem:[#allocation5 + $0x18] sm:$0xff]
        %v2471 = vld [vmem:[#allocation5 + $0x20] sm:$0xff]
        %v2472 = vld [vmem:[#allocation5 + $0x28] sm:$0xff]
        %v2473 = vld [vmem:[#allocation5 + $0x30] sm:$0xff]
        %2481 = vrot.lane.b32.xlu0 %v2467, 4
        %v2482 = vpop.permute.xlu0 %2481
        %2483 = vrot.lane.b32.xlu0 %v2468, 4
        %v2484 = vpop.permute.xlu0 %2483
        %2485 = vrot.lane.b32.xlu0 %v2469, 4
        %v2486 = vpop.permute.xlu0 %2485
        %2487 = vrot.lane.b32.xlu0 %v2470, 4
        %v2488 = vpop.permute.xlu0 %2487
        %2489 = vrot.lane.b32.xlu0 %v2471, 4
        %v2490 = vpop.permute.xlu0 %2489
        %2491 = vrot.lane.b32.xlu0 %v2472, 4
        %v2492 = vpop.permute.xlu0 %2491
        %2493 = vrot.lane.b32.xlu0 %v2473, 4
        %v2494 = vpop.permute.xlu0 %2493
        %2495 = vrot.lane.b32.xlu0 %v2188, 4
        %v2496 = vpop.permute.xlu0 %2495
        %2497 = vrot.lane.b32.xlu0 %v2190, 4
        %v2498 = vpop.permute.xlu0 %2497
        %2499 = vrot.lane.b32.xlu0 %v2192, 4
        %v2500 = vpop.permute.xlu0 %2499
        %2501 = vrot.lane.b32.xlu0 %v2194, 4
        %v2502 = vpop.permute.xlu0 %2501
        %2503 = vrot.lane.b32.xlu0 %v2196, 4
        %v2504 = vpop.permute.xlu0 %2503
        %2505 = vrot.lane.b32.xlu0 %v2198, 4
        %v2506 = vpop.permute.xlu0 %2505
        %2507 = vrot.lane.b32.xlu0 %v2200, 4
        %v2508 = vpop.permute.xlu0 %2507
        %v2523 = vsub.f32 %v2159, %v2482
        %v2524 = vsub.f32 %v2160, %v2484
        %v2525 = vsub.f32 %v2161, %v2486
        %v2526 = vsub.f32 %v2162, %v2488
        %v2527 = vsub.f32 %v2163, %v2490
        %v2528 = vsub.f32 %v2164, %v2492
        %v2529 = vsub.f32 %v2165, %v2494
        %v2530 = vsub.f32 %v2166, %v2496
        %v2531 = vsub.f32 %v2167, %v2498
        %v2532 = vsub.f32 %v2168, %v2500
        %v2533 = vsub.f32 %v2169, %v2502
        %v2534 = vsub.f32 %v2170, %v2504
        %v2535 = vsub.f32 %v2171, %v2506
        %v2536 = vsub.f32 %v2172, %v2508
        %v2537 = vld [vmem:[#allocation11] sm:$0x1]
        %v2538 = vmul.f32 %v2523, %v2523
        %v2539 = vmul.f32 %v2524, %v2524
        %v2540 = vmul.f32 %v2525, %v2525
        %v2541 = vmul.f32 %v2526, %v2526
        %v2542 = vmul.f32 %v2527, %v2527
        %v2543 = vmul.f32 %v2528, %v2528
        %v2544 = vmul.f32 %v2529, %v2529
        %v2545 = vmul.f32 %v2530, %v2530
        %v2546 = vmul.f32 %v2531, %v2531
        %v2547 = vmul.f32 %v2532, %v2532
        %v2548 = vmul.f32 %v2533, %v2533
        %v2549 = vmul.f32 %v2534, %v2534
        %v2550 = vmul.f32 %v2535, %v2535
        %v2551 = vmul.f32 %v2536, %v2536
        %2553 = vset.pattern.permute.xlu0 0
        %2554 = vperm.xlu0 %2553, %v2313
        %v2555 = vpop.permute.xlu0 %2554
        %2558 = vset.pattern.permute.xlu0 0
        %2559 = vperm.xlu0 %2558, %v2314
        %v2560 = vpop.permute.xlu0 %2559
        %2563 = vset.pattern.permute.xlu0 0
        %2564 = vperm.xlu0 %2563, %v2315
        %v2565 = vpop.permute.xlu0 %2564
        %2568 = vset.pattern.permute.xlu0 0
        %2569 = vperm.xlu0 %2568, %v2316
        %v2570 = vpop.permute.xlu0 %2569
        %2573 = vset.pattern.permute.xlu0 0
        %2574 = vperm.xlu0 %2573, %v2317
        %v2575 = vpop.permute.xlu0 %2574
        %2578 = vset.pattern.permute.xlu0 0
        %2579 = vperm.xlu0 %2578, %v2318
        %v2580 = vpop.permute.xlu0 %2579
        %2583 = vset.pattern.permute.xlu0 0
        %2584 = vperm.xlu0 %2583, %v2319
        %v2585 = vpop.permute.xlu0 %2584
        %2588 = vset.pattern.permute.xlu0 0
        %2589 = vperm.xlu0 %2588, %v2320
        %v2590 = vpop.permute.xlu0 %2589
        %2593 = vset.pattern.permute.xlu0 0
        %2594 = vperm.xlu0 %2593, %v2321
        %v2595 = vpop.permute.xlu0 %2594
        %2598 = vset.pattern.permute.xlu0 0
        %2599 = vperm.xlu0 %2598, %v2322
        %v2600 = vpop.permute.xlu0 %2599
        %2603 = vset.pattern.permute.xlu0 0
        %2604 = vperm.xlu0 %2603, %v2323
        %v2605 = vpop.permute.xlu0 %2604
        %2608 = vset.pattern.permute.xlu0 0
        %2609 = vperm.xlu0 %2608, %v2324
        %v2610 = vpop.permute.xlu0 %2609
        %2613 = vset.pattern.permute.xlu0 0
        %2614 = vperm.xlu0 %2613, %v2325
        %v2615 = vpop.permute.xlu0 %2614
        %2618 = vset.pattern.permute.xlu0 0
        %2619 = vperm.xlu0 %2618, %v2326
        %v2620 = vpop.permute.xlu0 %2619
        %v2622 = vmul.f32 %v2538, %v2555
        %v2623 = vmul.f32 %v2539, %v2560
        %v2624 = vmul.f32 %v2540, %v2565
        %v2625 = vmul.f32 %v2541, %v2570
        %v2626 = vmul.f32 %v2542, %v2575
        %v2627 = vmul.f32 %v2543, %v2580
        %v2628 = vmul.f32 %v2544, %v2585
        %v2629 = vmul.f32 %v2545, %v2590
        %v2630 = vmul.f32 %v2546, %v2595
        %v2631 = vmul.f32 %v2547, %v2600
        %v2632 = vmul.f32 %v2548, %v2605
        %v2633 = vmul.f32 %v2549, %v2610
        %v2634 = vmul.f32 %v2550, %v2615
        %v2635 = vmul.f32 %v2551, %v2620
        %2650 = vrot.lane.b32.xlu0 %v2622, 124
        %v2651 = vpop.permute.xlu0 %2650
        %2652 = vrot.lane.b32.xlu0 %v2623, 124
        %v2653 = vpop.permute.xlu0 %2652
        %2654 = vrot.lane.b32.xlu0 %v2624, 124
        %v2655 = vpop.permute.xlu0 %2654
        %2656 = vrot.lane.b32.xlu0 %v2625, 124
        %v2657 = vpop.permute.xlu0 %2656
        %2658 = vrot.lane.b32.xlu0 %v2626, 124
        %v2659 = vpop.permute.xlu0 %2658
        %2660 = vrot.lane.b32.xlu0 %v2627, 124
        %v2661 = vpop.permute.xlu0 %2660
        %2662 = vrot.lane.b32.xlu0 %v2628, 124
        %v2663 = vpop.permute.xlu0 %2662
        %2664 = vrot.lane.b32.xlu0 %v2629, 124
        %v2665 = vpop.permute.xlu0 %2664
        %2666 = vrot.lane.b32.xlu0 %v2630, 124
        %v2667 = vpop.permute.xlu0 %2666
        %2668 = vrot.lane.b32.xlu0 %v2631, 124
        %v2669 = vpop.permute.xlu0 %2668
        %2670 = vrot.lane.b32.xlu0 %v2632, 124
        %v2671 = vpop.permute.xlu0 %2670
        %2672 = vrot.lane.b32.xlu0 %v2633, 124
        %v2673 = vpop.permute.xlu0 %2672
        %2674 = vrot.lane.b32.xlu0 %v2634, 124
        %v2675 = vpop.permute.xlu0 %2674
        %2676 = vrot.lane.b32.xlu0 %v2635, 124
        %v2677 = vpop.permute.xlu0 %2676
        %v2692 = vsel %vm2426, %v2651, 0.0
        %v2693 = vsel %vm2426, %v2653, 0.0
        %v2694 = vadd.f32 %v2692, %v2693
        %v2695 = vsel %vm2426, %v2655, 0.0
        %v2696 = vadd.f32 %v2694, %v2695
        %v2697 = vsel %vm2426, %v2657, 0.0
        %v2698 = vadd.f32 %v2696, %v2697
        %v2699 = vsel %vm2426, %v2659, 0.0
        %v2700 = vadd.f32 %v2698, %v2699
        %v2701 = vsel %vm2426, %v2661, 0.0
        %v2702 = vadd.f32 %v2700, %v2701
        %v2703 = vsel %vm2426, %v2663, 0.0
        %v2704 = vadd.f32 %v2702, %v2703
        %v2705 = vsel %vm2426, %v2665, 0.0
        %v2706 = vadd.f32 %v2704, %v2705
        %v2707 = vsel %vm2426, %v2667, 0.0
        %v2708 = vadd.f32 %v2706, %v2707
        %v2709 = vsel %vm2426, %v2669, 0.0
        %v2710 = vadd.f32 %v2708, %v2709
        %v2711 = vsel %vm2426, %v2671, 0.0
        %v2712 = vadd.f32 %v2710, %v2711
        %v2713 = vsel %vm2426, %v2673, 0.0
        %v2714 = vadd.f32 %v2712, %v2713
        %v2715 = vsel %vm2426, %v2675, 0.0
        %v2716 = vadd.f32 %v2714, %v2715
        %v2717 = vsel %vm2426, %v2677, 0.0
        %v2718 = vadd.f32 %v2716, %v2717
        %2719 = vadd.xlane.f32.xlu0 %v2718
        %v2720 = vpop.xlane.xlu0 %2719
        %v2721 = vrot.slane %v2720, 4
        %v2722 = vadd.f32 %v2720, %v2721
        %v2723 = vrot.slane %v2722, 2
        %v2724 = vadd.f32 %v2722, %v2723
        %v2725 = vrot.slane %v2724, 1
        %v2726 = vadd.f32 %v2724, %v2725
        %s2727 = vtos %v2726
        %v2728 = vstv %s2727
        %v2729 = vadd.f32 %v2537, %v2728
        %2730 = vst.msk [vmem:[#allocation11] sm:$0x1] %vm2465, %v2729
        %2731 = vst.msk [vmem:[#allocation5] sm:$0xff] %vm2426, %v2202
        %2732 = vst.msk [vmem:[#allocation5 + $0x8] sm:$0xff] %vm2426, %v2204
        %2733 = vst.msk [vmem:[#allocation5 + $0x10] sm:$0xff] %vm2426, %v2206
        %2734 = vst.msk [vmem:[#allocation5 + $0x18] sm:$0xff] %vm2426, %v2208
        %2735 = vst.msk [vmem:[#allocation5 + $0x20] sm:$0xff] %vm2426, %v2210
        %2736 = vst.msk [vmem:[#allocation5 + $0x28] sm:$0xff] %vm2426, %v2212
        %2737 = vst.msk [vmem:[#allocation5 + $0x30] sm:$0xff] %vm2426, %v2214
        %v2738 = vsel %vm2426, %v2244, 0.0
        %2739 = vadd.xlane.f32.xlu0 %v2738
        %v2740 = vpop.xlane.xlu0 %2739
        %v2741 = vsel %vm2426, %v2246, 0.0
        %2742 = vadd.xlane.f32.xlu0 %v2741
        %v2743 = vpop.xlane.xlu0 %2742
        %v2744 = vsel %vm2426, %v2248, 0.0
        %2745 = vadd.xlane.f32.xlu0 %v2744
        %v2746 = vpop.xlane.xlu0 %2745
        %v2747 = vsel %vm2426, %v2250, 0.0
        %2748 = vadd.xlane.f32.xlu0 %v2747
        %v2749 = vpop.xlane.xlu0 %2748
        %v2750 = vsel %vm2426, %v2252, 0.0
        %2751 = vadd.xlane.f32.xlu0 %v2750
        %v2752 = vpop.xlane.xlu0 %2751
        %v2753 = vsel %vm2426, %v2254, 0.0
        %2754 = vadd.xlane.f32.xlu0 %v2753
        %v2755 = vpop.xlane.xlu0 %2754
        %v2756 = vsel %vm2426, %v2256, 0.0
        %2757 = vadd.xlane.f32.xlu0 %v2756
        %v2758 = vpop.xlane.xlu0 %2757
        %v2759 = vsel %vm2426, %v2258, 0.0
        %2760 = vadd.xlane.f32.xlu0 %v2759
        %v2761 = vpop.xlane.xlu0 %2760
        %v2762 = vsel %vm2426, %v2260, 0.0
        %2763 = vadd.xlane.f32.xlu0 %v2762
        %v2764 = vpop.xlane.xlu0 %2763
        %v2765 = vsel %vm2426, %v2262, 0.0
        %2766 = vadd.xlane.f32.xlu0 %v2765
        %v2767 = vpop.xlane.xlu0 %2766
        %v2768 = vsel %vm2426, %v2264, 0.0
        %2769 = vadd.xlane.f32.xlu0 %v2768
        %v2770 = vpop.xlane.xlu0 %2769
        %v2771 = vsel %vm2426, %v2266, 0.0
        %2772 = vadd.xlane.f32.xlu0 %v2771
        %v2773 = vpop.xlane.xlu0 %2772
        %v2774 = vsel %vm2426, %v2268, 0.0
        %2775 = vadd.xlane.f32.xlu0 %v2774
        %v2776 = vpop.xlane.xlu0 %2775
        %v2777 = vsel %vm2426, %v2270, 0.0
        %2778 = vadd.xlane.f32.xlu0 %v2777
        %v2779 = vpop.xlane.xlu0 %2778
        %v2780 = vrcp.pop 4.0
        %v2781 = vmul.f32 4.0, %v2780
        %v2782 = vsub.f32 1.0, %v2781
        %v2783 = vmul.f32 %v2780, %v2782
        %v2784 = vadd.f32 %v2780, %v2783
        %vm2785 = vweird.f32 %v2780
        %v2786 = vsel %vm2785, %v2780, %v2784
        %v2787 = vmul.f32 %v2740, %v2786
        %v2788 = vmul.f32 %v2743, %v2786
        %v2789 = vmul.f32 %v2746, %v2786
        %v2790 = vmul.f32 %v2749, %v2786
        %v2791 = vmul.f32 %v2752, %v2786
        %v2792 = vmul.f32 %v2755, %v2786
        %v2793 = vmul.f32 %v2758, %v2786
        %v2794 = vmul.f32 %v2761, %v2786
        %v2795 = vmul.f32 %v2764, %v2786
        %v2796 = vmul.f32 %v2767, %v2786
        %v2797 = vmul.f32 %v2770, %v2786
        %v2798 = vmul.f32 %v2773, %v2786
        %v2799 = vmul.f32 %v2776, %v2786
        %v2800 = vmul.f32 %v2779, %v2786
        %v2801 = vsub.f32 %v2159, %v2787
        %v2802 = vsub.f32 %v2160, %v2788
        %v2803 = vsub.f32 %v2161, %v2789
        %v2804 = vsub.f32 %v2162, %v2790
        %v2805 = vsub.f32 %v2163, %v2791
        %v2806 = vsub.f32 %v2164, %v2792
        %v2807 = vsub.f32 %v2165, %v2793
        %v2808 = vsub.f32 %v2166, %v2794
        %v2809 = vsub.f32 %v2167, %v2795
        %v2810 = vsub.f32 %v2168, %v2796
        %v2811 = vsub.f32 %v2169, %v2797
        %v2812 = vsub.f32 %v2170, %v2798
        %v2813 = vsub.f32 %v2171, %v2799
        %v2814 = vsub.f32 %v2172, %v2800
        %v2815 = vmul.f32 %v2801, %v2801
        %v2816 = vmul.f32 %v2802, %v2802
        %v2817 = vmul.f32 %v2803, %v2803
        %v2818 = vmul.f32 %v2804, %v2804
        %v2819 = vmul.f32 %v2805, %v2805
        %v2820 = vmul.f32 %v2806, %v2806
        %v2821 = vmul.f32 %v2807, %v2807
        %v2822 = vmul.f32 %v2808, %v2808
        %v2823 = vmul.f32 %v2809, %v2809
        %v2824 = vmul.f32 %v2810, %v2810
        %v2825 = vmul.f32 %v2811, %v2811
        %v2826 = vmul.f32 %v2812, %v2812
        %v2827 = vmul.f32 %v2813, %v2813
        %v2828 = vmul.f32 %v2814, %v2814
        %2843 = vrot.lane.b32.xlu0 %v2815, 120
        %v2844 = vpop.permute.xlu0 %2843
        %2845 = vrot.lane.b32.xlu0 %v2816, 120
        %v2846 = vpop.permute.xlu0 %2845
        %2847 = vrot.lane.b32.xlu0 %v2817, 120
        %v2848 = vpop.permute.xlu0 %2847
        %2849 = vrot.lane.b32.xlu0 %v2818, 120
        %v2850 = vpop.permute.xlu0 %2849
        %2851 = vrot.lane.b32.xlu0 %v2819, 120
        %v2852 = vpop.permute.xlu0 %2851
        %2853 = vrot.lane.b32.xlu0 %v2820, 120
        %v2854 = vpop.permute.xlu0 %2853
        %2855 = vrot.lane.b32.xlu0 %v2821, 120
        %v2856 = vpop.permute.xlu0 %2855
        %2857 = vrot.lane.b32.xlu0 %v2822, 120
        %v2858 = vpop.permute.xlu0 %2857
        %2859 = vrot.lane.b32.xlu0 %v2823, 120
        %v2860 = vpop.permute.xlu0 %2859
        %2861 = vrot.lane.b32.xlu0 %v2824, 120
        %v2862 = vpop.permute.xlu0 %2861
        %2863 = vrot.lane.b32.xlu0 %v2825, 120
        %v2864 = vpop.permute.xlu0 %2863
        %2865 = vrot.lane.b32.xlu0 %v2826, 120
        %v2866 = vpop.permute.xlu0 %2865
        %2867 = vrot.lane.b32.xlu0 %v2827, 120
        %v2868 = vpop.permute.xlu0 %2867
        %2869 = vrot.lane.b32.xlu0 %v2828, 120
        %v2870 = vpop.permute.xlu0 %2869
        %v2885 = vsel %vm2426, %v2844, 0.0
        %2886 = vadd.xlane.f32.xlu0 %v2885
        %v2887 = vpop.xlane.xlu0 %2886
        %v2888 = vsel %vm2426, %v2846, 0.0
        %2889 = vadd.xlane.f32.xlu0 %v2888
        %v2890 = vpop.xlane.xlu0 %2889
        %v2891 = vsel %vm2426, %v2848, 0.0
        %2892 = vadd.xlane.f32.xlu0 %v2891
        %v2893 = vpop.xlane.xlu0 %2892
        %v2894 = vsel %vm2426, %v2850, 0.0
        %2895 = vadd.xlane.f32.xlu0 %v2894
        %v2896 = vpop.xlane.xlu0 %2895
        %v2897 = vsel %vm2426, %v2852, 0.0
        %2898 = vadd.xlane.f32.xlu0 %v2897
        %v2899 = vpop.xlane.xlu0 %2898
        %v2900 = vsel %vm2426, %v2854, 0.0
        %2901 = vadd.xlane.f32.xlu0 %v2900
        %v2902 = vpop.xlane.xlu0 %2901
        %v2903 = vsel %vm2426, %v2856, 0.0
        %2904 = vadd.xlane.f32.xlu0 %v2903
        %v2905 = vpop.xlane.xlu0 %2904
        %v2906 = vsel %vm2426, %v2858, 0.0
        %2907 = vadd.xlane.f32.xlu0 %v2906
        %v2908 = vpop.xlane.xlu0 %2907
        %v2909 = vsel %vm2426, %v2860, 0.0
        %2910 = vadd.xlane.f32.xlu0 %v2909
        %v2911 = vpop.xlane.xlu0 %2910
        %v2912 = vsel %vm2426, %v2862, 0.0
        %2913 = vadd.xlane.f32.xlu0 %v2912
        %v2914 = vpop.xlane.xlu0 %2913
        %v2915 = vsel %vm2426, %v2864, 0.0
        %2916 = vadd.xlane.f32.xlu0 %v2915
        %v2917 = vpop.xlane.xlu0 %2916
        %v2918 = vsel %vm2426, %v2866, 0.0
        %2919 = vadd.xlane.f32.xlu0 %v2918
        %v2920 = vpop.xlane.xlu0 %2919
        %v2921 = vsel %vm2426, %v2868, 0.0
        %2922 = vadd.xlane.f32.xlu0 %v2921
        %v2923 = vpop.xlane.xlu0 %2922
        %v2924 = vsel %vm2426, %v2870, 0.0
        %2925 = vadd.xlane.f32.xlu0 %v2924
        %v2926 = vpop.xlane.xlu0 %2925
        %v2927 = vmul.f32 %v2887, 0.33333334
        %v2928 = vmul.f32 %v2890, 0.33333334
        %v2929 = vmul.f32 %v2893, 0.33333334
        %v2930 = vmul.f32 %v2896, 0.33333334
        %v2931 = vmul.f32 %v2899, 0.33333334
        %v2932 = vmul.f32 %v2902, 0.33333334
        %v2933 = vmul.f32 %v2905, 0.33333334
        %v2934 = vmul.f32 %v2908, 0.33333334
        %v2935 = vmul.f32 %v2911, 0.33333334
        %v2936 = vmul.f32 %v2914, 0.33333334
        %v2937 = vmul.f32 %v2917, 0.33333334
        %v2938 = vmul.f32 %v2920, 0.33333334
        %v2939 = vmul.f32 %v2923, 0.33333334
        %v2940 = vmul.f32 %v2926, 0.33333334
        %v2941 = vld [vmem:[#allocation13] sm:$0x1]
        %v2942 = vmul.f32 %v2927, %v2299
        %v2943 = vmul.f32 %v2928, %v2300
        %v2944 = vmul.f32 %v2929, %v2301
        %v2945 = vmul.f32 %v2930, %v2302
        %v2946 = vmul.f32 %v2931, %v2303
        %v2947 = vmul.f32 %v2932, %v2304
        %v2948 = vmul.f32 %v2933, %v2305
        %v2949 = vmul.f32 %v2934, %v2306
        %v2950 = vmul.f32 %v2935, %v2307
        %v2951 = vmul.f32 %v2936, %v2308
        %v2952 = vmul.f32 %v2937, %v2309
        %v2953 = vmul.f32 %v2938, %v2310
        %v2954 = vmul.f32 %v2939, %v2311
        %v2955 = vmul.f32 %v2940, %v2312
        %vm2956 = vcmask 7168
        %v2957 = vsel %vm2956, %v2942, 0.0
        %v2958 = vsel %vm2956, %v2943, 0.0
        %v2959 = vadd.f32 %v2957, %v2958
        %v2960 = vsel %vm2956, %v2944, 0.0
        %v2961 = vadd.f32 %v2959, %v2960
        %v2962 = vsel %vm2956, %v2945, 0.0
        %v2963 = vadd.f32 %v2961, %v2962
        %v2964 = vsel %vm2956, %v2946, 0.0
        %v2965 = vadd.f32 %v2963, %v2964
        %v2966 = vsel %vm2956, %v2947, 0.0
        %v2967 = vadd.f32 %v2965, %v2966
        %v2968 = vsel %vm2956, %v2948, 0.0
        %v2969 = vadd.f32 %v2967, %v2968
        %v2970 = vsel %vm2956, %v2949, 0.0
        %v2971 = vadd.f32 %v2969, %v2970
        %v2972 = vsel %vm2956, %v2950, 0.0
        %v2973 = vadd.f32 %v2971, %v2972
        %v2974 = vsel %vm2956, %v2951, 0.0
        %v2975 = vadd.f32 %v2973, %v2974
        %v2976 = vsel %vm2956, %v2952, 0.0
        %v2977 = vadd.f32 %v2975, %v2976
        %v2978 = vsel %vm2956, %v2953, 0.0
        %v2979 = vadd.f32 %v2977, %v2978
        %v2980 = vsel %vm2956, %v2954, 0.0
        %v2981 = vadd.f32 %v2979, %v2980
        %v2982 = vsel %vm2956, %v2955, 0.0
        %v2983 = vadd.f32 %v2981, %v2982
        %2984 = vadd.xlane.f32.xlu0 %v2983
        %v2985 = vpop.xlane.xlu0 %2984
        %v2986 = vrot.slane %v2985, 4
        %v2987 = vadd.f32 %v2985, %v2986
        %v2988 = vrot.slane %v2987, 2
        %v2989 = vadd.f32 %v2987, %v2988
        %v2990 = vrot.slane %v2989, 1
        %v2991 = vadd.f32 %v2989, %v2990
        %s2992 = vtos %v2991
        %v2993 = vstv %s2992
        %v2994 = vadd.f32 %v2941, %v2993
        %2995 = vst.msk [vmem:[#allocation13] sm:$0x1] %vm2465, %v2994
        %2997 = vrot.lane.b32.xlu0 %v2286, 4
        %v2998 = vpop.permute.xlu0 %2997
        %3001 = vrot.lane.b32.xlu0 %v2287, 8
        %v3002 = vpop.permute.xlu0 %3001
        %3005 = vrot.lane.b32.xlu0 %v2288, 12
        %v3006 = vpop.permute.xlu0 %3005
        %3009 = vrot.lane.b32.xlu0 %v2289, 16
        %v3010 = vpop.permute.xlu0 %3009
        %3013 = vrot.lane.b32.xlu0 %v2290, 20
        %v3014 = vpop.permute.xlu0 %3013
        %3017 = vrot.lane.b32.xlu0 %v2291, 24
        %v3018 = vpop.permute.xlu0 %3017
        %3021 = vrot.lane.b32.xlu0 %v2292, 28
        %v3022 = vpop.permute.xlu0 %3021
        %3025 = vrot.lane.b32.xlu0 %v2293, 32
        %v3026 = vpop.permute.xlu0 %3025
        %3029 = vrot.lane.b32.xlu0 %v2294, 36
        %v3030 = vpop.permute.xlu0 %3029
        %3033 = vrot.lane.b32.xlu0 %v2295, 40
        %v3034 = vpop.permute.xlu0 %3033
        %3037 = vrot.lane.b32.xlu0 %v2296, 44
        %v3038 = vpop.permute.xlu0 %3037
        %3041 = vrot.lane.b32.xlu0 %v2297, 48
        %v3042 = vpop.permute.xlu0 %3041
        %3045 = vrot.lane.b32.xlu0 %v2298, 52
        %v3046 = vpop.permute.xlu0 %3045
        %v3048 = vsel %vm2426, %v2285, %v2998
        %vm3049 = vcmask 64512
        %v3050 = vsel %vm3049, %v3048, %v3002
        %vm3051 = vcmask 97280
        %v3052 = vsel %vm3051, %v3050, %v3006
        %vm3053 = vcmask 130048
        %v3054 = vsel %vm3053, %v3052, %v3010
        %vm3055 = vcmask 162816
        %v3056 = vsel %vm3055, %v3054, %v3014
        %vm3057 = vcmask 195584
        %v3058 = vsel %vm3057, %v3056, %v3018
        %vm3059 = vcmask 228352
        %v3060 = vsel %vm3059, %v3058, %v3022
        %v3061 = vsel %vm634, %v3060, %v3026
        %vm3062 = vcmask 293888
        %v3063 = vsel %vm3062, %v3061, %v3030
        %vm3064 = vcmask 326656
        %v3065 = vsel %vm3064, %v3063, %v3034
        %vm3066 = vcmask 359424
        %v3067 = vsel %vm3066, %v3065, %v3038
        %vm3068 = vcmask 392192
        %v3069 = vsel %vm3068, %v3067, %v3042
        %vm3070 = vcmask 424960
        %v3071 = vsel %vm3070, %v3069, %v3046
        %vm3072 = vcmask 457728
        %3073 = vst.msk [vmem:[%s586] sm:$0xff] %vm3072, %v3071
        %p3074 = scmp.lt.s32.totalorder %s31, 1
        %s3075 = scalar_select %p3074, %s31, 1
        %s3076 = smul.addr %s3075, 8
        %s3077 = scalar_lea.vmem %s14, %s3076
        // Predicated region
        $region81: #{drnn_forward.1} parent=75 // pred_check
          %p3078 = pneg %p358
        $region82: #{drnn_forward.1} parent=75 // pred_check_branch
          %3080 = sbr.rel (%p3078) target = $region84
        $region83: #{drnn_forward.1} parent=75 // pred_region
          _
        $region84: #{drnn_forward.1} parent=75 // pred_fallthru
          _
        // Predicated region
        $region85: #{drnn_forward.1} parent=75 // pred_check
          %p3081 = pneg %p379
        $region86: #{drnn_forward.1} parent=75 // pred_check_branch
          %3083 = sbr.rel (%p3081) target = $region88
        $region87: #{drnn_forward.1} parent=75 // pred_region
          %3085 = vsyncadd [#allocation10], 0
          %s3087 = sshll.u32 [#allocation9], 4
          %s3088 = int_to_ptr.vmem [resolvable:$true] %s3087
          %s3089 = sshll.u32 %s15, 4
          %s3090 = int_to_ptr.hbm [resolvable:$true] %s3089
          %3092 = dma.vmem_to_hbm [thread:$0]  %s3088, 16, %s3090, [#allocation10]
        $region88: #{drnn_forward.1} parent=75 // pred_fallthru
          _
        // Predicated region
        $region89: #{drnn_forward.1} parent=75 // pred_check
          %p3093 = pneg %p400
        $region90: #{drnn_forward.1} parent=75 // pred_check_branch
          %3095 = sbr.rel (%p3093) target = $region92
        $region91: #{drnn_forward.1} parent=75 // pred_region
          %3097 = vsyncadd [#allocation12], 0
          %s3099 = sshll.u32 [#allocation11], 4
          %s3100 = int_to_ptr.vmem [resolvable:$true] %s3099
          %s3101 = sshll.u32 %s16, 4
          %s3102 = int_to_ptr.hbm [resolvable:$true] %s3101
          %3104 = dma.vmem_to_hbm [thread:$0]  %s3100, 16, %s3102, [#allocation12]
        $region92: #{drnn_forward.1} parent=75 // pred_fallthru
          _
        // Predicated region
        $region93: #{drnn_forward.1} parent=75 // pred_check
          %p3105 = pneg %p421
        $region94: #{drnn_forward.1} parent=75 // pred_check_branch
          %3107 = sbr.rel (%p3105) target = $region96
        $region95: #{drnn_forward.1} parent=75 // pred_region
          %3109 = vsyncadd [#allocation12], 0
          %s3111 = sshll.u32 [#allocation13], 4
          %s3112 = int_to_ptr.vmem [resolvable:$true] %s3111
          %s3113 = sshll.u32 %s17, 4
          %s3114 = int_to_ptr.hbm [resolvable:$true] %s3113
          %3116 = dma.vmem_to_hbm [thread:$0]  %s3112, 16, %s3114, [#allocation12]
        $region96: #{drnn_forward.1} parent=75 // pred_fallthru
          _
        // Predicated region
        $region97: #{drnn_forward.1} parent=75 // pred_check
          %p3117 = pneg %p379
        $region98: #{drnn_forward.1} parent=75 // pred_check_branch
          %3119 = sbr.rel (%p3117) target = $region100
        $region99: #{drnn_forward.1} parent=75 // pred_region
          %3121 = dma.done [#allocation10], 16
        $region100: #{drnn_forward.1} parent=75 // pred_fallthru
          _
        // Predicated region
        $region101: #{drnn_forward.1} parent=75 // pred_check
          %p3122 = pneg %p400
        $region102: #{drnn_forward.1} parent=75 // pred_check_branch
          %3124 = sbr.rel (%p3122) target = $region104
        $region103: #{drnn_forward.1} parent=75 // pred_region
          %3126 = dma.done [#allocation12], 16
        $region104: #{drnn_forward.1} parent=75 // pred_fallthru
          _
        // Predicated region
        $region105: #{drnn_forward.1} parent=75 // pred_check
          %p3127 = pneg %p421
        $region106: #{drnn_forward.1} parent=75 // pred_check_branch
          %3129 = sbr.rel (%p3127) target = $region108
        $region107: #{drnn_forward.1} parent=75 // pred_region
          %3131 = dma.done [#allocation12], 16
        $region108: #{drnn_forward.1} parent=75 // pred_fallthru
          _
      $region76: #{drnn_forward.1} parent=5 // pred_fallthru
        _
      %p3132 = scmp.le.s32.totalorder 2, %s26
      // Predicated region
      $region109: #{drnn_forward.1} parent=5 // pred_check
        %p3133 = pneg %p3132
      $region110: #{drnn_forward.1} parent=5 // pred_check_branch
        %3135 = sbr.rel (%p3133) target = $region112
      $region111: #{drnn_forward.1} parent=5 // pred_region
        %s3136 = ssub.s32 %s26, 2
        // Predicated region
        $region113: #{drnn_forward.1} parent=111 // pred_check
          %p3137 = pneg %p364
        $region114: #{drnn_forward.1} parent=111 // pred_check_branch
          %3139 = sbr.rel (%p3137) target = $region116
        $region115: #{drnn_forward.1} parent=111 // pred_region
          %p3140 = scmp.lt.s32.totalorder %s32, 1
          %s3141 = scalar_select %p3140, %s32, 1
          %s3142 = smul.addr %s3141, 8
          %s3143 = scalar_lea.vmem %s14, %s3142
        $region116: #{drnn_forward.1} parent=111 // pred_fallthru
          _
      $region112: #{drnn_forward.1} parent=5 // pred_fallthru
        _
    $region6: #{drnn_forward.1} parent=1 // loop_footer
      %s30 = sadd.s32 1, %s26
    $region7: #{drnn_forward.1} parent=1 // loop_footer_branch
      %25 = sbr.rel target = $region3
    $region8: #{drnn_forward.1} parent=1 // loop_exit
      _
    %3144 = vsyncpa [#allocation10], 1
    %s3145 = scalar_lea.sflag [#allocation10], 1
    %3146 = vsyncpa %s3145, 1
    %3147 = vsyncpa [#allocation12], 1

</llo_original>
